<compile_context>
chip_gen: v6e
topology: v6e:2x2x1
jax: 0.10.0
libtpu: 0.0.40
codegen_flags: <defaults>
</compile_context>

<pallas_src>
import functools

import jax
import jax.numpy as jnp
from jax import lax
from jax.experimental import pallas as pl
from jax.experimental.pallas import tpu as pltpu


def _residual_stack_kernel(x_ref, w1_ref, w2_ref, o_ref, acc_ref, xp_ref, *,
                           pad_l):
    # x_ref  : (Bt, H, W*Cin)            input dtype, lane-dense
    # w1_ref : (L, 3, Wtot, W*Cr)        bf16, dx/w structure folded in (banded)
    # w2_ref : (L, W*Cr, W*Cout)         bf16, block-diagonal over w
    # o_ref  : (Bt, H, W*Cout)
    # acc_ref: (Bt, H, W*Cin) f32        residual accumulator (aligned)
    # xp_ref : (Bt, 8+H+1, Wtot) bf16    haloed ReLU(x); interior at rows
    #          [8, 8+H), lanes [pad_l, pad_l + W*Cin); border stays zero.
    L = w1_ref.shape[0]
    wtot = w1_ref.shape[2]
    nco = w2_ref.shape[2]
    bt, h, wc = x_ref.shape
    cdt = w1_ref.dtype  # matmul / compute dtype (bf16)

    # Load the activation block once; it stays VMEM-resident (f32) for the
    # whole stack.  Lane-dense and tile-aligned.
    acc_ref[...] = x_ref[...].astype(jnp.float32)

    # Zero ONLY the halo border of the ReLU buffer (the interior is fully
    # overwritten every layer; rows < 7 and > 8+h are never read).  Redone per
    # grid step so the kernel stays correct if the "parallel" batch axis is
    # split across TensorCores.
    xp_ref[:, 7:8, :] = jnp.zeros((bt, 1, wtot), cdt)              # top halo row
    xp_ref[:, 8 + h:9 + h, :] = jnp.zeros((bt, 1, wtot), cdt)      # bottom halo row
    xp_ref[:, 8:8 + h, 0:pad_l] = jnp.zeros((bt, h, pad_l), cdt)   # left halo lanes
    xp_ref[:, 8:8 + h, pad_l + wc:] = jnp.zeros(
        (bt, h, wtot - pad_l - wc), cdt)                           # right halo lanes

    for l in range(L):  # num_residual_layers: small & static -> unrolled
        # ReLU(x), cast to the matmul dtype BEFORE any gathering, written into
        # the sublane-8 / lane-128 aligned interior of the haloed buffer.
        xp_ref[:, 8:8 + h, pad_l:pad_l + wc] = (
            jnp.maximum(acc_ref[...], 0.0).astype(cdt))

        # 3x3 conv: three row-shifted, lane-dense matmuls against the banded
        # weights (dx taps / per-column structure live inside the weight
        # matrix, so no per-tap lane shuffles or concats are needed).
        hidden = jnp.zeros((bt * h, w1_ref.shape[3]), jnp.float32)
        for dy in range(3):
            lhs = xp_ref[:, 7 + dy:7 + dy + h, :].reshape(bt * h, wtot)
            hidden = hidden + jnp.dot(lhs, w1_ref[l, dy],
                                      preferred_element_type=jnp.float32)
        hidden = jnp.maximum(hidden, 0.0).astype(cdt)      # (Bt*H, W*Cr)

        # 1x1 conv: block-diagonal channel matmul; residual add stays f32,
        # lane-dense and aligned.
        delta = jnp.dot(hidden, w2_ref[l], preferred_element_type=jnp.float32)
        acc_ref[...] = acc_ref[...] + delta.reshape(bt, h, nco)

    # Trailing F.relu(x) of the stack; lane-dense store.
    o_ref[...] = jnp.maximum(acc_ref[...], 0.0).astype(o_ref.dtype)


def residual_stack_forward_nhwc(x_nhwc, w1_stack_hwio, w2_stack_io, *,
                                block_batch=None,
                                compute_dtype=jnp.bfloat16):
    """x: (B,H,W,Cin); w1_stack: (L,3,3,Cin,Cr); w2_stack: (L,Cr,Cout)."""
    B, H, W, Cin = x_nhwc.shape
    L, kh, kw, Cin_w, Cr = w1_stack_hwio.shape
    Cout = w2_stack_io.shape[2]
    assert (kh, kw) == (3, 3) and Cin_w == Cin
    assert Cout == Cin, "residual add requires num_hiddens == in_channels"

    # Batch block per grid step: amortizes per-step overhead / gives the
    # matmuls a taller M, while keeping >=2 grid steps when possible so the
    # parallel axis can shard across both v7x TensorCores and overlap I/O DMA.
    if block_batch is None:
        cand = [d for d in (4, 3, 2, 1) if B % d == 0]
        multi = [d for d in cand if B // d >= 2]
        block_batch = multi[0] if multi else cand[0]
    Bt = block_batch
    assert B % Bt == 0

    wc = W * Cin
    ncr = W * Cr
    nco = W * Cout
    pad_l = ((Cin + 127) // 128) * 128   # aligned interior start (>= Cin)
    pad_r = ((Cin + 127) // 128) * 128   # >= Cin for the dx=+1 tap
    wtot = pad_l + wc + pad_r

    # --- Weight prep (bf16), done once per call; pre-pack offline in real use.
    w1c = w1_stack_hwio.astype(compute_dtype)   # (L, 3, 3, Cin, Cr)
    w2c = w2_stack_io.astype(compute_dtype)     # (L, Cr, Cout)

    # Banded 3x3 weights: for each dy, a (Wtot -> W*Cr) matrix whose band at
    # output column block w picks input lanes of columns w-1, w, w+1 (halo
    # columns land in the zero pads, reproducing the conv's zero padding).
    w1b = jnp.zeros((L, 3, wtot, ncr), compute_dtype)
    for dx in range(3):
        for w in range(W):
            r0 = pad_l + (w + dx - 1) * Cin
            w1b = w1b.at[:, :, r0:r0 + Cin, w * Cr:(w + 1) * Cr].set(
                w1c[:, :, dx])

    # Block-diagonal 1x1 weights: (W*Cr -> W*Cout).
    eye_w = jnp.eye(W, dtype=compute_dtype)
    w2bd = jnp.einsum('wv,lrc->lwrvc', eye_w, w2c).reshape(L, ncr, nco)

    # Lane-dense HBM boundary: flatten (W, C) onto the lane axis.
    x_flat = x_nhwc.reshape(B, H, wc)

    y_flat = pl.pallas_call(
        functools.partial(_residual_stack_kernel, pad_l=pad_l),
        out_shape=jax.ShapeDtypeStruct((B, H, nco), x_nhwc.dtype),
        grid_spec=pltpu.PrefetchScalarGridSpec(
            num_scalar_prefetch=0,
            grid=(B // Bt,),
            in_specs=[
                pl.BlockSpec((Bt, H, wc), lambda b: (b, 0, 0)),
                pl.BlockSpec((L, 3, wtot, ncr), lambda b: (0, 0, 0, 0)),
                pl.BlockSpec((L, ncr, nco), lambda b: (0, 0, 0)),
            ],
            out_specs=pl.BlockSpec((Bt, H, nco), lambda b: (b, 0, 0)),
            scratch_shapes=[
                pltpu.VMEM((Bt, H, wc), jnp.float32),            # accumulator
                pltpu.VMEM((Bt, 8 + H + 1, wtot), compute_dtype),  # haloed ReLU
            ],
        ),
        compiler_params=pltpu.CompilerParams(
            dimension_semantics=("parallel",)),
    )(x_flat, w1b, w2bd)
    return y_flat.reshape(B, H, W, Cout)


def residual_stack_forward_nchw(x_nchw, w1_oihw_stack, w2_oihw_stack, **kw):
    """Matches PyTorch ResidualStack.forward (NCHW in / NCHW out).

    NCHW<->NHWC / OIHW transposes are done once per *stack* call; in an
    NHWC-native model call residual_stack_forward_nhwc directly.
    """
    x_nhwc = jnp.transpose(x_nchw, (0, 2, 3, 1))
    w1 = jnp.transpose(w1_oihw_stack, (0, 3, 4, 2, 1))            # (L,3,3,Cin,Cr)
    w2 = jnp.transpose(w2_oihw_stack[:, :, :, 0, 0], (0, 2, 1))   # (L,Cr,Cout)
    y_nhwc = residual_stack_forward_nhwc(x_nhwc, w1, w2, **kw)
    return jnp.transpose(y_nhwc, (0, 3, 1, 2))


def _reference_nchw(x, w1_stack, w2_stack):
    """Pure-JAX f32 reference of ResidualStack.forward (NCHW, OIHW weights)."""
    L = w1_stack.shape[0]
    for l in range(L):
        h = jnp.maximum(x, 0.0)
        h = lax.conv_general_dilated(h, w1_stack[l], (1, 1), ((1, 1), (1, 1)),
                                     dimension_numbers=("NCHW", "OIHW", "NCHW"),
                                     precision=lax.Precision.HIGHEST)
        h = jnp.maximum(h, 0.0)
        h = lax.conv_general_dilated(h, w2_stack[l], (1, 1), ((0, 0), (0, 0)),
                                     dimension_numbers=("NCHW", "OIHW", "NCHW"),
                                     precision=lax.Precision.HIGHEST)
        x = x + h
    return jnp.maximum(x, 0.0)


if __name__ == "__main__":
    # Small shapes consistent with the module: in_channels == num_hiddens.
    B, H, W = 4, 16, 16
    in_channels = 32
    num_hiddens = 32
    num_residual_hiddens = 16
    num_residual_layers = 2

    key = jax.random.PRNGKey(0)
    kx, k1, k2 = jax.random.split(key, 3)

    x = jax.random.normal(kx, (B, in_channels, H, W), dtype=jnp.float32)
    # Deterministic synthetic weights (PyTorch OIHW layout), fan-in scaled.
    w1 = jax.random.normal(
        k1, (num_residual_layers, num_residual_hiddens, in_channels, 3, 3),
        dtype=jnp.float32) * (1.0 / (3 * 3 * in_channels) ** 0.5)
    w2 = jax.random.normal(
        k2, (num_residual_layers, num_hiddens, num_residual_hiddens, 1, 1),
        dtype=jnp.float32) * (1.0 / num_residual_hiddens ** 0.5)

    fwd = jax.jit(residual_stack_forward_nchw)
    y = jax.block_until_ready(fwd(x, w1, w2))
    y_ref = jax.block_until_ready(_reference_nchw(x, w1, w2))

    assert y.shape == (B, num_hiddens, H, W)
    # bf16 matmul inputs / weights (f32 accumulation) vs an f32 reference.
    max_err = float(jnp.max(jnp.abs(y - y_ref)))
    assert jnp.allclose(y, y_ref, atol=5e-2, rtol=5e-2), (
        f"mismatch vs reference, max abs err = {max_err}")

    print("KERNEL_OK")
</pallas_src>

<mosaic_0001>
module attributes {stable_mosaic.version = 11 : i64} {
  func.func @_residual_stack_kernel(%arg0: i32, %arg1: memref<2x16x512xf32, #tpu.memory_space<vmem>>, %arg2: memref<2x3x768x256xbf16, #tpu.memory_space<vmem>>, %arg3: memref<2x256x512xbf16, #tpu.memory_space<vmem>>, %arg4: memref<2x16x512xf32, #tpu.memory_space<vmem>>, %arg5: memref<2x16x512xf32, #tpu.memory_space<vmem>>, %arg6: memref<2x25x768xbf16, #tpu.memory_space<vmem>>) attributes {dimension_semantics = [#tpu.dimension_semantics<parallel>], iteration_bounds = array<i64: 2>, scalar_prefetch = 0 : i64, scratch_operands = 2 : i64, tpu.core_type = #tpu.core_type<tc>, window_params = [{transform_indices = @transform_0, window_bounds = array<i64: 2, 16, 512>}, {pipeline_mode = #tpu.pipeline_mode<synchronous>, transform_indices = @transform_1, window_bounds = array<i64: 2, 3, 768, 256>}, {pipeline_mode = #tpu.pipeline_mode<synchronous>, transform_indices = @transform_2, window_bounds = array<i64: 2, 256, 512>}, {transform_indices = @transform_3, window_bounds = array<i64: 2, 16, 512>}]} {
    %c0 = arith.constant 0 : index
    %c0_0 = arith.constant 0 : index
    %c0_1 = arith.constant 0 : index
    %0 = vector.load %arg1[%c0, %c0_0, %c0_1] : memref<2x16x512xf32, #tpu.memory_space<vmem>>, vector<2x16x512xf32>
    %c0_2 = arith.constant 0 : index
    %c0_3 = arith.constant 0 : index
    %c0_4 = arith.constant 0 : index
    %1 = vector.load %arg5[%c0_2, %c0_3, %c0_4] : memref<2x16x512xf32, #tpu.memory_space<vmem>>, vector<2x16x512xf32>
    tpu.vector_store %arg5[%c0_2, %c0_3, %c0_4], %0 {strides = array<i32>} : memref<2x16x512xf32, #tpu.memory_space<vmem>>, vector<2x16x512xf32>,
    %cst = arith.constant 0.000000e+00 : bf16
    %2 = vector.broadcast %cst : bf16 to vector<2x1x768xbf16>
    %c0_5 = arith.constant 0 : index
    %c7 = arith.constant 7 : index
    %c0_6 = arith.constant 0 : index
    %3 = vector.load %arg6[%c0_5, %c7, %c0_6] : memref<2x25x768xbf16, #tpu.memory_space<vmem>>, vector<2x1x768xbf16>
    tpu.vector_store %arg6[%c0_5, %c7, %c0_6], %2 {strides = array<i32>} : memref<2x25x768xbf16, #tpu.memory_space<vmem>>, vector<2x1x768xbf16>,
    %cst_7 = arith.constant 0.000000e+00 : bf16
    %4 = vector.broadcast %cst_7 : bf16 to vector<2x1x768xbf16>
    %c0_8 = arith.constant 0 : index
    %c24 = arith.constant 24 : index
    %c0_9 = arith.constant 0 : index
    %5 = vector.load %arg6[%c0_8, %c24, %c0_9] : memref<2x25x768xbf16, #tpu.memory_space<vmem>>, vector<2x1x768xbf16>
    tpu.vector_store %arg6[%c0_8, %c24, %c0_9], %4 {strides = array<i32>} : memref<2x25x768xbf16, #tpu.memory_space<vmem>>, vector<2x1x768xbf16>,
    %cst_10 = arith.constant 0.000000e+00 : bf16
    %6 = vector.broadcast %cst_10 : bf16 to vector<2x16x128xbf16>
    %c0_11 = arith.constant 0 : index
    %c8 = arith.constant 8 : index
    %c0_12 = arith.constant 0 : index
    %7 = vector.load %arg6[%c0_11, %c8, %c0_12] : memref<2x25x768xbf16, #tpu.memory_space<vmem>>, vector<2x16x128xbf16>
    tpu.vector_store %arg6[%c0_11, %c8, %c0_12], %6 {strides = array<i32>} : memref<2x25x768xbf16, #tpu.memory_space<vmem>>, vector<2x16x128xbf16>,
    %cst_13 = arith.constant 0.000000e+00 : bf16
    %8 = vector.broadcast %cst_13 : bf16 to vector<2x16x128xbf16>
    %c0_14 = arith.constant 0 : index
    %c8_15 = arith.constant 8 : index
    %c640 = arith.constant 640 : index
    %9 = vector.load %arg6[%c0_14, %c8_15, %c640] : memref<2x25x768xbf16, #tpu.memory_space<vmem>>, vector<2x16x128xbf16>
    tpu.vector_store %arg6[%c0_14, %c8_15, %c640], %8 {strides = array<i32>} : memref<2x25x768xbf16, #tpu.memory_space<vmem>>, vector<2x16x128xbf16>,
    %c0_16 = arith.constant 0 : index
    %c0_17 = arith.constant 0 : index
    %c0_18 = arith.constant 0 : index
    %10 = vector.load %arg5[%c0_16, %c0_17, %c0_18] : memref<2x16x512xf32, #tpu.memory_space<vmem>>, vector<2x16x512xf32>
    %cst_19 = arith.constant 0.000000e+00 : f32
    %11 = vector.broadcast %cst_19 : f32 to vector<2x16x512xf32>
    %12 = arith.maximumf %10, %11 : vector<2x16x512xf32>
    %13 = arith.truncf %12 : vector<2x16x512xf32> to vector<2x16x512xbf16>
    %c0_20 = arith.constant 0 : index
    %c8_21 = arith.constant 8 : index
    %c128 = arith.constant 128 : index
    %14 = vector.load %arg6[%c0_20, %c8_21, %c128] : memref<2x25x768xbf16, #tpu.memory_space<vmem>>, vector<2x16x512xbf16>
    tpu.vector_store %arg6[%c0_20, %c8_21, %c128], %13 {strides = array<i32>} : memref<2x25x768xbf16, #tpu.memory_space<vmem>>, vector<2x16x512xbf16>,
    %cst_22 = arith.constant 0.000000e+00 : f32
    %15 = vector.broadcast %cst_22 : f32 to vector<32x256xf32>
    %c0_23 = arith.constant 0 : index
    %c7_24 = arith.constant 7 : index
    %c0_25 = arith.constant 0 : index
    %16 = vector.load %arg6[%c0_23, %c7_24, %c0_25] : memref<2x25x768xbf16, #tpu.memory_space<vmem>>, vector<2x16x768xbf16>
    %17 = vector.shape_cast %16 : vector<2x16x768xbf16> to vector<32x768xbf16>
    %c0_26 = arith.constant 0 : index
    %c0_27 = arith.constant 0 : index
    %c0_28 = arith.constant 0 : index
    %c0_29 = arith.constant 0 : index
    %18 = vector.load %arg2[%c0_26, %c0_27, %c0_28, %c0_29] : memref<2x3x768x256xbf16, #tpu.memory_space<vmem>>, vector<1x1x768x256xbf16>
    %19 = vector.shape_cast %18 : vector<1x1x768x256xbf16> to vector<768x256xbf16>
    %cst_30 = arith.constant dense<0.000000e+00> : vector<32x256xf32>
    %20 = tpu.matmul %17, %19, %cst_30 {dimension_numbers = #tpu.dot_dimension_numbers<[1], [0], [0], [1], [0, 0, 1, 1], [], []>} : vector<32x768xbf16>, vector<768x256xbf16>, vector<32x256xf32> -> vector<32x256xf32>
    %21 = arith.addf %15, %20 : vector<32x256xf32>
    %c0_31 = arith.constant 0 : index
    %c8_32 = arith.constant 8 : index
    %c0_33 = arith.constant 0 : index
    %22 = vector.load %arg6[%c0_31, %c8_32, %c0_33] : memref<2x25x768xbf16, #tpu.memory_space<vmem>>, vector<2x16x768xbf16>
    %23 = vector.shape_cast %22 : vector<2x16x768xbf16> to vector<32x768xbf16>
    %c0_34 = arith.constant 0 : index
    %c1 = arith.constant 1 : index
    %c0_35 = arith.constant 0 : index
    %c0_36 = arith.constant 0 : index
    %24 = vector.load %arg2[%c0_34, %c1, %c0_35, %c0_36] : memref<2x3x768x256xbf16, #tpu.memory_space<vmem>>, vector<1x1x768x256xbf16>
    %25 = vector.shape_cast %24 : vector<1x1x768x256xbf16> to vector<768x256xbf16>
    %cst_37 = arith.constant dense<0.000000e+00> : vector<32x256xf32>
    %26 = tpu.matmul %23, %25, %cst_37 {dimension_numbers = #tpu.dot_dimension_numbers<[1], [0], [0], [1], [0, 0, 1, 1], [], []>} : vector<32x768xbf16>, vector<768x256xbf16>, vector<32x256xf32> -> vector<32x256xf32>
    %27 = arith.addf %21, %26 : vector<32x256xf32>
    %c0_38 = arith.constant 0 : index
    %c9 = arith.constant 9 : index
    %c0_39 = arith.constant 0 : index
    %28 = vector.load %arg6[%c0_38, %c9, %c0_39] : memref<2x25x768xbf16, #tpu.memory_space<vmem>>, vector<2x16x768xbf16>
    %29 = vector.shape_cast %28 : vector<2x16x768xbf16> to vector<32x768xbf16>
    %c0_40 = arith.constant 0 : index
    %c2 = arith.constant 2 : index
    %c0_41 = arith.constant 0 : index
    %c0_42 = arith.constant 0 : index
    %30 = vector.load %arg2[%c0_40, %c2, %c0_41, %c0_42] : memref<2x3x768x256xbf16, #tpu.memory_space<vmem>>, vector<1x1x768x256xbf16>
    %31 = vector.shape_cast %30 : vector<1x1x768x256xbf16> to vector<768x256xbf16>
    %cst_43 = arith.constant dense<0.000000e+00> : vector<32x256xf32>
    %32 = tpu.matmul %29, %31, %cst_43 {dimension_numbers = #tpu.dot_dimension_numbers<[1], [0], [0], [1], [0, 0, 1, 1], [], []>} : vector<32x768xbf16>, vector<768x256xbf16>, vector<32x256xf32> -> vector<32x256xf32>
    %33 = arith.addf %27, %32 : vector<32x256xf32>
    %cst_44 = arith.constant 0.000000e+00 : f32
    %34 = vector.broadcast %cst_44 : f32 to vector<32x256xf32>
    %35 = arith.maximumf %33, %34 : vector<32x256xf32>
    %36 = arith.truncf %35 : vector<32x256xf32> to vector<32x256xbf16>
    %c0_45 = arith.constant 0 : index
    %c0_46 = arith.constant 0 : index
    %c0_47 = arith.constant 0 : index
    %37 = vector.load %arg3[%c0_45, %c0_46, %c0_47] : memref<2x256x512xbf16, #tpu.memory_space<vmem>>, vector<1x256x512xbf16>
    %38 = vector.shape_cast %37 : vector<1x256x512xbf16> to vector<256x512xbf16>
    %cst_48 = arith.constant dense<0.000000e+00> : vector<32x512xf32>
    %39 = tpu.matmul %36, %38, %cst_48 {dimension_numbers = #tpu.dot_dimension_numbers<[1], [0], [0], [1], [0, 0, 1, 1], [], []>} : vector<32x256xbf16>, vector<256x512xbf16>, vector<32x512xf32> -> vector<32x512xf32>
    %c0_49 = arith.constant 0 : index
    %c0_50 = arith.constant 0 : index
    %c0_51 = arith.constant 0 : index
    %40 = vector.load %arg5[%c0_49, %c0_50, %c0_51] : memref<2x16x512xf32, #tpu.memory_space<vmem>>, vector<2x16x512xf32>
    %41 = vector.shape_cast %39 : vector<32x512xf32> to vector<2x16x512xf32>
    %42 = arith.addf %40, %41 : vector<2x16x512xf32>
    %c0_52 = arith.constant 0 : index
    %c0_53 = arith.constant 0 : index
    %c0_54 = arith.constant 0 : index
    %43 = vector.load %arg5[%c0_52, %c0_53, %c0_54] : memref<2x16x512xf32, #tpu.memory_space<vmem>>, vector<2x16x512xf32>
    tpu.vector_store %arg5[%c0_52, %c0_53, %c0_54], %42 {strides = array<i32>} : memref<2x16x512xf32, #tpu.memory_space<vmem>>, vector<2x16x512xf32>,
    %c0_55 = arith.constant 0 : index
    %c0_56 = arith.constant 0 : index
    %c0_57 = arith.constant 0 : index
    %44 = vector.load %arg5[%c0_55, %c0_56, %c0_57] : memref<2x16x512xf32, #tpu.memory_space<vmem>>, vector<2x16x512xf32>
    %cst_58 = arith.constant 0.000000e+00 : f32
    %45 = vector.broadcast %cst_58 : f32 to vector<2x16x512xf32>
    %46 = arith.maximumf %44, %45 : vector<2x16x512xf32>
    %47 = arith.truncf %46 : vector<2x16x512xf32> to vector<2x16x512xbf16>
    %c0_59 = arith.constant 0 : index
    %c8_60 = arith.constant 8 : index
    %c128_61 = arith.constant 128 : index
    %48 = vector.load %arg6[%c0_59, %c8_60, %c128_61] : memref<2x25x768xbf16, #tpu.memory_space<vmem>>, vector<2x16x512xbf16>
    tpu.vector_store %arg6[%c0_59, %c8_60, %c128_61], %47 {strides = array<i32>} : memref<2x25x768xbf16, #tpu.memory_space<vmem>>, vector<2x16x512xbf16>,
    %cst_62 = arith.constant 0.000000e+00 : f32
    %49 = vector.broadcast %cst_62 : f32 to vector<32x256xf32>
    %c0_63 = arith.constant 0 : index
    %c7_64 = arith.constant 7 : index
    %c0_65 = arith.constant 0 : index
    %50 = vector.load %arg6[%c0_63, %c7_64, %c0_65] : memref<2x25x768xbf16, #tpu.memory_space<vmem>>, vector<2x16x768xbf16>
    %51 = vector.shape_cast %50 : vector<2x16x768xbf16> to vector<32x768xbf16>
    %c1_66 = arith.constant 1 : index
    %c0_67 = arith.constant 0 : index
    %c0_68 = arith.constant 0 : index
    %c0_69 = arith.constant 0 : index
    %52 = vector.load %arg2[%c1_66, %c0_67, %c0_68, %c0_69] : memref<2x3x768x256xbf16, #tpu.memory_space<vmem>>, vector<1x1x768x256xbf16>
    %53 = vector.shape_cast %52 : vector<1x1x768x256xbf16> to vector<768x256xbf16>
    %cst_70 = arith.constant dense<0.000000e+00> : vector<32x256xf32>
    %54 = tpu.matmul %51, %53, %cst_70 {dimension_numbers = #tpu.dot_dimension_numbers<[1], [0], [0], [1], [0, 0, 1, 1], [], []>} : vector<32x768xbf16>, vector<768x256xbf16>, vector<32x256xf32> -> vector<32x256xf32>
    %55 = arith.addf %49, %54 : vector<32x256xf32>
    %c0_71 = arith.constant 0 : index
    %c8_72 = arith.constant 8 : index
    %c0_73 = arith.constant 0 : index
    %56 = vector.load %arg6[%c0_71, %c8_72, %c0_73] : memref<2x25x768xbf16, #tpu.memory_space<vmem>>, vector<2x16x768xbf16>
    %57 = vector.shape_cast %56 : vector<2x16x768xbf16> to vector<32x768xbf16>
    %c1_74 = arith.constant 1 : index
    %c1_75 = arith.constant 1 : index
    %c0_76 = arith.constant 0 : index
    %c0_77 = arith.constant 0 : index
    %58 = vector.load %arg2[%c1_74, %c1_75, %c0_76, %c0_77] : memref<2x3x768x256xbf16, #tpu.memory_space<vmem>>, vector<1x1x768x256xbf16>
    %59 = vector.shape_cast %58 : vector<1x1x768x256xbf16> to vector<768x256xbf16>
    %cst_78 = arith.constant dense<0.000000e+00> : vector<32x256xf32>
    %60 = tpu.matmul %57, %59, %cst_78 {dimension_numbers = #tpu.dot_dimension_numbers<[1], [0], [0], [1], [0, 0, 1, 1], [], []>} : vector<32x768xbf16>, vector<768x256xbf16>, vector<32x256xf32> -> vector<32x256xf32>
    %61 = arith.addf %55, %60 : vector<32x256xf32>
    %c0_79 = arith.constant 0 : index
    %c9_80 = arith.constant 9 : index
    %c0_81 = arith.constant 0 : index
    %62 = vector.load %arg6[%c0_79, %c9_80, %c0_81] : memref<2x25x768xbf16, #tpu.memory_space<vmem>>, vector<2x16x768xbf16>
    %63 = vector.shape_cast %62 : vector<2x16x768xbf16> to vector<32x768xbf16>
    %c1_82 = arith.constant 1 : index
    %c2_83 = arith.constant 2 : index
    %c0_84 = arith.constant 0 : index
    %c0_85 = arith.constant 0 : index
    %64 = vector.load %arg2[%c1_82, %c2_83, %c0_84, %c0_85] : memref<2x3x768x256xbf16, #tpu.memory_space<vmem>>, vector<1x1x768x256xbf16>
    %65 = vector.shape_cast %64 : vector<1x1x768x256xbf16> to vector<768x256xbf16>
    %cst_86 = arith.constant dense<0.000000e+00> : vector<32x256xf32>
    %66 = tpu.matmul %63, %65, %cst_86 {dimension_numbers = #tpu.dot_dimension_numbers<[1], [0], [0], [1], [0, 0, 1, 1], [], []>} : vector<32x768xbf16>, vector<768x256xbf16>, vector<32x256xf32> -> vector<32x256xf32>
    %67 = arith.addf %61, %66 : vector<32x256xf32>
    %cst_87 = arith.constant 0.000000e+00 : f32
    %68 = vector.broadcast %cst_87 : f32 to vector<32x256xf32>
    %69 = arith.maximumf %67, %68 : vector<32x256xf32>
    %70 = arith.truncf %69 : vector<32x256xf32> to vector<32x256xbf16>
    %c1_88 = arith.constant 1 : index
    %c0_89 = arith.constant 0 : index
    %c0_90 = arith.constant 0 : index
    %71 = vector.load %arg3[%c1_88, %c0_89, %c0_90] : memref<2x256x512xbf16, #tpu.memory_space<vmem>>, vector<1x256x512xbf16>
    %72 = vector.shape_cast %71 : vector<1x256x512xbf16> to vector<256x512xbf16>
    %cst_91 = arith.constant dense<0.000000e+00> : vector<32x512xf32>
    %73 = tpu.matmul %70, %72, %cst_91 {dimension_numbers = #tpu.dot_dimension_numbers<[1], [0], [0], [1], [0, 0, 1, 1], [], []>} : vector<32x256xbf16>, vector<256x512xbf16>, vector<32x512xf32> -> vector<32x512xf32>
    %c0_92 = arith.constant 0 : index
    %c0_93 = arith.constant 0 : index
    %c0_94 = arith.constant 0 : index
    %74 = vector.load %arg5[%c0_92, %c0_93, %c0_94] : memref<2x16x512xf32, #tpu.memory_space<vmem>>, vector<2x16x512xf32>
    %75 = vector.shape_cast %73 : vector<32x512xf32> to vector<2x16x512xf32>
    %76 = arith.addf %74, %75 : vector<2x16x512xf32>
    %c0_95 = arith.constant 0 : index
    %c0_96 = arith.constant 0 : index
    %c0_97 = arith.constant 0 : index
    %77 = vector.load %arg5[%c0_95, %c0_96, %c0_97] : memref<2x16x512xf32, #tpu.memory_space<vmem>>, vector<2x16x512xf32>
    tpu.vector_store %arg5[%c0_95, %c0_96, %c0_97], %76 {strides = array<i32>} : memref<2x16x512xf32, #tpu.memory_space<vmem>>, vector<2x16x512xf32>,
    %c0_98 = arith.constant 0 : index
    %c0_99 = arith.constant 0 : index
    %c0_100 = arith.constant 0 : index
    %78 = vector.load %arg5[%c0_98, %c0_99, %c0_100] : memref<2x16x512xf32, #tpu.memory_space<vmem>>, vector<2x16x512xf32>
    %cst_101 = arith.constant 0.000000e+00 : f32
    %79 = vector.broadcast %cst_101 : f32 to vector<2x16x512xf32>
    %80 = arith.maximumf %78, %79 : vector<2x16x512xf32>
    %c0_102 = arith.constant 0 : index
    %c0_103 = arith.constant 0 : index
    %c0_104 = arith.constant 0 : index
    %81 = vector.load %arg4[%c0_102, %c0_103, %c0_104] : memref<2x16x512xf32, #tpu.memory_space<vmem>>, vector<2x16x512xf32>
    tpu.vector_store %arg4[%c0_102, %c0_103, %c0_104], %80 {strides = array<i32>} : memref<2x16x512xf32, #tpu.memory_space<vmem>>, vector<2x16x512xf32>,
    return
  }
  func.func @transform_0(%arg0: i32) -> (i32, i32, i32) {
    %c0_i32 = arith.constant 0 : i32
    %c0_i32_0 = arith.constant 0 : i32
    %c0_i32_1 = arith.constant 0 : i32
    return %arg0, %c0_i32, %c0_i32_0 : i32, i32, i32
  }
  func.func @transform_1(%arg0: i32) -> (i32, i32, i32, i32) {
    %c0_i32 = arith.constant 0 : i32
    %c0_i32_0 = arith.constant 0 : i32
    %c0_i32_1 = arith.constant 0 : i32
    %c0_i32_2 = arith.constant 0 : i32
    %c0_i32_3 = arith.constant 0 : i32
    return %c0_i32, %c0_i32_0, %c0_i32_1, %c0_i32_2 : i32, i32, i32, i32
  }
  func.func @transform_2(%arg0: i32) -> (i32, i32, i32) {
    %c0_i32 = arith.constant 0 : i32
    %c0_i32_0 = arith.constant 0 : i32
    %c0_i32_1 = arith.constant 0 : i32
    %c0_i32_2 = arith.constant 0 : i32
    return %c0_i32, %c0_i32_0, %c0_i32_1 : i32, i32, i32
  }
  func.func @transform_3(%arg0: i32) -> (i32, i32, i32) {
    %c0_i32 = arith.constant 0 : i32
    %c0_i32_0 = arith.constant 0 : i32
    %c0_i32_1 = arith.constant 0 : i32
    return %arg0, %c0_i32, %c0_i32_0 : i32, i32, i32
  }
}

</mosaic_0001>

<llo_original>
// kernel: residual_stack_forward_nchw.1
$region0: #{residual_stack_forward_nchw.1}
  #allocation0 [shape = 'u32[]', space=smem, size = 0x4, offset = 0x4, fixed_abs, tag = 'smem constant byte address 0x4 - core index']
  #allocation1 [shape = 'u32[144,128]{1,0:T(1,128)}', space=vmem, size = 0x12000, scoped, tag = 'internal scratch']
  #allocation2 [shape = 'f32[2,16,512]{2,1,0:T(8,128)}', space=vmem, size = 0x10000, scoped, tag = 'scratch operand']
  #allocation3 [shape = 'bf16[2,25,768]{2,1,0:T(8,128)(2,1)}', space=vmem, size = 0x18000, scoped, tag = 'scratch operand']
  %s0 = inlined_call_operand.vmem [shape: f32[4,16,512], index: 0, kind: input, shape index: {}]
  %s1 = inlined_call_operand.vmem [shape: bf16[2,3,768,256], index: 1, kind: input, shape index: {}]
  %s2 = inlined_call_operand.vmem [shape: bf16[2,256,512], index: 2, kind: input, shape index: {}]
  %s3 = inlined_call_operand.vmem [shape: f32[4,16,512], index: 3, kind: output, shape index: {}]
  %s4 = sld [smem:[#allocation0]]
  $region45: #{residual_stack_forward_nchw.1} parent=0
    _
  %s6 = ssub.s32 1, %s4
  %s7 = scalar_select 0, %s6, %s4
  loop: start=0, step=1, limit=4
  $region2: #{residual_stack_forward_nchw.1} parent=0 // loop_pre_header
    _
  $region3: #{residual_stack_forward_nchw.1} parent=0 // loop_header
    %s9 = sphi 0, %s13
    %p10 = scmp.ge.s32.totalorder %s9, 4
    %s19 = sphi 0, %s21
    %s22 = sphi 0, %s19
    %s23 = sphi 0, %s22
    %s39 = sphi 0, %s23
    %s43 = sphi 0, %s43
    %s45 = sphi 0, %s43
    %s46 = sphi 0, %s45
    %s60 = sphi 0, %s46
    %s64 = sphi 0, %s64
    %s66 = sphi 0, %s64
    %s67 = sphi 0, %s66
    %s81 = sphi 0, %s67
    %s87 = sphi 0, %s89
    %s90 = sphi 0, %s87
    %s91 = sphi 0, %s90
    %s107 = sphi 0, %s91
  $region4: #{residual_stack_forward_nchw.1} parent=0 // loop_header_branch
    %12 = sbr.rel (%p10) target = $region8
  $region5: #{residual_stack_forward_nchw.1} parent=0 // loop_body
    %s14 = ssub.s32 %s9, 1
    %s15 = ssub.s32 %s9, 2
    %s16 = sadd.s32 %s9, 1
    %s17 = ssub.s32 %s9, %s16
    %p18 = scmp.eq.s32.totalorder %s17, 0
    %s20 = sadd.s32 %s19, 1
    %s21 = scalar_select %p18, %s19, %s20
    %p24 = pneg %p18
    %p25 = scmp.eq.s32.totalorder %s9, 1
    %p26 = por %p24, %p25
    %p27 = scmp.ne.s32.totalorder %s19, %s22
    %p28 = scmp.eq.s32.totalorder %s9, 0
    %p29 = por %p27, %p28
    %p30 = scmp.ne.s32.totalorder %s19, %s22
    %p31 = scmp.eq.s32.totalorder %s14, 1
    %p32 = por %p30, %p31
    %p33 = scmp.ne.s32.totalorder %s22, %s23
    %p34 = scmp.eq.s32.totalorder %s14, 0
    %p35 = por %p33, %p34
    %p36 = scmp.ne.s32.totalorder %s22, %s23
    %p37 = scmp.eq.s32.totalorder %s15, 1
    %p38 = por %p36, %p37
    %p40 = scmp.ne.s32.totalorder %s23, %s39
    %p41 = scmp.eq.s32.totalorder %s15, 0
    %p42 = por %p40, %p41
    %s44 = sadd.s32 %s43, 1
    %p47 = scmp.eq.s32.totalorder %s9, 1
    %p48 = scmp.ne.s32.totalorder %s43, %s45
    %p49 = scmp.eq.s32.totalorder %s9, 0
    %p50 = por %p48, %p49
    %p51 = scmp.ne.s32.totalorder %s43, %s45
    %p52 = scmp.eq.s32.totalorder %s14, 1
    %p53 = por %p51, %p52
    %p54 = scmp.ne.s32.totalorder %s45, %s46
    %p55 = scmp.eq.s32.totalorder %s14, 0
    %p56 = por %p54, %p55
    %p57 = scmp.ne.s32.totalorder %s45, %s46
    %p58 = scmp.eq.s32.totalorder %s15, 1
    %p59 = por %p57, %p58
    %p61 = scmp.ne.s32.totalorder %s46, %s60
    %p62 = scmp.eq.s32.totalorder %s15, 0
    %p63 = por %p61, %p62
    %s65 = sadd.s32 %s64, 1
    %p68 = scmp.eq.s32.totalorder %s9, 1
    %p69 = scmp.ne.s32.totalorder %s64, %s66
    %p70 = scmp.eq.s32.totalorder %s9, 0
    %p71 = por %p69, %p70
    %p72 = scmp.ne.s32.totalorder %s64, %s66
    %p73 = scmp.eq.s32.totalorder %s14, 1
    %p74 = por %p72, %p73
    %p75 = scmp.ne.s32.totalorder %s66, %s67
    %p76 = scmp.eq.s32.totalorder %s14, 0
    %p77 = por %p75, %p76
    %p78 = scmp.ne.s32.totalorder %s66, %s67
    %p79 = scmp.eq.s32.totalorder %s15, 1
    %p80 = por %p78, %p79
    %p82 = scmp.ne.s32.totalorder %s67, %s81
    %p83 = scmp.eq.s32.totalorder %s15, 0
    %p84 = por %p82, %p83
    %s85 = ssub.s32 %s9, %s16
    %p86 = scmp.eq.s32.totalorder %s85, 0
    %s88 = sadd.s32 %s87, 1
    %s89 = scalar_select %p86, %s87, %s88
    %p92 = pneg %p86
    %p93 = scmp.eq.s32.totalorder %s9, 1
    %p94 = por %p92, %p93
    %p95 = scmp.ne.s32.totalorder %s87, %s90
    %p96 = scmp.eq.s32.totalorder %s9, 0
    %p97 = por %p95, %p96
    %p98 = scmp.ne.s32.totalorder %s87, %s90
    %p99 = scmp.eq.s32.totalorder %s14, 1
    %p100 = por %p98, %p99
    %p101 = scmp.ne.s32.totalorder %s90, %s91
    %p102 = scmp.eq.s32.totalorder %s14, 0
    %p103 = por %p101, %p102
    %p104 = scmp.ne.s32.totalorder %s90, %s91
    %p105 = scmp.eq.s32.totalorder %s15, 1
    %p106 = por %p104, %p105
    %p108 = scmp.ne.s32.totalorder %s91, %s107
    %p109 = scmp.eq.s32.totalorder %s15, 0
    %p110 = por %p108, %p109
    %p111 = scmp.le.s32.totalorder 1, %s9
    %p112 = scmp.lt.s32.totalorder %s9, 3
    %p113 = pnand %p111, %p112
    %p114 = pneg %p113
    // Predicated region
    $region9: #{residual_stack_forward_nchw.1} parent=5 // pred_check
      _
    $region10: #{residual_stack_forward_nchw.1} parent=5 // pred_check_branch
      %116 = sbr.rel (%p113) target = $region12
    $region11: #{residual_stack_forward_nchw.1} parent=5 // pred_region
      %s117 = ssub.s32 %s9, 1
      // Predicated region
      $region13: #{residual_stack_forward_nchw.1} parent=11 // pred_check
        %p118 = pneg %p56
      $region14: #{residual_stack_forward_nchw.1} parent=11 // pred_check_branch
        %120 = sbr.rel (%p118) target = $region16
      $region15: #{residual_stack_forward_nchw.1} parent=11 // pred_region
        _
      $region16: #{residual_stack_forward_nchw.1} parent=11 // pred_fallthru
        _
      // Predicated region
      $region17: #{residual_stack_forward_nchw.1} parent=11 // pred_check
        %p121 = pneg %p77
      $region18: #{residual_stack_forward_nchw.1} parent=11 // pred_check_branch
        %123 = sbr.rel (%p121) target = $region20
      $region19: #{residual_stack_forward_nchw.1} parent=11 // pred_region
        _
      $region20: #{residual_stack_forward_nchw.1} parent=11 // pred_fallthru
        _
    $region12: #{residual_stack_forward_nchw.1} parent=5 // pred_fallthru
      _
    %p124 = scmp.lt.s32.totalorder %s9, 2
    // Predicated region
    $region21: #{residual_stack_forward_nchw.1} parent=5 // pred_check
      %p125 = pneg %p124
    $region22: #{residual_stack_forward_nchw.1} parent=5 // pred_check_branch
      %127 = sbr.rel (%p125) target = $region24
    $region23: #{residual_stack_forward_nchw.1} parent=5 // pred_region
      // Predicated region
      $region25: #{residual_stack_forward_nchw.1} parent=23 // pred_check
        %p128 = pneg %p29
      $region26: #{residual_stack_forward_nchw.1} parent=23 // pred_check_branch
        %130 = sbr.rel (%p128) target = $region28
      $region27: #{residual_stack_forward_nchw.1} parent=23 // pred_region
        %s131 = smul.u32 2, %s9
        %p132 = scmp.lt.s32.totalorder %s131, 3
        %s133 = scalar_select %p132, %s131, 3
        %s134 = smul.addr %s133, 8
        %s135 = smul.addr %s134, 8
        %s136 = scalar_lea.vmem %s0, %s135
        %s137 = smul.u32 2, %s9
      $region28: #{residual_stack_forward_nchw.1} parent=23 // pred_fallthru
        _
    $region24: #{residual_stack_forward_nchw.1} parent=5 // pred_fallthru
      _
    %p138 = scmp.le.s32.totalorder 1, %s9
    %p139 = scmp.lt.s32.totalorder %s9, 3
    %p140 = pnand %p138, %p139
    %p141 = pneg %p140
    // Predicated region
    $region29: #{residual_stack_forward_nchw.1} parent=5 // pred_check
      _
    $region30: #{residual_stack_forward_nchw.1} parent=5 // pred_check_branch
      %143 = sbr.rel (%p140) target = $region32
    $region31: #{residual_stack_forward_nchw.1} parent=5 // pred_region
      %s144 = ssub.s32 %s9, 1
      %s145 = smul.u32 2, %s14
      %p146 = scmp.lt.s32.totalorder %s145, 3
      %s147 = scalar_select %p146, %s145, 3
      %s148 = smul.addr %s147, 8
      %s149 = smul.addr %s148, 8
      %s150 = scalar_lea.vmem %s0, %s149
      %p151 = pneg %p35
      %p152 = pneg %p32
      %p153 = pneg %p56
      %p154 = pneg %p53
      %p155 = pneg %p77
      %p156 = pneg %p74
      %p157 = pneg %p103
      %p158 = pneg %p100
      %s159 = smul.u32 2, %s14
      %p160 = scmp.lt.s32.totalorder %s159, 3
      %s161 = scalar_select %p160, %s159, 3
      %s162 = smul.addr %s161, 8
      %s163 = smul.addr %s162, 8
      %s164 = scalar_lea.vmem %s3, %s163
      %s165 = smul.u32 2, %s14
      %p166 = scmp.lt.s32.totalorder %s165, 3
      %s167 = scalar_select %p166, %s165, 3
      %s168 = smul.addr %s167, 8
      %s169 = smul.addr %s168, 8
      %s170 = scalar_lea.vmem %s0, %s169
      %s171 = smul.u32 2, %s14
      %s172 = smul.u32 2, %s14
      %p173 = scmp.lt.s32.totalorder %s172, 3
      %s174 = scalar_select %p173, %s172, 3
      %s175 = smul.addr %s174, 8
      %s176 = smul.addr %s175, 8
      %s177 = scalar_lea.vmem %s3, %s176
      %s178 = smul.u32 2, %s14
      %v180 = vld [vmem:[%s170] sm:$0xff]
      %v181 = vld [vmem:[%s170 + $0x8] sm:$0xff]
      %v182 = vld [vmem:[%s170 + $0x10] sm:$0xff]
      %v183 = vld [vmem:[%s170 + $0x18] sm:$0xff]
      %v184 = vld [vmem:[%s170 + $0x20] sm:$0xff]
      %v185 = vld [vmem:[%s170 + $0x28] sm:$0xff]
      %v186 = vld [vmem:[%s170 + $0x30] sm:$0xff]
      %v187 = vld [vmem:[%s170 + $0x38] sm:$0xff]
      %v188 = vld [vmem:[%s170 + $0x40] sm:$0xff]
      %v189 = vld [vmem:[%s170 + $0x48] sm:$0xff]
      %v190 = vld [vmem:[%s170 + $0x50] sm:$0xff]
      %v191 = vld [vmem:[%s170 + $0x58] sm:$0xff]
      %v192 = vld [vmem:[%s170 + $0x60] sm:$0xff]
      %v193 = vld [vmem:[%s170 + $0x68] sm:$0xff]
      %v194 = vld [vmem:[%s170 + $0x70] sm:$0xff]
      %v195 = vld [vmem:[%s170 + $0x78] sm:$0xff]
      %196 = vst [vmem:[#allocation2] sm:$0xff] %v180
      %197 = vst [vmem:[#allocation2 + $0x8] sm:$0xff] %v181
      %198 = vst [vmem:[#allocation2 + $0x10] sm:$0xff] %v182
      %199 = vst [vmem:[#allocation2 + $0x18] sm:$0xff] %v183
      %200 = vst [vmem:[#allocation2 + $0x20] sm:$0xff] %v184
      %201 = vst [vmem:[#allocation2 + $0x28] sm:$0xff] %v185
      %202 = vst [vmem:[#allocation2 + $0x30] sm:$0xff] %v186
      %203 = vst [vmem:[#allocation2 + $0x38] sm:$0xff] %v187
      %204 = vst [vmem:[#allocation2 + $0x40] sm:$0xff] %v188
      %205 = vst [vmem:[#allocation2 + $0x48] sm:$0xff] %v189
      %206 = vst [vmem:[#allocation2 + $0x50] sm:$0xff] %v190
      %207 = vst [vmem:[#allocation2 + $0x58] sm:$0xff] %v191
      %208 = vst [vmem:[#allocation2 + $0x60] sm:$0xff] %v192
      %209 = vst [vmem:[#allocation2 + $0x68] sm:$0xff] %v193
      %210 = vst [vmem:[#allocation2 + $0x70] sm:$0xff] %v194
      %211 = vst [vmem:[#allocation2 + $0x78] sm:$0xff] %v195
      %vm212 = vcmask 1043459
      %vm213 = vsmask.f32 7950
      %vm214 = vmand %vm212, %vm213
      %vm215 = vcmask 1047559
      %vm216 = vsmask.f32 7966
      %vm217 = vmand %vm215, %vm216
      %vm218 = vmor %vm217, %vm214
      %v219 = vld [vmem:[#allocation3] sm:$0x88]
      %v220 = vsel %vm218, 0, %v219
      %221 = vst [vmem:[#allocation3] sm:$0x88] %v220
      %v222 = vld [vmem:[#allocation3 + $0x8] sm:$0x88]
      %v223 = vsel %vm218, 0, %v222
      %224 = vst [vmem:[#allocation3 + $0x8] sm:$0x88] %v223
      %v225 = vld [vmem:[#allocation3 + $0x10] sm:$0x88]
      %v226 = vsel %vm218, 0, %v225
      %227 = vst [vmem:[#allocation3 + $0x10] sm:$0x88] %v226
      %v228 = vld [vmem:[#allocation3 + $0x60] sm:$0x88]
      %v229 = vsel %vm218, 0, %v228
      %230 = vst [vmem:[#allocation3 + $0x60] sm:$0x88] %v229
      %v231 = vld [vmem:[#allocation3 + $0x68] sm:$0x88]
      %v232 = vsel %vm218, 0, %v231
      %233 = vst [vmem:[#allocation3 + $0x68] sm:$0x88] %v232
      %v234 = vld [vmem:[#allocation3 + $0x70] sm:$0x88]
      %v235 = vsel %vm218, 0, %v234
      %236 = vst [vmem:[#allocation3 + $0x70] sm:$0x88] %v235
      %vm237 = vcmask 1040384
      %vm238 = vsmask.f32 256
      %vm239 = vmand %vm237, %vm238
      %vm240 = vcmask 1044484
      %vm241 = vsmask.f32 4352
      %vm242 = vmand %vm240, %vm241
      %vm243 = vmor %vm242, %vm239
      %v244 = vld [vmem:[#allocation3 + $0x48] sm:$0x11]
      %v245 = vsel %vm243, 0, %v244
      %246 = vst [vmem:[#allocation3 + $0x48] sm:$0x11] %v245
      %v247 = vld [vmem:[#allocation3 + $0x50] sm:$0x11]
      %v248 = vsel %vm243, 0, %v247
      %249 = vst [vmem:[#allocation3 + $0x50] sm:$0x11] %v248
      %v250 = vld [vmem:[#allocation3 + $0x58] sm:$0x11]
      %v251 = vsel %vm243, 0, %v250
      %252 = vst [vmem:[#allocation3 + $0x58] sm:$0x11] %v251
      %v253 = vld [vmem:[#allocation3 + $0xa8] sm:$0x11]
      %v254 = vsel %vm243, 0, %v253
      %255 = vst [vmem:[#allocation3 + $0xa8] sm:$0x11] %v254
      %v256 = vld [vmem:[#allocation3 + $0xb0] sm:$0x11]
      %v257 = vsel %vm243, 0, %v256
      %258 = vst [vmem:[#allocation3 + $0xb0] sm:$0x11] %v257
      %v259 = vld [vmem:[#allocation3 + $0xb8] sm:$0x11]
      %v260 = vsel %vm243, 0, %v259
      %261 = vst [vmem:[#allocation3 + $0xb8] sm:$0x11] %v260
      %262 = vst [vmem:[#allocation3 + $0x18] sm:$0xf] 0
      %263 = vst [vmem:[#allocation3 + $0x30] sm:$0xf] 0
      %264 = vst [vmem:[#allocation3 + $0x78] sm:$0xf] 0
      %265 = vst [vmem:[#allocation3 + $0x90] sm:$0xf] 0
      %266 = vst [vmem:[#allocation3 + $0x2c] sm:$0xf] 0
      %267 = vst [vmem:[#allocation3 + $0x44] sm:$0xf] 0
      %268 = vst [vmem:[#allocation3 + $0x8c] sm:$0xf] 0
      %269 = vst [vmem:[#allocation3 + $0xa4] sm:$0xf] 0
      %v270 = vld [vmem:[#allocation2] sm:$0xff]
      %v271 = vld [vmem:[#allocation2 + $0x8] sm:$0xff]
      %v272 = vld [vmem:[#allocation2 + $0x10] sm:$0xff]
      %v273 = vld [vmem:[#allocation2 + $0x18] sm:$0xff]
      %v274 = vld [vmem:[#allocation2 + $0x20] sm:$0xff]
      %v275 = vld [vmem:[#allocation2 + $0x28] sm:$0xff]
      %v276 = vld [vmem:[#allocation2 + $0x30] sm:$0xff]
      %v277 = vld [vmem:[#allocation2 + $0x38] sm:$0xff]
      %v278 = vld [vmem:[#allocation2 + $0x40] sm:$0xff]
      %v279 = vld [vmem:[#allocation2 + $0x48] sm:$0xff]
      %v280 = vld [vmem:[#allocation2 + $0x50] sm:$0xff]
      %v281 = vld [vmem:[#allocation2 + $0x58] sm:$0xff]
      %v282 = vld [vmem:[#allocation2 + $0x60] sm:$0xff]
      %v283 = vld [vmem:[#allocation2 + $0x68] sm:$0xff]
      %v284 = vld [vmem:[#allocation2 + $0x70] sm:$0xff]
      %v285 = vld [vmem:[#allocation2 + $0x78] sm:$0xff]
      %v286 = vmax.f32 %v270, 0.0
      %v287 = vmax.f32 %v271, 0.0
      %v288 = vmax.f32 %v272, 0.0
      %v289 = vmax.f32 %v273, 0.0
      %v290 = vmax.f32 %v274, 0.0
      %v291 = vmax.f32 %v275, 0.0
      %v292 = vmax.f32 %v276, 0.0
      %v293 = vmax.f32 %v277, 0.0
      %v294 = vmax.f32 %v278, 0.0
      %v295 = vmax.f32 %v279, 0.0
      %v296 = vmax.f32 %v280, 0.0
      %v297 = vmax.f32 %v281, 0.0
      %v298 = vmax.f32 %v282, 0.0
      %v299 = vmax.f32 %v283, 0.0
      %v300 = vmax.f32 %v284, 0.0
      %v301 = vmax.f32 %v285, 0.0
      %v302 = vpack.c.bf16 %v290, %v286
      %v303 = vpack.c.bf16 %v291, %v287
      %v304 = vpack.c.bf16 %v292, %v288
      %v305 = vpack.c.bf16 %v293, %v289
      %v306 = vpack.c.bf16 %v298, %v294
      %v307 = vpack.c.bf16 %v299, %v295
      %v308 = vpack.c.bf16 %v300, %v296
      %v309 = vpack.c.bf16 %v301, %v297
      %v318 = vunpack.c.l.b16 %v302
      %v319 = vunpack.c.l.b16 %v303
      %v320 = vunpack.c.l.b16 %v304
      %v321 = vunpack.c.l.b16 %v305
      %v322 = vunpack.c.h.b16 %v302
      %v323 = vunpack.c.h.b16 %v303
      %v324 = vunpack.c.h.b16 %v304
      %v325 = vunpack.c.h.b16 %v305
      %v326 = vunpack.c.l.b16 %v306
      %v327 = vunpack.c.l.b16 %v307
      %v328 = vunpack.c.l.b16 %v308
      %v329 = vunpack.c.l.b16 %v309
      %v330 = vunpack.c.h.b16 %v306
      %v331 = vunpack.c.h.b16 %v307
      %v332 = vunpack.c.h.b16 %v308
      %v333 = vunpack.c.h.b16 %v309
      %v334 = vpack.c.b16 %v319, %v318
      %v335 = vpack.c.b16 %v321, %v320
      %v336 = vpack.c.b16 %v323, %v322
      %v337 = vpack.c.b16 %v325, %v324
      %v338 = vpack.c.b16 %v327, %v326
      %v339 = vpack.c.b16 %v329, %v328
      %v340 = vpack.c.b16 %v331, %v330
      %v341 = vpack.c.b16 %v333, %v332
      %350 = vst [vmem:[#allocation3 + $0x1c] sm:$0xff] %v334
      %351 = vst [vmem:[#allocation3 + $0x24] sm:$0xff] %v335
      %352 = vst [vmem:[#allocation3 + $0x34] sm:$0xff] %v336
      %353 = vst [vmem:[#allocation3 + $0x3c] sm:$0xff] %v337
      %354 = vst [vmem:[#allocation3 + $0x7c] sm:$0xff] %v338
      %355 = vst [vmem:[#allocation3 + $0x84] sm:$0xff] %v339
      %356 = vst [vmem:[#allocation3 + $0x94] sm:$0xff] %v340
      %357 = vst [vmem:[#allocation3 + $0x9c] sm:$0xff] %v341
      %v358 = vld [vmem:[#allocation3] sm:$0x88]
      %v359 = vld [vmem:[#allocation3 + $0x8] sm:$0x88]
      %v360 = vld [vmem:[#allocation3 + $0x10] sm:$0x88]
      %v361 = vld [vmem:[#allocation3 + $0x18] sm:$0xff]
      %v362 = vld [vmem:[#allocation3 + $0x20] sm:$0xff]
      %v363 = vld [vmem:[#allocation3 + $0x28] sm:$0xff]
      %v364 = vld [vmem:[#allocation3 + $0x30] sm:$0xff]
      %v365 = vld [vmem:[#allocation3 + $0x38] sm:$0xff]
      %v366 = vld [vmem:[#allocation3 + $0x40] sm:$0xff]
      %v367 = vld [vmem:[#allocation3 + $0x60] sm:$0x88]
      %v368 = vld [vmem:[#allocation3 + $0x68] sm:$0x88]
      %v369 = vld [vmem:[#allocation3 + $0x70] sm:$0x88]
      %v370 = vld [vmem:[#allocation3 + $0x78] sm:$0xff]
      %v371 = vld [vmem:[#allocation3 + $0x80] sm:$0xff]
      %v372 = vld [vmem:[#allocation3 + $0x88] sm:$0xff]
      %v373 = vld [vmem:[#allocation3 + $0x90] sm:$0xff]
      %v374 = vld [vmem:[#allocation3 + $0x98] sm:$0xff]
      %v375 = vld [vmem:[#allocation3 + $0xa0] sm:$0xff]
      %vm376 = vsmask.f32 4368
      %vm377 = vmor %vm238, %vm376
      %v379 = vshrl.u32 %v358, 16
      %v381 = vrot.slane %v379, 7
      %v382 = vrot.slane %v381, 4
      %v384 = vshrl.u32 %v361, 16
      %v386 = vrot.slane %v384, 7
      %v387 = vshll.u32 %v361, 16
      %v389 = vor.u32 %v386, %v387
      %v390 = vsel %vm377, %v382, %v389
      %v392 = vshrl.u32 %v359, 16
      %v394 = vrot.slane %v392, 7
      %v395 = vrot.slane %v394, 4
      %v397 = vshrl.u32 %v362, 16
      %v399 = vrot.slane %v397, 7
      %v400 = vshll.u32 %v362, 16
      %v402 = vor.u32 %v399, %v400
      %v403 = vsel %vm377, %v395, %v402
      %v405 = vshrl.u32 %v360, 16
      %v407 = vrot.slane %v405, 7
      %v408 = vrot.slane %v407, 4
      %v410 = vshrl.u32 %v363, 16
      %v412 = vrot.slane %v410, 7
      %v413 = vshll.u32 %v363, 16
      %v415 = vor.u32 %v412, %v413
      %v416 = vsel %vm377, %v408, %v415
      %v417 = vrot.slane %v386, 4
      %v419 = vshrl.u32 %v364, 16
      %v421 = vrot.slane %v419, 7
      %v422 = vshll.u32 %v364, 16
      %v424 = vor.u32 %v421, %v422
      %v425 = vsel %vm377, %v417, %v424
      %v426 = vrot.slane %v399, 4
      %v428 = vshrl.u32 %v365, 16
      %v430 = vrot.slane %v428, 7
      %v431 = vshll.u32 %v365, 16
      %v433 = vor.u32 %v430, %v431
      %v434 = vsel %vm377, %v426, %v433
      %v435 = vrot.slane %v412, 4
      %v437 = vshrl.u32 %v366, 16
      %v439 = vrot.slane %v437, 7
      %v440 = vshll.u32 %v366, 16
      %v442 = vor.u32 %v439, %v440
      %v443 = vsel %vm377, %v435, %v442
      %v445 = vshrl.u32 %v367, 16
      %v447 = vrot.slane %v445, 7
      %v448 = vrot.slane %v447, 4
      %v450 = vshrl.u32 %v370, 16
      %v452 = vrot.slane %v450, 7
      %v453 = vshll.u32 %v370, 16
      %v455 = vor.u32 %v452, %v453
      %v456 = vsel %vm377, %v448, %v455
      %v458 = vshrl.u32 %v368, 16
      %v460 = vrot.slane %v458, 7
      %v461 = vrot.slane %v460, 4
      %v463 = vshrl.u32 %v371, 16
      %v465 = vrot.slane %v463, 7
      %v466 = vshll.u32 %v371, 16
      %v468 = vor.u32 %v465, %v466
      %v469 = vsel %vm377, %v461, %v468
      %v471 = vshrl.u32 %v369, 16
      %v473 = vrot.slane %v471, 7
      %v474 = vrot.slane %v473, 4
      %v476 = vshrl.u32 %v372, 16
      %v478 = vrot.slane %v476, 7
      %v479 = vshll.u32 %v372, 16
      %v481 = vor.u32 %v478, %v479
      %v482 = vsel %vm377, %v474, %v481
      %v483 = vrot.slane %v452, 4
      %v485 = vshrl.u32 %v373, 16
      %v487 = vrot.slane %v485, 7
      %v488 = vshll.u32 %v373, 16
      %v490 = vor.u32 %v487, %v488
      %v491 = vsel %vm377, %v483, %v490
      %v492 = vrot.slane %v465, 4
      %v494 = vshrl.u32 %v374, 16
      %v496 = vrot.slane %v494, 7
      %v497 = vshll.u32 %v374, 16
      %v499 = vor.u32 %v496, %v497
      %v500 = vsel %vm377, %v492, %v499
      %v501 = vrot.slane %v478, 4
      %v503 = vshrl.u32 %v375, 16
      %v505 = vrot.slane %v503, 7
      %v506 = vshll.u32 %v375, 16
      %v508 = vor.u32 %v505, %v506
      %v509 = vsel %vm377, %v501, %v508
      %v510 = vld [vmem:[%s1] sm:$0xff]
      %v511 = vld [vmem:[%s1 + $0x8] sm:$0xff]
      %v512 = vld [vmem:[%s1 + $0x10] sm:$0xff]
      %v513 = vld [vmem:[%s1 + $0x18] sm:$0xff]
      %v514 = vld [vmem:[%s1 + $0x20] sm:$0xff]
      %v515 = vld [vmem:[%s1 + $0x28] sm:$0xff]
      %v516 = vld [vmem:[%s1 + $0x30] sm:$0xff]
      %v517 = vld [vmem:[%s1 + $0x38] sm:$0xff]
      %v518 = vld [vmem:[%s1 + $0x40] sm:$0xff]
      %v519 = vld [vmem:[%s1 + $0x48] sm:$0xff]
      %v520 = vld [vmem:[%s1 + $0x50] sm:$0xff]
      %v521 = vld [vmem:[%s1 + $0x58] sm:$0xff]
      %v522 = vld [vmem:[%s1 + $0x60] sm:$0xff]
      %v523 = vld [vmem:[%s1 + $0x68] sm:$0xff]
      %v524 = vld [vmem:[%s1 + $0x70] sm:$0xff]
      %v525 = vld [vmem:[%s1 + $0x78] sm:$0xff]
      %v526 = vld [vmem:[%s1 + $0x80] sm:$0xff]
      %v527 = vld [vmem:[%s1 + $0x88] sm:$0xff]
      %v528 = vld [vmem:[%s1 + $0x90] sm:$0xff]
      %v529 = vld [vmem:[%s1 + $0x98] sm:$0xff]
      %v530 = vld [vmem:[%s1 + $0xa0] sm:$0xff]
      %v531 = vld [vmem:[%s1 + $0xa8] sm:$0xff]
      %v532 = vld [vmem:[%s1 + $0xb0] sm:$0xff]
      %v533 = vld [vmem:[%s1 + $0xb8] sm:$0xff]
      %v534 = vld [vmem:[%s1 + $0xc0] sm:$0xff]
      %v535 = vld [vmem:[%s1 + $0xc8] sm:$0xff]
      %v536 = vld [vmem:[%s1 + $0xd0] sm:$0xff]
      %v537 = vld [vmem:[%s1 + $0xd8] sm:$0xff]
      %v538 = vld [vmem:[%s1 + $0xe0] sm:$0xff]
      %v539 = vld [vmem:[%s1 + $0xe8] sm:$0xff]
      %v540 = vld [vmem:[%s1 + $0xf0] sm:$0xff]
      %v541 = vld [vmem:[%s1 + $0xf8] sm:$0xff]
      %v542 = vld [vmem:[%s1 + $0x100] sm:$0xff]
      %v543 = vld [vmem:[%s1 + $0x108] sm:$0xff]
      %v544 = vld [vmem:[%s1 + $0x110] sm:$0xff]
      %v545 = vld [vmem:[%s1 + $0x118] sm:$0xff]
      %v546 = vld [vmem:[%s1 + $0x120] sm:$0xff]
      %v547 = vld [vmem:[%s1 + $0x128] sm:$0xff]
      %v548 = vld [vmem:[%s1 + $0x130] sm:$0xff]
      %v549 = vld [vmem:[%s1 + $0x138] sm:$0xff]
      %v550 = vld [vmem:[%s1 + $0x140] sm:$0xff]
      %v551 = vld [vmem:[%s1 + $0x148] sm:$0xff]
      %v552 = vld [vmem:[%s1 + $0x150] sm:$0xff]
      %v553 = vld [vmem:[%s1 + $0x158] sm:$0xff]
      %v554 = vld [vmem:[%s1 + $0x160] sm:$0xff]
      %v555 = vld [vmem:[%s1 + $0x168] sm:$0xff]
      %v556 = vld [vmem:[%s1 + $0x170] sm:$0xff]
      %v557 = vld [vmem:[%s1 + $0x178] sm:$0xff]
      %v558 = vld [vmem:[%s1 + $0x180] sm:$0xff]
      %v559 = vld [vmem:[%s1 + $0x188] sm:$0xff]
      %v560 = vld [vmem:[%s1 + $0x190] sm:$0xff]
      %v561 = vld [vmem:[%s1 + $0x198] sm:$0xff]
      %v562 = vld [vmem:[%s1 + $0x1a0] sm:$0xff]
      %v563 = vld [vmem:[%s1 + $0x1a8] sm:$0xff]
      %v564 = vld [vmem:[%s1 + $0x1b0] sm:$0xff]
      %v565 = vld [vmem:[%s1 + $0x1b8] sm:$0xff]
      %v566 = vld [vmem:[%s1 + $0x1c0] sm:$0xff]
      %v567 = vld [vmem:[%s1 + $0x1c8] sm:$0xff]
      %v568 = vld [vmem:[%s1 + $0x1d0] sm:$0xff]
      %v569 = vld [vmem:[%s1 + $0x1d8] sm:$0xff]
      %v570 = vld [vmem:[%s1 + $0x1e0] sm:$0xff]
      %v571 = vld [vmem:[%s1 + $0x1e8] sm:$0xff]
      %v572 = vld [vmem:[%s1 + $0x1f0] sm:$0xff]
      %v573 = vld [vmem:[%s1 + $0x1f8] sm:$0xff]
      %v574 = vld [vmem:[%s1 + $0x200] sm:$0xff]
      %v575 = vld [vmem:[%s1 + $0x208] sm:$0xff]
      %v576 = vld [vmem:[%s1 + $0x210] sm:$0xff]
      %v577 = vld [vmem:[%s1 + $0x218] sm:$0xff]
      %v578 = vld [vmem:[%s1 + $0x220] sm:$0xff]
      %v579 = vld [vmem:[%s1 + $0x228] sm:$0xff]
      %v580 = vld [vmem:[%s1 + $0x230] sm:$0xff]
      %v581 = vld [vmem:[%s1 + $0x238] sm:$0xff]
      %v582 = vld [vmem:[%s1 + $0x240] sm:$0xff]
      %v583 = vld [vmem:[%s1 + $0x248] sm:$0xff]
      %v584 = vld [vmem:[%s1 + $0x250] sm:$0xff]
      %v585 = vld [vmem:[%s1 + $0x258] sm:$0xff]
      %v586 = vld [vmem:[%s1 + $0x260] sm:$0xff]
      %v587 = vld [vmem:[%s1 + $0x268] sm:$0xff]
      %v588 = vld [vmem:[%s1 + $0x270] sm:$0xff]
      %v589 = vld [vmem:[%s1 + $0x278] sm:$0xff]
      %v590 = vld [vmem:[%s1 + $0x280] sm:$0xff]
      %v591 = vld [vmem:[%s1 + $0x288] sm:$0xff]
      %v592 = vld [vmem:[%s1 + $0x290] sm:$0xff]
      %v593 = vld [vmem:[%s1 + $0x298] sm:$0xff]
      %v594 = vld [vmem:[%s1 + $0x2a0] sm:$0xff]
      %v595 = vld [vmem:[%s1 + $0x2a8] sm:$0xff]
      %v596 = vld [vmem:[%s1 + $0x2b0] sm:$0xff]
      %v597 = vld [vmem:[%s1 + $0x2b8] sm:$0xff]
      %v598 = vld [vmem:[%s1 + $0x2c0] sm:$0xff]
      %v599 = vld [vmem:[%s1 + $0x2c8] sm:$0xff]
      %v600 = vld [vmem:[%s1 + $0x2d0] sm:$0xff]
      %v601 = vld [vmem:[%s1 + $0x2d8] sm:$0xff]
      %v602 = vld [vmem:[%s1 + $0x2e0] sm:$0xff]
      %v603 = vld [vmem:[%s1 + $0x2e8] sm:$0xff]
      %v604 = vld [vmem:[%s1 + $0x2f0] sm:$0xff]
      %v605 = vld [vmem:[%s1 + $0x2f8] sm:$0xff]
      %s606 = scalar_lea.vmem %s1, 768
      %v607 = vld [vmem:[%s606] sm:$0xff]
      %v608 = vld [vmem:[%s606 + $0x8] sm:$0xff]
      %v609 = vld [vmem:[%s606 + $0x10] sm:$0xff]
      %v610 = vld [vmem:[%s606 + $0x18] sm:$0xff]
      %v611 = vld [vmem:[%s606 + $0x20] sm:$0xff]
      %v612 = vld [vmem:[%s606 + $0x28] sm:$0xff]
      %v613 = vld [vmem:[%s606 + $0x30] sm:$0xff]
      %v614 = vld [vmem:[%s606 + $0x38] sm:$0xff]
      %v615 = vld [vmem:[%s606 + $0x40] sm:$0xff]
      %v616 = vld [vmem:[%s606 + $0x48] sm:$0xff]
      %v617 = vld [vmem:[%s606 + $0x50] sm:$0xff]
      %v618 = vld [vmem:[%s606 + $0x58] sm:$0xff]
      %v619 = vld [vmem:[%s606 + $0x60] sm:$0xff]
      %v620 = vld [vmem:[%s606 + $0x68] sm:$0xff]
      %v621 = vld [vmem:[%s606 + $0x70] sm:$0xff]
      %v622 = vld [vmem:[%s606 + $0x78] sm:$0xff]
      %v623 = vld [vmem:[%s606 + $0x80] sm:$0xff]
      %v624 = vld [vmem:[%s606 + $0x88] sm:$0xff]
      %v625 = vld [vmem:[%s606 + $0x90] sm:$0xff]
      %v626 = vld [vmem:[%s606 + $0x98] sm:$0xff]
      %v627 = vld [vmem:[%s606 + $0xa0] sm:$0xff]
      %v628 = vld [vmem:[%s606 + $0xa8] sm:$0xff]
      %v629 = vld [vmem:[%s606 + $0xb0] sm:$0xff]
      %v630 = vld [vmem:[%s606 + $0xb8] sm:$0xff]
      %v631 = vld [vmem:[%s606 + $0xc0] sm:$0xff]
      %v632 = vld [vmem:[%s606 + $0xc8] sm:$0xff]
      %v633 = vld [vmem:[%s606 + $0xd0] sm:$0xff]
      %v634 = vld [vmem:[%s606 + $0xd8] sm:$0xff]
      %v635 = vld [vmem:[%s606 + $0xe0] sm:$0xff]
      %v636 = vld [vmem:[%s606 + $0xe8] sm:$0xff]
      %v637 = vld [vmem:[%s606 + $0xf0] sm:$0xff]
      %v638 = vld [vmem:[%s606 + $0xf8] sm:$0xff]
      %v639 = vld [vmem:[%s606 + $0x100] sm:$0xff]
      %v640 = vld [vmem:[%s606 + $0x108] sm:$0xff]
      %v641 = vld [vmem:[%s606 + $0x110] sm:$0xff]
      %v642 = vld [vmem:[%s606 + $0x118] sm:$0xff]
      %v643 = vld [vmem:[%s606 + $0x120] sm:$0xff]
      %v644 = vld [vmem:[%s606 + $0x128] sm:$0xff]
      %v645 = vld [vmem:[%s606 + $0x130] sm:$0xff]
      %v646 = vld [vmem:[%s606 + $0x138] sm:$0xff]
      %v647 = vld [vmem:[%s606 + $0x140] sm:$0xff]
      %v648 = vld [vmem:[%s606 + $0x148] sm:$0xff]
      %v649 = vld [vmem:[%s606 + $0x150] sm:$0xff]
      %v650 = vld [vmem:[%s606 + $0x158] sm:$0xff]
      %v651 = vld [vmem:[%s606 + $0x160] sm:$0xff]
      %v652 = vld [vmem:[%s606 + $0x168] sm:$0xff]
      %v653 = vld [vmem:[%s606 + $0x170] sm:$0xff]
      %v654 = vld [vmem:[%s606 + $0x178] sm:$0xff]
      %v655 = vld [vmem:[%s606 + $0x180] sm:$0xff]
      %v656 = vld [vmem:[%s606 + $0x188] sm:$0xff]
      %v657 = vld [vmem:[%s606 + $0x190] sm:$0xff]
      %v658 = vld [vmem:[%s606 + $0x198] sm:$0xff]
      %v659 = vld [vmem:[%s606 + $0x1a0] sm:$0xff]
      %v660 = vld [vmem:[%s606 + $0x1a8] sm:$0xff]
      %v661 = vld [vmem:[%s606 + $0x1b0] sm:$0xff]
      %v662 = vld [vmem:[%s606 + $0x1b8] sm:$0xff]
      %v663 = vld [vmem:[%s606 + $0x1c0] sm:$0xff]
      %v664 = vld [vmem:[%s606 + $0x1c8] sm:$0xff]
      %v665 = vld [vmem:[%s606 + $0x1d0] sm:$0xff]
      %v666 = vld [vmem:[%s606 + $0x1d8] sm:$0xff]
      %v667 = vld [vmem:[%s606 + $0x1e0] sm:$0xff]
      %v668 = vld [vmem:[%s606 + $0x1e8] sm:$0xff]
      %v669 = vld [vmem:[%s606 + $0x1f0] sm:$0xff]
      %v670 = vld [vmem:[%s606 + $0x1f8] sm:$0xff]
      %v671 = vld [vmem:[%s606 + $0x200] sm:$0xff]
      %v672 = vld [vmem:[%s606 + $0x208] sm:$0xff]
      %v673 = vld [vmem:[%s606 + $0x210] sm:$0xff]
      %v674 = vld [vmem:[%s606 + $0x218] sm:$0xff]
      %v675 = vld [vmem:[%s606 + $0x220] sm:$0xff]
      %v676 = vld [vmem:[%s606 + $0x228] sm:$0xff]
      %v677 = vld [vmem:[%s606 + $0x230] sm:$0xff]
      %v678 = vld [vmem:[%s606 + $0x238] sm:$0xff]
      %v679 = vld [vmem:[%s606 + $0x240] sm:$0xff]
      %v680 = vld [vmem:[%s606 + $0x248] sm:$0xff]
      %v681 = vld [vmem:[%s606 + $0x250] sm:$0xff]
      %v682 = vld [vmem:[%s606 + $0x258] sm:$0xff]
      %v683 = vld [vmem:[%s606 + $0x260] sm:$0xff]
      %v684 = vld [vmem:[%s606 + $0x268] sm:$0xff]
      %v685 = vld [vmem:[%s606 + $0x270] sm:$0xff]
      %v686 = vld [vmem:[%s606 + $0x278] sm:$0xff]
      %v687 = vld [vmem:[%s606 + $0x280] sm:$0xff]
      %v688 = vld [vmem:[%s606 + $0x288] sm:$0xff]
      %v689 = vld [vmem:[%s606 + $0x290] sm:$0xff]
      %v690 = vld [vmem:[%s606 + $0x298] sm:$0xff]
      %v691 = vld [vmem:[%s606 + $0x2a0] sm:$0xff]
      %v692 = vld [vmem:[%s606 + $0x2a8] sm:$0xff]
      %v693 = vld [vmem:[%s606 + $0x2b0] sm:$0xff]
      %v694 = vld [vmem:[%s606 + $0x2b8] sm:$0xff]
      %v695 = vld [vmem:[%s606 + $0x2c0] sm:$0xff]
      %v696 = vld [vmem:[%s606 + $0x2c8] sm:$0xff]
      %v697 = vld [vmem:[%s606 + $0x2d0] sm:$0xff]
      %v698 = vld [vmem:[%s606 + $0x2d8] sm:$0xff]
      %v699 = vld [vmem:[%s606 + $0x2e0] sm:$0xff]
      %v700 = vld [vmem:[%s606 + $0x2e8] sm:$0xff]
      %v701 = vld [vmem:[%s606 + $0x2f0] sm:$0xff]
      %v702 = vld [vmem:[%s606 + $0x2f8] sm:$0xff]
      %v715 = vunpack.c.l.b16 %v361
      %v716 = vunpack.c.h.b16 %v361
      %v717 = vunpack.c.l.b16 %v362
      %v718 = vunpack.c.h.b16 %v362
      %v719 = vunpack.c.l.b16 %v363
      %v720 = vunpack.c.h.b16 %v363
      %v721 = vunpack.c.l.b16 %v364
      %v722 = vunpack.c.h.b16 %v364
      %v723 = vunpack.c.l.b16 %v365
      %v724 = vunpack.c.h.b16 %v365
      %v725 = vunpack.c.l.b16 %v366
      %v726 = vunpack.c.h.b16 %v366
      %v727 = vunpack.c.l.b16 %v370
      %v728 = vunpack.c.h.b16 %v370
      %v729 = vunpack.c.l.b16 %v371
      %v730 = vunpack.c.h.b16 %v371
      %v731 = vunpack.c.l.b16 %v372
      %v732 = vunpack.c.h.b16 %v372
      %v733 = vunpack.c.l.b16 %v373
      %v734 = vunpack.c.h.b16 %v373
      %v735 = vunpack.c.l.b16 %v374
      %v736 = vunpack.c.h.b16 %v374
      %v737 = vunpack.c.l.b16 %v375
      %v738 = vunpack.c.h.b16 %v375
      %v739 = vpack.c.b16 %v721, %v715
      %v740 = vpack.c.b16 %v722, %v716
      %v741 = vpack.c.b16 %v723, %v717
      %v742 = vpack.c.b16 %v724, %v718
      %v743 = vpack.c.b16 %v725, %v719
      %v744 = vpack.c.b16 %v726, %v720
      %v745 = vpack.c.b16 %v733, %v727
      %v746 = vpack.c.b16 %v734, %v728
      %v747 = vpack.c.b16 %v735, %v729
      %v748 = vpack.c.b16 %v736, %v730
      %v749 = vpack.c.b16 %v737, %v731
      %v750 = vpack.c.b16 %v738, %v732
      %v859 = vunpack.c.l.b16 %v607
      %v860 = vunpack.c.h.b16 %v607
      %v861 = vunpack.c.l.b16 %v608
      %v862 = vunpack.c.h.b16 %v608
      %v863 = vunpack.c.l.b16 %v609
      %v864 = vunpack.c.h.b16 %v609
      %v865 = vunpack.c.l.b16 %v610
      %v866 = vunpack.c.h.b16 %v610
      %v867 = vunpack.c.l.b16 %v611
      %v868 = vunpack.c.h.b16 %v611
      %v869 = vunpack.c.l.b16 %v612
      %v870 = vunpack.c.h.b16 %v612
      %v871 = vunpack.c.l.b16 %v613
      %v872 = vunpack.c.h.b16 %v613
      %v873 = vunpack.c.l.b16 %v614
      %v874 = vunpack.c.h.b16 %v614
      %v875 = vunpack.c.l.b16 %v615
      %v876 = vunpack.c.h.b16 %v615
      %v877 = vunpack.c.l.b16 %v616
      %v878 = vunpack.c.h.b16 %v616
      %v879 = vunpack.c.l.b16 %v617
      %v880 = vunpack.c.h.b16 %v617
      %v881 = vunpack.c.l.b16 %v618
      %v882 = vunpack.c.h.b16 %v618
      %v883 = vunpack.c.l.b16 %v619
      %v884 = vunpack.c.h.b16 %v619
      %v885 = vunpack.c.l.b16 %v620
      %v886 = vunpack.c.h.b16 %v620
      %v887 = vunpack.c.l.b16 %v621
      %v888 = vunpack.c.h.b16 %v621
      %v889 = vunpack.c.l.b16 %v622
      %v890 = vunpack.c.h.b16 %v622
      %v891 = vunpack.c.l.b16 %v623
      %v892 = vunpack.c.h.b16 %v623
      %v893 = vunpack.c.l.b16 %v624
      %v894 = vunpack.c.h.b16 %v624
      %v895 = vunpack.c.l.b16 %v625
      %v896 = vunpack.c.h.b16 %v625
      %v897 = vunpack.c.l.b16 %v626
      %v898 = vunpack.c.h.b16 %v626
      %v899 = vunpack.c.l.b16 %v627
      %v900 = vunpack.c.h.b16 %v627
      %v901 = vunpack.c.l.b16 %v628
      %v902 = vunpack.c.h.b16 %v628
      %v903 = vunpack.c.l.b16 %v629
      %v904 = vunpack.c.h.b16 %v629
      %v905 = vunpack.c.l.b16 %v630
      %v906 = vunpack.c.h.b16 %v630
      %v907 = vunpack.c.l.b16 %v631
      %v908 = vunpack.c.h.b16 %v631
      %v909 = vunpack.c.l.b16 %v632
      %v910 = vunpack.c.h.b16 %v632
      %v911 = vunpack.c.l.b16 %v633
      %v912 = vunpack.c.h.b16 %v633
      %v913 = vunpack.c.l.b16 %v634
      %v914 = vunpack.c.h.b16 %v634
      %v915 = vunpack.c.l.b16 %v635
      %v916 = vunpack.c.h.b16 %v635
      %v917 = vunpack.c.l.b16 %v636
      %v918 = vunpack.c.h.b16 %v636
      %v919 = vunpack.c.l.b16 %v637
      %v920 = vunpack.c.h.b16 %v637
      %v921 = vunpack.c.l.b16 %v638
      %v922 = vunpack.c.h.b16 %v638
      %v923 = vunpack.c.l.b16 %v639
      %v924 = vunpack.c.h.b16 %v639
      %v925 = vunpack.c.l.b16 %v640
      %v926 = vunpack.c.h.b16 %v640
      %v927 = vunpack.c.l.b16 %v641
      %v928 = vunpack.c.h.b16 %v641
      %v929 = vunpack.c.l.b16 %v642
      %v930 = vunpack.c.h.b16 %v642
      %v931 = vunpack.c.l.b16 %v643
      %v932 = vunpack.c.h.b16 %v643
      %v933 = vunpack.c.l.b16 %v644
      %v934 = vunpack.c.h.b16 %v644
      %v935 = vunpack.c.l.b16 %v645
      %v936 = vunpack.c.h.b16 %v645
      %v937 = vunpack.c.l.b16 %v646
      %v938 = vunpack.c.h.b16 %v646
      %v939 = vunpack.c.l.b16 %v647
      %v940 = vunpack.c.h.b16 %v647
      %v941 = vunpack.c.l.b16 %v648
      %v942 = vunpack.c.h.b16 %v648
      %v943 = vunpack.c.l.b16 %v649
      %v944 = vunpack.c.h.b16 %v649
      %v945 = vunpack.c.l.b16 %v650
      %v946 = vunpack.c.h.b16 %v650
      %v947 = vunpack.c.l.b16 %v651
      %v948 = vunpack.c.h.b16 %v651
      %v949 = vunpack.c.l.b16 %v652
      %v950 = vunpack.c.h.b16 %v652
      %v951 = vunpack.c.l.b16 %v653
      %v952 = vunpack.c.h.b16 %v653
      %v953 = vunpack.c.l.b16 %v654
      %v954 = vunpack.c.h.b16 %v654
      %v955 = vunpack.c.l.b16 %v655
      %v956 = vunpack.c.h.b16 %v655
      %v957 = vunpack.c.l.b16 %v656
      %v958 = vunpack.c.h.b16 %v656
      %v959 = vunpack.c.l.b16 %v657
      %v960 = vunpack.c.h.b16 %v657
      %v961 = vunpack.c.l.b16 %v658
      %v962 = vunpack.c.h.b16 %v658
      %v963 = vunpack.c.l.b16 %v659
      %v964 = vunpack.c.h.b16 %v659
      %v965 = vunpack.c.l.b16 %v660
      %v966 = vunpack.c.h.b16 %v660
      %v967 = vunpack.c.l.b16 %v661
      %v968 = vunpack.c.h.b16 %v661
      %v969 = vunpack.c.l.b16 %v662
      %v970 = vunpack.c.h.b16 %v662
      %v971 = vunpack.c.l.b16 %v663
      %v972 = vunpack.c.h.b16 %v663
      %v973 = vunpack.c.l.b16 %v664
      %v974 = vunpack.c.h.b16 %v664
      %v975 = vunpack.c.l.b16 %v665
      %v976 = vunpack.c.h.b16 %v665
      %v977 = vunpack.c.l.b16 %v666
      %v978 = vunpack.c.h.b16 %v666
      %v979 = vunpack.c.l.b16 %v667
      %v980 = vunpack.c.h.b16 %v667
      %v981 = vunpack.c.l.b16 %v668
      %v982 = vunpack.c.h.b16 %v668
      %v983 = vunpack.c.l.b16 %v669
      %v984 = vunpack.c.h.b16 %v669
      %v985 = vunpack.c.l.b16 %v670
      %v986 = vunpack.c.h.b16 %v670
      %v987 = vunpack.c.l.b16 %v671
      %v988 = vunpack.c.h.b16 %v671
      %v989 = vunpack.c.l.b16 %v672
      %v990 = vunpack.c.h.b16 %v672
      %v991 = vunpack.c.l.b16 %v673
      %v992 = vunpack.c.h.b16 %v673
      %v993 = vunpack.c.l.b16 %v674
      %v994 = vunpack.c.h.b16 %v674
      %v995 = vunpack.c.l.b16 %v675
      %v996 = vunpack.c.h.b16 %v675
      %v997 = vunpack.c.l.b16 %v676
      %v998 = vunpack.c.h.b16 %v676
      %v999 = vunpack.c.l.b16 %v677
      %v1000 = vunpack.c.h.b16 %v677
      %v1001 = vunpack.c.l.b16 %v678
      %v1002 = vunpack.c.h.b16 %v678
      %v1003 = vunpack.c.l.b16 %v679
      %v1004 = vunpack.c.h.b16 %v679
      %v1005 = vunpack.c.l.b16 %v680
      %v1006 = vunpack.c.h.b16 %v680
      %v1007 = vunpack.c.l.b16 %v681
      %v1008 = vunpack.c.h.b16 %v681
      %v1009 = vunpack.c.l.b16 %v682
      %v1010 = vunpack.c.h.b16 %v682
      %v1011 = vunpack.c.l.b16 %v683
      %v1012 = vunpack.c.h.b16 %v683
      %v1013 = vunpack.c.l.b16 %v684
      %v1014 = vunpack.c.h.b16 %v684
      %v1015 = vunpack.c.l.b16 %v685
      %v1016 = vunpack.c.h.b16 %v685
      %v1017 = vunpack.c.l.b16 %v686
      %v1018 = vunpack.c.h.b16 %v686
      %v1019 = vunpack.c.l.b16 %v687
      %v1020 = vunpack.c.h.b16 %v687
      %v1021 = vunpack.c.l.b16 %v688
      %v1022 = vunpack.c.h.b16 %v688
      %v1023 = vunpack.c.l.b16 %v689
      %v1024 = vunpack.c.h.b16 %v689
      %v1025 = vunpack.c.l.b16 %v690
      %v1026 = vunpack.c.h.b16 %v690
      %v1027 = vunpack.c.l.b16 %v691
      %v1028 = vunpack.c.h.b16 %v691
      %v1029 = vunpack.c.l.b16 %v692
      %v1030 = vunpack.c.h.b16 %v692
      %v1031 = vunpack.c.l.b16 %v693
      %v1032 = vunpack.c.h.b16 %v693
      %v1033 = vunpack.c.l.b16 %v694
      %v1034 = vunpack.c.h.b16 %v694
      %v1035 = vunpack.c.l.b16 %v695
      %v1036 = vunpack.c.h.b16 %v695
      %v1037 = vunpack.c.l.b16 %v696
      %v1038 = vunpack.c.h.b16 %v696
      %v1039 = vunpack.c.l.b16 %v697
      %v1040 = vunpack.c.h.b16 %v697
      %v1041 = vunpack.c.l.b16 %v698
      %v1042 = vunpack.c.h.b16 %v698
      %v1043 = vunpack.c.l.b16 %v699
      %v1044 = vunpack.c.h.b16 %v699
      %v1045 = vunpack.c.l.b16 %v700
      %v1046 = vunpack.c.h.b16 %v700
      %v1047 = vunpack.c.l.b16 %v701
      %v1048 = vunpack.c.h.b16 %v701
      %v1049 = vunpack.c.l.b16 %v702
      %v1050 = vunpack.c.h.b16 %v702
      %v1051 = vpack.c.b16 %v861, %v859
      %v1052 = vpack.c.b16 %v862, %v860
      %v1053 = vpack.c.b16 %v865, %v863
      %v1054 = vpack.c.b16 %v866, %v864
      %v1055 = vpack.c.b16 %v869, %v867
      %v1056 = vpack.c.b16 %v870, %v868
      %v1057 = vpack.c.b16 %v873, %v871
      %v1058 = vpack.c.b16 %v874, %v872
      %v1059 = vpack.c.b16 %v877, %v875
      %v1060 = vpack.c.b16 %v878, %v876
      %v1061 = vpack.c.b16 %v881, %v879
      %v1062 = vpack.c.b16 %v882, %v880
      %v1063 = vpack.c.b16 %v885, %v883
      %v1064 = vpack.c.b16 %v886, %v884
      %v1065 = vpack.c.b16 %v889, %v887
      %v1066 = vpack.c.b16 %v890, %v888
      %v1067 = vpack.c.b16 %v893, %v891
      %v1068 = vpack.c.b16 %v894, %v892
      %v1069 = vpack.c.b16 %v897, %v895
      %v1070 = vpack.c.b16 %v898, %v896
      %v1071 = vpack.c.b16 %v901, %v899
      %v1072 = vpack.c.b16 %v902, %v900
      %v1073 = vpack.c.b16 %v905, %v903
      %v1074 = vpack.c.b16 %v906, %v904
      %v1075 = vpack.c.b16 %v909, %v907
      %v1076 = vpack.c.b16 %v910, %v908
      %v1077 = vpack.c.b16 %v913, %v911
      %v1078 = vpack.c.b16 %v914, %v912
      %v1079 = vpack.c.b16 %v917, %v915
      %v1080 = vpack.c.b16 %v918, %v916
      %v1081 = vpack.c.b16 %v921, %v919
      %v1082 = vpack.c.b16 %v922, %v920
      %v1083 = vpack.c.b16 %v925, %v923
      %v1084 = vpack.c.b16 %v926, %v924
      %v1085 = vpack.c.b16 %v929, %v927
      %v1086 = vpack.c.b16 %v930, %v928
      %v1087 = vpack.c.b16 %v933, %v931
      %v1088 = vpack.c.b16 %v934, %v932
      %v1089 = vpack.c.b16 %v937, %v935
      %v1090 = vpack.c.b16 %v938, %v936
      %v1091 = vpack.c.b16 %v941, %v939
      %v1092 = vpack.c.b16 %v942, %v940
      %v1093 = vpack.c.b16 %v945, %v943
      %v1094 = vpack.c.b16 %v946, %v944
      %v1095 = vpack.c.b16 %v949, %v947
      %v1096 = vpack.c.b16 %v950, %v948
      %v1097 = vpack.c.b16 %v953, %v951
      %v1098 = vpack.c.b16 %v954, %v952
      %v1099 = vpack.c.b16 %v957, %v955
      %v1100 = vpack.c.b16 %v958, %v956
      %v1101 = vpack.c.b16 %v961, %v959
      %v1102 = vpack.c.b16 %v962, %v960
      %v1103 = vpack.c.b16 %v965, %v963
      %v1104 = vpack.c.b16 %v966, %v964
      %v1105 = vpack.c.b16 %v969, %v967
      %v1106 = vpack.c.b16 %v970, %v968
      %v1107 = vpack.c.b16 %v973, %v971
      %v1108 = vpack.c.b16 %v974, %v972
      %v1109 = vpack.c.b16 %v977, %v975
      %v1110 = vpack.c.b16 %v978, %v976
      %v1111 = vpack.c.b16 %v981, %v979
      %v1112 = vpack.c.b16 %v982, %v980
      %v1113 = vpack.c.b16 %v985, %v983
      %v1114 = vpack.c.b16 %v986, %v984
      %v1115 = vpack.c.b16 %v989, %v987
      %v1116 = vpack.c.b16 %v990, %v988
      %v1117 = vpack.c.b16 %v993, %v991
      %v1118 = vpack.c.b16 %v994, %v992
      %v1119 = vpack.c.b16 %v997, %v995
      %v1120 = vpack.c.b16 %v998, %v996
      %v1121 = vpack.c.b16 %v1001, %v999
      %v1122 = vpack.c.b16 %v1002, %v1000
      %v1123 = vpack.c.b16 %v1005, %v1003
      %v1124 = vpack.c.b16 %v1006, %v1004
      %v1125 = vpack.c.b16 %v1009, %v1007
      %v1126 = vpack.c.b16 %v1010, %v1008
      %v1127 = vpack.c.b16 %v1013, %v1011
      %v1128 = vpack.c.b16 %v1014, %v1012
      %v1129 = vpack.c.b16 %v1017, %v1015
      %v1130 = vpack.c.b16 %v1018, %v1016
      %v1131 = vpack.c.b16 %v1021, %v1019
      %v1132 = vpack.c.b16 %v1022, %v1020
      %v1133 = vpack.c.b16 %v1025, %v1023
      %v1134 = vpack.c.b16 %v1026, %v1024
      %v1135 = vpack.c.b16 %v1029, %v1027
      %v1136 = vpack.c.b16 %v1030, %v1028
      %v1137 = vpack.c.b16 %v1033, %v1031
      %v1138 = vpack.c.b16 %v1034, %v1032
      %v1139 = vpack.c.b16 %v1037, %v1035
      %v1140 = vpack.c.b16 %v1038, %v1036
      %v1141 = vpack.c.b16 %v1041, %v1039
      %v1142 = vpack.c.b16 %v1042, %v1040
      %v1143 = vpack.c.b16 %v1045, %v1043
      %v1144 = vpack.c.b16 %v1046, %v1044
      %v1145 = vpack.c.b16 %v1049, %v1047
      %v1146 = vpack.c.b16 %v1050, %v1048
      %1243 = vmatprep.subr.bf16.mxu0 %v1066
      %1244 = vmatpush1.bf16.msra.mxu0 %v1065
      %1245 = vmatprep.subr.bf16.mxu0 %v1064
      %1246 = vmatpush1.bf16.msra.mxu0 %v1063
      %1247 = vmatprep.subr.bf16.mxu0 %v1062
      %1248 = vmatpush1.bf16.msra.mxu0 %v1061
      %1249 = vmatprep.subr.bf16.mxu0 %v1060
      %1250 = vmatpush1.bf16.msra.mxu0 %v1059
      %1251 = vmatprep.subr.bf16.mxu0 %v1058
      %1252 = vmatpush1.bf16.msra.mxu0 %v1057
      %1253 = vmatprep.subr.bf16.mxu0 %v1056
      %1254 = vmatpush1.bf16.msra.mxu0 %v1055
      %1255 = vmatprep.subr.bf16.mxu0 %v1054
      %1256 = vmatpush1.bf16.msra.mxu0 %v1053
      %1257 = vmatprep.subr.bf16.mxu0 %v1052
      %1258 = vmatpush1.bf16.msra.mxu0 %v1051
      %1259 = vmatprep.subr.bf16.mxu0 %v1082
      %1260 = vmatpush2.bf16.msra.mxu0 %v1081
      %1261 = vmatprep.subr.bf16.mxu0 %v1080
      %1262 = vmatpush2.bf16.msra.mxu0 %v1079
      %1263 = vmatprep.subr.bf16.mxu0 %v1078
      %1264 = vmatpush2.bf16.msra.mxu0 %v1077
      %1265 = vmatprep.subr.bf16.mxu0 %v1076
      %1266 = vmatpush2.bf16.msra.mxu0 %v1075
      %1267 = vmatprep.subr.bf16.mxu0 %v1074
      %1268 = vmatpush2.bf16.msra.mxu0 %v1073
      %1269 = vmatprep.subr.bf16.mxu0 %v1072
      %1270 = vmatpush2.bf16.msra.mxu0 %v1071
      %1271 = vmatprep.subr.bf16.mxu0 %v1070
      %1272 = vmatpush2.bf16.msra.mxu0 %v1069
      %1273 = vmatprep.subr.bf16.mxu0 %v1068
      %1274 = vmatpush2.bf16.msra.mxu0 %v1067
      %1275 = vmatprep.mubr.bf16.mxu0 %v740
      %1276 = vmatmul.mubr.bf16.gmra.mxu0 %v739
      %v1277 = vpop.f32.mrf.mxu0
      %v1278 = vadd.f32 0.0, %v1277
      %v1279 = vpop.f32.mrf.mxu0
      %v1280 = vadd.f32 0.0, %v1279
      %v1281 = vpop.f32.mrf.mxu0
      %v1282 = vadd.f32 0.0, %v1281
      %v1283 = vpop.f32.mrf.mxu0
      %v1284 = vadd.f32 0.0, %v1283
      %1285 = vmatprep.mubr.bf16.mxu0 %v746
      %1286 = vmatmul.mubr.bf16.gmra.mxu0 %v745
      %v1287 = vpop.f32.mrf.mxu0
      %v1288 = vadd.f32 0.0, %v1287
      %v1289 = vpop.f32.mrf.mxu0
      %v1290 = vadd.f32 0.0, %v1289
      %v1291 = vpop.f32.mrf.mxu0
      %v1292 = vadd.f32 0.0, %v1291
      %v1293 = vpop.f32.mrf.mxu0
      %v1294 = vadd.f32 0.0, %v1293
      %1295 = vdwg.mxu0
      %1296 = vmatprep.subr.bf16.mxu0 %v1098
      %1297 = vmatpush1.bf16.msra.mxu0 %v1097
      %1298 = vmatprep.subr.bf16.mxu0 %v1096
      %1299 = vmatpush1.bf16.msra.mxu0 %v1095
      %1300 = vmatprep.subr.bf16.mxu0 %v1094
      %1301 = vmatpush1.bf16.msra.mxu0 %v1093
      %1302 = vmatprep.subr.bf16.mxu0 %v1092
      %1303 = vmatpush1.bf16.msra.mxu0 %v1091
      %1304 = vmatprep.subr.bf16.mxu0 %v1090
      %1305 = vmatpush1.bf16.msra.mxu0 %v1089
      %1306 = vmatprep.subr.bf16.mxu0 %v1088
      %1307 = vmatpush1.bf16.msra.mxu0 %v1087
      %1308 = vmatprep.subr.bf16.mxu0 %v1086
      %1309 = vmatpush1.bf16.msra.mxu0 %v1085
      %1310 = vmatprep.subr.bf16.mxu0 %v1084
      %1311 = vmatpush1.bf16.msra.mxu0 %v1083
      %1312 = vmatprep.subr.bf16.mxu0 %v1114
      %1313 = vmatpush2.bf16.msra.mxu0 %v1113
      %1314 = vmatprep.subr.bf16.mxu0 %v1112
      %1315 = vmatpush2.bf16.msra.mxu0 %v1111
      %1316 = vmatprep.subr.bf16.mxu0 %v1110
      %1317 = vmatpush2.bf16.msra.mxu0 %v1109
      %1318 = vmatprep.subr.bf16.mxu0 %v1108
      %1319 = vmatpush2.bf16.msra.mxu0 %v1107
      %1320 = vmatprep.subr.bf16.mxu0 %v1106
      %1321 = vmatpush2.bf16.msra.mxu0 %v1105
      %1322 = vmatprep.subr.bf16.mxu0 %v1104
      %1323 = vmatpush2.bf16.msra.mxu0 %v1103
      %1324 = vmatprep.subr.bf16.mxu0 %v1102
      %1325 = vmatpush2.bf16.msra.mxu0 %v1101
      %1326 = vmatprep.subr.bf16.mxu0 %v1100
      %1327 = vmatpush2.bf16.msra.mxu0 %v1099
      %1328 = vmatprep.mubr.bf16.mxu0 %v742
      %1329 = vmatmul.mubr.bf16.gmra.mxu0 %v741
      %v1330 = vpop.f32.mrf.mxu0
      %v1331 = vadd.f32 %v1278, %v1330
      %v1332 = vpop.f32.mrf.mxu0
      %v1333 = vadd.f32 %v1280, %v1332
      %v1334 = vpop.f32.mrf.mxu0
      %v1335 = vadd.f32 %v1282, %v1334
      %v1336 = vpop.f32.mrf.mxu0
      %v1337 = vadd.f32 %v1284, %v1336
      %1338 = vmatprep.mubr.bf16.mxu0 %v748
      %1339 = vmatmul.mubr.bf16.gmra.mxu0 %v747
      %v1340 = vpop.f32.mrf.mxu0
      %v1341 = vadd.f32 %v1288, %v1340
      %v1342 = vpop.f32.mrf.mxu0
      %v1343 = vadd.f32 %v1290, %v1342
      %v1344 = vpop.f32.mrf.mxu0
      %v1345 = vadd.f32 %v1292, %v1344
      %v1346 = vpop.f32.mrf.mxu0
      %v1347 = vadd.f32 %v1294, %v1346
      %1348 = vdwg.mxu0
      %1349 = vmatprep.subr.bf16.mxu0 %v1130
      %1350 = vmatpush1.bf16.msra.mxu0 %v1129
      %1351 = vmatprep.subr.bf16.mxu0 %v1128
      %1352 = vmatpush1.bf16.msra.mxu0 %v1127
      %1353 = vmatprep.subr.bf16.mxu0 %v1126
      %1354 = vmatpush1.bf16.msra.mxu0 %v1125
      %1355 = vmatprep.subr.bf16.mxu0 %v1124
      %1356 = vmatpush1.bf16.msra.mxu0 %v1123
      %1357 = vmatprep.subr.bf16.mxu0 %v1122
      %1358 = vmatpush1.bf16.msra.mxu0 %v1121
      %1359 = vmatprep.subr.bf16.mxu0 %v1120
      %1360 = vmatpush1.bf16.msra.mxu0 %v1119
      %1361 = vmatprep.subr.bf16.mxu0 %v1118
      %1362 = vmatpush1.bf16.msra.mxu0 %v1117
      %1363 = vmatprep.subr.bf16.mxu0 %v1116
      %1364 = vmatpush1.bf16.msra.mxu0 %v1115
      %1365 = vmatprep.subr.bf16.mxu0 %v1146
      %1366 = vmatpush2.bf16.msra.mxu0 %v1145
      %1367 = vmatprep.subr.bf16.mxu0 %v1144
      %1368 = vmatpush2.bf16.msra.mxu0 %v1143
      %1369 = vmatprep.subr.bf16.mxu0 %v1142
      %1370 = vmatpush2.bf16.msra.mxu0 %v1141
      %1371 = vmatprep.subr.bf16.mxu0 %v1140
      %1372 = vmatpush2.bf16.msra.mxu0 %v1139
      %1373 = vmatprep.subr.bf16.mxu0 %v1138
      %1374 = vmatpush2.bf16.msra.mxu0 %v1137
      %1375 = vmatprep.subr.bf16.mxu0 %v1136
      %1376 = vmatpush2.bf16.msra.mxu0 %v1135
      %1377 = vmatprep.subr.bf16.mxu0 %v1134
      %1378 = vmatpush2.bf16.msra.mxu0 %v1133
      %1379 = vmatprep.subr.bf16.mxu0 %v1132
      %1380 = vmatpush2.bf16.msra.mxu0 %v1131
      %1381 = vmatprep.mubr.bf16.mxu0 %v744
      %1382 = vmatmul.mubr.bf16.gmra.mxu0 %v743
      %v1383 = vpop.f32.mrf.mxu0
      %v1384 = vadd.f32 %v1331, %v1383
      %v1385 = vpop.f32.mrf.mxu0
      %v1386 = vadd.f32 %v1333, %v1385
      %v1387 = vpop.f32.mrf.mxu0
      %v1388 = vadd.f32 %v1335, %v1387
      %v1389 = vpop.f32.mrf.mxu0
      %v1390 = vadd.f32 %v1337, %v1389
      %1391 = vmatprep.mubr.bf16.mxu0 %v750
      %1392 = vmatmul.mubr.bf16.gmra.mxu0 %v749
      %v1393 = vpop.f32.mrf.mxu0
      %v1394 = vadd.f32 %v1341, %v1393
      %v1395 = vpop.f32.mrf.mxu0
      %v1396 = vadd.f32 %v1343, %v1395
      %v1397 = vpop.f32.mrf.mxu0
      %v1398 = vadd.f32 %v1345, %v1397
      %v1399 = vpop.f32.mrf.mxu0
      %v1400 = vadd.f32 %v1347, %v1399
      %1401 = vdwg.mxu0
      %v1402 = vunpack.c.l.b16 %v390
      %v1403 = vunpack.c.h.b16 %v390
      %v1404 = vunpack.c.l.b16 %v403
      %v1405 = vunpack.c.h.b16 %v403
      %v1406 = vunpack.c.l.b16 %v416
      %v1407 = vunpack.c.h.b16 %v416
      %v1408 = vunpack.c.l.b16 %v425
      %v1409 = vunpack.c.h.b16 %v425
      %v1410 = vunpack.c.l.b16 %v434
      %v1411 = vunpack.c.h.b16 %v434
      %v1412 = vunpack.c.l.b16 %v443
      %v1413 = vunpack.c.h.b16 %v443
      %v1414 = vunpack.c.l.b16 %v456
      %v1415 = vunpack.c.h.b16 %v456
      %v1416 = vunpack.c.l.b16 %v469
      %v1417 = vunpack.c.h.b16 %v469
      %v1418 = vunpack.c.l.b16 %v482
      %v1419 = vunpack.c.h.b16 %v482
      %v1420 = vunpack.c.l.b16 %v491
      %v1421 = vunpack.c.h.b16 %v491
      %v1422 = vunpack.c.l.b16 %v500
      %v1423 = vunpack.c.h.b16 %v500
      %v1424 = vunpack.c.l.b16 %v509
      %v1425 = vunpack.c.h.b16 %v509
      %v1426 = vpack.c.b16 %v1408, %v1402
      %v1427 = vpack.c.b16 %v1409, %v1403
      %v1428 = vpack.c.b16 %v1410, %v1404
      %v1429 = vpack.c.b16 %v1411, %v1405
      %v1430 = vpack.c.b16 %v1412, %v1406
      %v1431 = vpack.c.b16 %v1413, %v1407
      %v1432 = vpack.c.b16 %v1420, %v1414
      %v1433 = vpack.c.b16 %v1421, %v1415
      %v1434 = vpack.c.b16 %v1422, %v1416
      %v1435 = vpack.c.b16 %v1423, %v1417
      %v1436 = vpack.c.b16 %v1424, %v1418
      %v1437 = vpack.c.b16 %v1425, %v1419
      %v1546 = vunpack.c.l.b16 %v510
      %v1547 = vunpack.c.h.b16 %v510
      %v1548 = vunpack.c.l.b16 %v511
      %v1549 = vunpack.c.h.b16 %v511
      %v1550 = vunpack.c.l.b16 %v512
      %v1551 = vunpack.c.h.b16 %v512
      %v1552 = vunpack.c.l.b16 %v513
      %v1553 = vunpack.c.h.b16 %v513
      %v1554 = vunpack.c.l.b16 %v514
      %v1555 = vunpack.c.h.b16 %v514
      %v1556 = vunpack.c.l.b16 %v515
      %v1557 = vunpack.c.h.b16 %v515
      %v1558 = vunpack.c.l.b16 %v516
      %v1559 = vunpack.c.h.b16 %v516
      %v1560 = vunpack.c.l.b16 %v517
      %v1561 = vunpack.c.h.b16 %v517
      %v1562 = vunpack.c.l.b16 %v518
      %v1563 = vunpack.c.h.b16 %v518
      %v1564 = vunpack.c.l.b16 %v519
      %v1565 = vunpack.c.h.b16 %v519
      %v1566 = vunpack.c.l.b16 %v520
      %v1567 = vunpack.c.h.b16 %v520
      %v1568 = vunpack.c.l.b16 %v521
      %v1569 = vunpack.c.h.b16 %v521
      %v1570 = vunpack.c.l.b16 %v522
      %v1571 = vunpack.c.h.b16 %v522
      %v1572 = vunpack.c.l.b16 %v523
      %v1573 = vunpack.c.h.b16 %v523
      %v1574 = vunpack.c.l.b16 %v524
      %v1575 = vunpack.c.h.b16 %v524
      %v1576 = vunpack.c.l.b16 %v525
      %v1577 = vunpack.c.h.b16 %v525
      %v1578 = vunpack.c.l.b16 %v526
      %v1579 = vunpack.c.h.b16 %v526
      %v1580 = vunpack.c.l.b16 %v527
      %v1581 = vunpack.c.h.b16 %v527
      %v1582 = vunpack.c.l.b16 %v528
      %v1583 = vunpack.c.h.b16 %v528
      %v1584 = vunpack.c.l.b16 %v529
      %v1585 = vunpack.c.h.b16 %v529
      %v1586 = vunpack.c.l.b16 %v530
      %v1587 = vunpack.c.h.b16 %v530
      %v1588 = vunpack.c.l.b16 %v531
      %v1589 = vunpack.c.h.b16 %v531
      %v1590 = vunpack.c.l.b16 %v532
      %v1591 = vunpack.c.h.b16 %v532
      %v1592 = vunpack.c.l.b16 %v533
      %v1593 = vunpack.c.h.b16 %v533
      %v1594 = vunpack.c.l.b16 %v534
      %v1595 = vunpack.c.h.b16 %v534
      %v1596 = vunpack.c.l.b16 %v535
      %v1597 = vunpack.c.h.b16 %v535
      %v1598 = vunpack.c.l.b16 %v536
      %v1599 = vunpack.c.h.b16 %v536
      %v1600 = vunpack.c.l.b16 %v537
      %v1601 = vunpack.c.h.b16 %v537
      %v1602 = vunpack.c.l.b16 %v538
      %v1603 = vunpack.c.h.b16 %v538
      %v1604 = vunpack.c.l.b16 %v539
      %v1605 = vunpack.c.h.b16 %v539
      %v1606 = vunpack.c.l.b16 %v540
      %v1607 = vunpack.c.h.b16 %v540
      %v1608 = vunpack.c.l.b16 %v541
      %v1609 = vunpack.c.h.b16 %v541
      %v1610 = vunpack.c.l.b16 %v542
      %v1611 = vunpack.c.h.b16 %v542
      %v1612 = vunpack.c.l.b16 %v543
      %v1613 = vunpack.c.h.b16 %v543
      %v1614 = vunpack.c.l.b16 %v544
      %v1615 = vunpack.c.h.b16 %v544
      %v1616 = vunpack.c.l.b16 %v545
      %v1617 = vunpack.c.h.b16 %v545
      %v1618 = vunpack.c.l.b16 %v546
      %v1619 = vunpack.c.h.b16 %v546
      %v1620 = vunpack.c.l.b16 %v547
      %v1621 = vunpack.c.h.b16 %v547
      %v1622 = vunpack.c.l.b16 %v548
      %v1623 = vunpack.c.h.b16 %v548
      %v1624 = vunpack.c.l.b16 %v549
      %v1625 = vunpack.c.h.b16 %v549
      %v1626 = vunpack.c.l.b16 %v550
      %v1627 = vunpack.c.h.b16 %v550
      %v1628 = vunpack.c.l.b16 %v551
      %v1629 = vunpack.c.h.b16 %v551
      %v1630 = vunpack.c.l.b16 %v552
      %v1631 = vunpack.c.h.b16 %v552
      %v1632 = vunpack.c.l.b16 %v553
      %v1633 = vunpack.c.h.b16 %v553
      %v1634 = vunpack.c.l.b16 %v554
      %v1635 = vunpack.c.h.b16 %v554
      %v1636 = vunpack.c.l.b16 %v555
      %v1637 = vunpack.c.h.b16 %v555
      %v1638 = vunpack.c.l.b16 %v556
      %v1639 = vunpack.c.h.b16 %v556
      %v1640 = vunpack.c.l.b16 %v557
      %v1641 = vunpack.c.h.b16 %v557
      %v1642 = vunpack.c.l.b16 %v558
      %v1643 = vunpack.c.h.b16 %v558
      %v1644 = vunpack.c.l.b16 %v559
      %v1645 = vunpack.c.h.b16 %v559
      %v1646 = vunpack.c.l.b16 %v560
      %v1647 = vunpack.c.h.b16 %v560
      %v1648 = vunpack.c.l.b16 %v561
      %v1649 = vunpack.c.h.b16 %v561
      %v1650 = vunpack.c.l.b16 %v562
      %v1651 = vunpack.c.h.b16 %v562
      %v1652 = vunpack.c.l.b16 %v563
      %v1653 = vunpack.c.h.b16 %v563
      %v1654 = vunpack.c.l.b16 %v564
      %v1655 = vunpack.c.h.b16 %v564
      %v1656 = vunpack.c.l.b16 %v565
      %v1657 = vunpack.c.h.b16 %v565
      %v1658 = vunpack.c.l.b16 %v566
      %v1659 = vunpack.c.h.b16 %v566
      %v1660 = vunpack.c.l.b16 %v567
      %v1661 = vunpack.c.h.b16 %v567
      %v1662 = vunpack.c.l.b16 %v568
      %v1663 = vunpack.c.h.b16 %v568
      %v1664 = vunpack.c.l.b16 %v569
      %v1665 = vunpack.c.h.b16 %v569
      %v1666 = vunpack.c.l.b16 %v570
      %v1667 = vunpack.c.h.b16 %v570
      %v1668 = vunpack.c.l.b16 %v571
      %v1669 = vunpack.c.h.b16 %v571
      %v1670 = vunpack.c.l.b16 %v572
      %v1671 = vunpack.c.h.b16 %v572
      %v1672 = vunpack.c.l.b16 %v573
      %v1673 = vunpack.c.h.b16 %v573
      %v1674 = vunpack.c.l.b16 %v574
      %v1675 = vunpack.c.h.b16 %v574
      %v1676 = vunpack.c.l.b16 %v575
      %v1677 = vunpack.c.h.b16 %v575
      %v1678 = vunpack.c.l.b16 %v576
      %v1679 = vunpack.c.h.b16 %v576
      %v1680 = vunpack.c.l.b16 %v577
      %v1681 = vunpack.c.h.b16 %v577
      %v1682 = vunpack.c.l.b16 %v578
      %v1683 = vunpack.c.h.b16 %v578
      %v1684 = vunpack.c.l.b16 %v579
      %v1685 = vunpack.c.h.b16 %v579
      %v1686 = vunpack.c.l.b16 %v580
      %v1687 = vunpack.c.h.b16 %v580
      %v1688 = vunpack.c.l.b16 %v581
      %v1689 = vunpack.c.h.b16 %v581
      %v1690 = vunpack.c.l.b16 %v582
      %v1691 = vunpack.c.h.b16 %v582
      %v1692 = vunpack.c.l.b16 %v583
      %v1693 = vunpack.c.h.b16 %v583
      %v1694 = vunpack.c.l.b16 %v584
      %v1695 = vunpack.c.h.b16 %v584
      %v1696 = vunpack.c.l.b16 %v585
      %v1697 = vunpack.c.h.b16 %v585
      %v1698 = vunpack.c.l.b16 %v586
      %v1699 = vunpack.c.h.b16 %v586
      %v1700 = vunpack.c.l.b16 %v587
      %v1701 = vunpack.c.h.b16 %v587
      %v1702 = vunpack.c.l.b16 %v588
      %v1703 = vunpack.c.h.b16 %v588
      %v1704 = vunpack.c.l.b16 %v589
      %v1705 = vunpack.c.h.b16 %v589
      %v1706 = vunpack.c.l.b16 %v590
      %v1707 = vunpack.c.h.b16 %v590
      %v1708 = vunpack.c.l.b16 %v591
      %v1709 = vunpack.c.h.b16 %v591
      %v1710 = vunpack.c.l.b16 %v592
      %v1711 = vunpack.c.h.b16 %v592
      %v1712 = vunpack.c.l.b16 %v593
      %v1713 = vunpack.c.h.b16 %v593
      %v1714 = vunpack.c.l.b16 %v594
      %v1715 = vunpack.c.h.b16 %v594
      %v1716 = vunpack.c.l.b16 %v595
      %v1717 = vunpack.c.h.b16 %v595
      %v1718 = vunpack.c.l.b16 %v596
      %v1719 = vunpack.c.h.b16 %v596
      %v1720 = vunpack.c.l.b16 %v597
      %v1721 = vunpack.c.h.b16 %v597
      %v1722 = vunpack.c.l.b16 %v598
      %v1723 = vunpack.c.h.b16 %v598
      %v1724 = vunpack.c.l.b16 %v599
      %v1725 = vunpack.c.h.b16 %v599
      %v1726 = vunpack.c.l.b16 %v600
      %v1727 = vunpack.c.h.b16 %v600
      %v1728 = vunpack.c.l.b16 %v601
      %v1729 = vunpack.c.h.b16 %v601
      %v1730 = vunpack.c.l.b16 %v602
      %v1731 = vunpack.c.h.b16 %v602
      %v1732 = vunpack.c.l.b16 %v603
      %v1733 = vunpack.c.h.b16 %v603
      %v1734 = vunpack.c.l.b16 %v604
      %v1735 = vunpack.c.h.b16 %v604
      %v1736 = vunpack.c.l.b16 %v605
      %v1737 = vunpack.c.h.b16 %v605
      %v1738 = vpack.c.b16 %v1548, %v1546
      %v1739 = vpack.c.b16 %v1549, %v1547
      %v1740 = vpack.c.b16 %v1552, %v1550
      %v1741 = vpack.c.b16 %v1553, %v1551
      %v1742 = vpack.c.b16 %v1556, %v1554
      %v1743 = vpack.c.b16 %v1557, %v1555
      %v1744 = vpack.c.b16 %v1560, %v1558
      %v1745 = vpack.c.b16 %v1561, %v1559
      %v1746 = vpack.c.b16 %v1564, %v1562
      %v1747 = vpack.c.b16 %v1565, %v1563
      %v1748 = vpack.c.b16 %v1568, %v1566
      %v1749 = vpack.c.b16 %v1569, %v1567
      %v1750 = vpack.c.b16 %v1572, %v1570
      %v1751 = vpack.c.b16 %v1573, %v1571
      %v1752 = vpack.c.b16 %v1576, %v1574
      %v1753 = vpack.c.b16 %v1577, %v1575
      %v1754 = vpack.c.b16 %v1580, %v1578
      %v1755 = vpack.c.b16 %v1581, %v1579
      %v1756 = vpack.c.b16 %v1584, %v1582
      %v1757 = vpack.c.b16 %v1585, %v1583
      %v1758 = vpack.c.b16 %v1588, %v1586
      %v1759 = vpack.c.b16 %v1589, %v1587
      %v1760 = vpack.c.b16 %v1592, %v1590
      %v1761 = vpack.c.b16 %v1593, %v1591
      %v1762 = vpack.c.b16 %v1596, %v1594
      %v1763 = vpack.c.b16 %v1597, %v1595
      %v1764 = vpack.c.b16 %v1600, %v1598
      %v1765 = vpack.c.b16 %v1601, %v1599
      %v1766 = vpack.c.b16 %v1604, %v1602
      %v1767 = vpack.c.b16 %v1605, %v1603
      %v1768 = vpack.c.b16 %v1608, %v1606
      %v1769 = vpack.c.b16 %v1609, %v1607
      %v1770 = vpack.c.b16 %v1612, %v1610
      %v1771 = vpack.c.b16 %v1613, %v1611
      %v1772 = vpack.c.b16 %v1616, %v1614
      %v1773 = vpack.c.b16 %v1617, %v1615
      %v1774 = vpack.c.b16 %v1620, %v1618
      %v1775 = vpack.c.b16 %v1621, %v1619
      %v1776 = vpack.c.b16 %v1624, %v1622
      %v1777 = vpack.c.b16 %v1625, %v1623
      %v1778 = vpack.c.b16 %v1628, %v1626
      %v1779 = vpack.c.b16 %v1629, %v1627
      %v1780 = vpack.c.b16 %v1632, %v1630
      %v1781 = vpack.c.b16 %v1633, %v1631
      %v1782 = vpack.c.b16 %v1636, %v1634
      %v1783 = vpack.c.b16 %v1637, %v1635
      %v1784 = vpack.c.b16 %v1640, %v1638
      %v1785 = vpack.c.b16 %v1641, %v1639
      %v1786 = vpack.c.b16 %v1644, %v1642
      %v1787 = vpack.c.b16 %v1645, %v1643
      %v1788 = vpack.c.b16 %v1648, %v1646
      %v1789 = vpack.c.b16 %v1649, %v1647
      %v1790 = vpack.c.b16 %v1652, %v1650
      %v1791 = vpack.c.b16 %v1653, %v1651
      %v1792 = vpack.c.b16 %v1656, %v1654
      %v1793 = vpack.c.b16 %v1657, %v1655
      %v1794 = vpack.c.b16 %v1660, %v1658
      %v1795 = vpack.c.b16 %v1661, %v1659
      %v1796 = vpack.c.b16 %v1664, %v1662
      %v1797 = vpack.c.b16 %v1665, %v1663
      %v1798 = vpack.c.b16 %v1668, %v1666
      %v1799 = vpack.c.b16 %v1669, %v1667
      %v1800 = vpack.c.b16 %v1672, %v1670
      %v1801 = vpack.c.b16 %v1673, %v1671
      %v1802 = vpack.c.b16 %v1676, %v1674
      %v1803 = vpack.c.b16 %v1677, %v1675
      %v1804 = vpack.c.b16 %v1680, %v1678
      %v1805 = vpack.c.b16 %v1681, %v1679
      %v1806 = vpack.c.b16 %v1684, %v1682
      %v1807 = vpack.c.b16 %v1685, %v1683
      %v1808 = vpack.c.b16 %v1688, %v1686
      %v1809 = vpack.c.b16 %v1689, %v1687
      %v1810 = vpack.c.b16 %v1692, %v1690
      %v1811 = vpack.c.b16 %v1693, %v1691
      %v1812 = vpack.c.b16 %v1696, %v1694
      %v1813 = vpack.c.b16 %v1697, %v1695
      %v1814 = vpack.c.b16 %v1700, %v1698
      %v1815 = vpack.c.b16 %v1701, %v1699
      %v1816 = vpack.c.b16 %v1704, %v1702
      %v1817 = vpack.c.b16 %v1705, %v1703
      %v1818 = vpack.c.b16 %v1708, %v1706
      %v1819 = vpack.c.b16 %v1709, %v1707
      %v1820 = vpack.c.b16 %v1712, %v1710
      %v1821 = vpack.c.b16 %v1713, %v1711
      %v1822 = vpack.c.b16 %v1716, %v1714
      %v1823 = vpack.c.b16 %v1717, %v1715
      %v1824 = vpack.c.b16 %v1720, %v1718
      %v1825 = vpack.c.b16 %v1721, %v1719
      %v1826 = vpack.c.b16 %v1724, %v1722
      %v1827 = vpack.c.b16 %v1725, %v1723
      %v1828 = vpack.c.b16 %v1728, %v1726
      %v1829 = vpack.c.b16 %v1729, %v1727
      %v1830 = vpack.c.b16 %v1732, %v1730
      %v1831 = vpack.c.b16 %v1733, %v1731
      %v1832 = vpack.c.b16 %v1736, %v1734
      %v1833 = vpack.c.b16 %v1737, %v1735
      %1930 = vmatprep.subr.bf16.mxu0 %v1753
      %1931 = vmatpush1.bf16.msra.mxu0 %v1752
      %1932 = vmatprep.subr.bf16.mxu0 %v1751
      %1933 = vmatpush1.bf16.msra.mxu0 %v1750
      %1934 = vmatprep.subr.bf16.mxu0 %v1749
      %1935 = vmatpush1.bf16.msra.mxu0 %v1748
      %1936 = vmatprep.subr.bf16.mxu0 %v1747
      %1937 = vmatpush1.bf16.msra.mxu0 %v1746
      %1938 = vmatprep.subr.bf16.mxu0 %v1745
      %1939 = vmatpush1.bf16.msra.mxu0 %v1744
      %1940 = vmatprep.subr.bf16.mxu0 %v1743
      %1941 = vmatpush1.bf16.msra.mxu0 %v1742
      %1942 = vmatprep.subr.bf16.mxu0 %v1741
      %1943 = vmatpush1.bf16.msra.mxu0 %v1740
      %1944 = vmatprep.subr.bf16.mxu0 %v1739
      %1945 = vmatpush1.bf16.msra.mxu0 %v1738
      %1946 = vmatprep.subr.bf16.mxu0 %v1769
      %1947 = vmatpush2.bf16.msra.mxu0 %v1768
      %1948 = vmatprep.subr.bf16.mxu0 %v1767
      %1949 = vmatpush2.bf16.msra.mxu0 %v1766
      %1950 = vmatprep.subr.bf16.mxu0 %v1765
      %1951 = vmatpush2.bf16.msra.mxu0 %v1764
      %1952 = vmatprep.subr.bf16.mxu0 %v1763
      %1953 = vmatpush2.bf16.msra.mxu0 %v1762
      %1954 = vmatprep.subr.bf16.mxu0 %v1761
      %1955 = vmatpush2.bf16.msra.mxu0 %v1760
      %1956 = vmatprep.subr.bf16.mxu0 %v1759
      %1957 = vmatpush2.bf16.msra.mxu0 %v1758
      %1958 = vmatprep.subr.bf16.mxu0 %v1757
      %1959 = vmatpush2.bf16.msra.mxu0 %v1756
      %1960 = vmatprep.subr.bf16.mxu0 %v1755
      %1961 = vmatpush2.bf16.msra.mxu0 %v1754
      %1962 = vmatprep.mubr.bf16.mxu0 %v1427
      %1963 = vmatmul.mubr.bf16.gmra.mxu0 %v1426
      %v1964 = vpop.f32.mrf.mxu0
      %v1965 = vadd.f32 %v1384, %v1964
      %v1966 = vpop.f32.mrf.mxu0
      %v1967 = vadd.f32 %v1386, %v1966
      %v1968 = vpop.f32.mrf.mxu0
      %v1969 = vadd.f32 %v1388, %v1968
      %v1970 = vpop.f32.mrf.mxu0
      %v1971 = vadd.f32 %v1390, %v1970
      %1972 = vmatprep.mubr.bf16.mxu0 %v1433
      %1973 = vmatmul.mubr.bf16.gmra.mxu0 %v1432
      %v1974 = vpop.f32.mrf.mxu0
      %v1975 = vadd.f32 %v1394, %v1974
      %v1976 = vpop.f32.mrf.mxu0
      %v1977 = vadd.f32 %v1396, %v1976
      %v1978 = vpop.f32.mrf.mxu0
      %v1979 = vadd.f32 %v1398, %v1978
      %v1980 = vpop.f32.mrf.mxu0
      %v1981 = vadd.f32 %v1400, %v1980
      %1982 = vdwg.mxu0
      %1983 = vmatprep.subr.bf16.mxu0 %v1785
      %1984 = vmatpush1.bf16.msra.mxu0 %v1784
      %1985 = vmatprep.subr.bf16.mxu0 %v1783
      %1986 = vmatpush1.bf16.msra.mxu0 %v1782
      %1987 = vmatprep.subr.bf16.mxu0 %v1781
      %1988 = vmatpush1.bf16.msra.mxu0 %v1780
      %1989 = vmatprep.subr.bf16.mxu0 %v1779
      %1990 = vmatpush1.bf16.msra.mxu0 %v1778
      %1991 = vmatprep.subr.bf16.mxu0 %v1777
      %1992 = vmatpush1.bf16.msra.mxu0 %v1776
      %1993 = vmatprep.subr.bf16.mxu0 %v1775
      %1994 = vmatpush1.bf16.msra.mxu0 %v1774
      %1995 = vmatprep.subr.bf16.mxu0 %v1773
      %1996 = vmatpush1.bf16.msra.mxu0 %v1772
      %1997 = vmatprep.subr.bf16.mxu0 %v1771
      %1998 = vmatpush1.bf16.msra.mxu0 %v1770
      %1999 = vmatprep.subr.bf16.mxu0 %v1801
      %2000 = vmatpush2.bf16.msra.mxu0 %v1800
      %2001 = vmatprep.subr.bf16.mxu0 %v1799
      %2002 = vmatpush2.bf16.msra.mxu0 %v1798
      %2003 = vmatprep.subr.bf16.mxu0 %v1797
      %2004 = vmatpush2.bf16.msra.mxu0 %v1796
      %2005 = vmatprep.subr.bf16.mxu0 %v1795
      %2006 = vmatpush2.bf16.msra.mxu0 %v1794
      %2007 = vmatprep.subr.bf16.mxu0 %v1793
      %2008 = vmatpush2.bf16.msra.mxu0 %v1792
      %2009 = vmatprep.subr.bf16.mxu0 %v1791
      %2010 = vmatpush2.bf16.msra.mxu0 %v1790
      %2011 = vmatprep.subr.bf16.mxu0 %v1789
      %2012 = vmatpush2.bf16.msra.mxu0 %v1788
      %2013 = vmatprep.subr.bf16.mxu0 %v1787
      %2014 = vmatpush2.bf16.msra.mxu0 %v1786
      %2015 = vmatprep.mubr.bf16.mxu0 %v1429
      %2016 = vmatmul.mubr.bf16.gmra.mxu0 %v1428
      %v2017 = vpop.f32.mrf.mxu0
      %v2018 = vadd.f32 %v1965, %v2017
      %v2019 = vpop.f32.mrf.mxu0
      %v2020 = vadd.f32 %v1967, %v2019
      %v2021 = vpop.f32.mrf.mxu0
      %v2022 = vadd.f32 %v1969, %v2021
      %v2023 = vpop.f32.mrf.mxu0
      %v2024 = vadd.f32 %v1971, %v2023
      %2025 = vmatprep.mubr.bf16.mxu0 %v1435
      %2026 = vmatmul.mubr.bf16.gmra.mxu0 %v1434
      %v2027 = vpop.f32.mrf.mxu0
      %v2028 = vadd.f32 %v1975, %v2027
      %v2029 = vpop.f32.mrf.mxu0
      %v2030 = vadd.f32 %v1977, %v2029
      %v2031 = vpop.f32.mrf.mxu0
      %v2032 = vadd.f32 %v1979, %v2031
      %v2033 = vpop.f32.mrf.mxu0
      %v2034 = vadd.f32 %v1981, %v2033
      %2035 = vdwg.mxu0
      %2036 = vmatprep.subr.bf16.mxu0 %v1817
      %2037 = vmatpush1.bf16.msra.mxu0 %v1816
      %2038 = vmatprep.subr.bf16.mxu0 %v1815
      %2039 = vmatpush1.bf16.msra.mxu0 %v1814
      %2040 = vmatprep.subr.bf16.mxu0 %v1813
      %2041 = vmatpush1.bf16.msra.mxu0 %v1812
      %2042 = vmatprep.subr.bf16.mxu0 %v1811
      %2043 = vmatpush1.bf16.msra.mxu0 %v1810
      %2044 = vmatprep.subr.bf16.mxu0 %v1809
      %2045 = vmatpush1.bf16.msra.mxu0 %v1808
      %2046 = vmatprep.subr.bf16.mxu0 %v1807
      %2047 = vmatpush1.bf16.msra.mxu0 %v1806
      %2048 = vmatprep.subr.bf16.mxu0 %v1805
      %2049 = vmatpush1.bf16.msra.mxu0 %v1804
      %2050 = vmatprep.subr.bf16.mxu0 %v1803
      %2051 = vmatpush1.bf16.msra.mxu0 %v1802
      %2052 = vmatprep.subr.bf16.mxu0 %v1833
      %2053 = vmatpush2.bf16.msra.mxu0 %v1832
      %2054 = vmatprep.subr.bf16.mxu0 %v1831
      %2055 = vmatpush2.bf16.msra.mxu0 %v1830
      %2056 = vmatprep.subr.bf16.mxu0 %v1829
      %2057 = vmatpush2.bf16.msra.mxu0 %v1828
      %2058 = vmatprep.subr.bf16.mxu0 %v1827
      %2059 = vmatpush2.bf16.msra.mxu0 %v1826
      %2060 = vmatprep.subr.bf16.mxu0 %v1825
      %2061 = vmatpush2.bf16.msra.mxu0 %v1824
      %2062 = vmatprep.subr.bf16.mxu0 %v1823
      %2063 = vmatpush2.bf16.msra.mxu0 %v1822
      %2064 = vmatprep.subr.bf16.mxu0 %v1821
      %2065 = vmatpush2.bf16.msra.mxu0 %v1820
      %2066 = vmatprep.subr.bf16.mxu0 %v1819
      %2067 = vmatpush2.bf16.msra.mxu0 %v1818
      %2068 = vmatprep.mubr.bf16.mxu0 %v1431
      %2069 = vmatmul.mubr.bf16.gmra.mxu0 %v1430
      %v2070 = vpop.f32.mrf.mxu0
      %v2071 = vadd.f32 %v2018, %v2070
      %v2072 = vpop.f32.mrf.mxu0
      %v2073 = vadd.f32 %v2020, %v2072
      %v2074 = vpop.f32.mrf.mxu0
      %v2075 = vadd.f32 %v2022, %v2074
      %v2076 = vpop.f32.mrf.mxu0
      %v2077 = vadd.f32 %v2024, %v2076
      %2078 = vmatprep.mubr.bf16.mxu0 %v1437
      %2079 = vmatmul.mubr.bf16.gmra.mxu0 %v1436
      %v2080 = vpop.f32.mrf.mxu0
      %v2081 = vadd.f32 %v2028, %v2080
      %v2082 = vpop.f32.mrf.mxu0
      %v2083 = vadd.f32 %v2030, %v2082
      %v2084 = vpop.f32.mrf.mxu0
      %v2085 = vadd.f32 %v2032, %v2084
      %v2086 = vpop.f32.mrf.mxu0
      %v2087 = vadd.f32 %v2034, %v2086
      %2088 = vdwg.mxu0
      %v2089 = vld [vmem:[#allocation3 + $0x18] sm:$0xff]
      %v2090 = vld [vmem:[#allocation3 + $0x20] sm:$0xff]
      %v2091 = vld [vmem:[#allocation3 + $0x28] sm:$0xff]
      %v2092 = vld [vmem:[#allocation3 + $0x30] sm:$0xff]
      %v2093 = vld [vmem:[#allocation3 + $0x38] sm:$0xff]
      %v2094 = vld [vmem:[#allocation3 + $0x40] sm:$0xff]
      %v2095 = vld [vmem:[#allocation3 + $0x48] sm:$0x11]
      %v2096 = vld [vmem:[#allocation3 + $0x50] sm:$0x11]
      %v2097 = vld [vmem:[#allocation3 + $0x58] sm:$0x11]
      %v2098 = vld [vmem:[#allocation3 + $0x78] sm:$0xff]
      %v2099 = vld [vmem:[#allocation3 + $0x80] sm:$0xff]
      %v2100 = vld [vmem:[#allocation3 + $0x88] sm:$0xff]
      %v2101 = vld [vmem:[#allocation3 + $0x90] sm:$0xff]
      %v2102 = vld [vmem:[#allocation3 + $0x98] sm:$0xff]
      %v2103 = vld [vmem:[#allocation3 + $0xa0] sm:$0xff]
      %v2104 = vld [vmem:[#allocation3 + $0xa8] sm:$0x11]
      %v2105 = vld [vmem:[#allocation3 + $0xb0] sm:$0x11]
      %v2106 = vld [vmem:[#allocation3 + $0xb8] sm:$0x11]
      %vm2107 = vsmask.f32 3328
      %vm2108 = vsmask.f32 7440
      %vm2109 = vmor %vm2107, %vm2108
      %v2111 = vshrl.u32 %v2089, 16
      %v2113 = vrot.slane %v2111, 4
      %v2114 = vshll.u32 %v2089, 16
      %v2116 = vrot.slane %v2114, 5
      %v2117 = vor.u32 %v2113, %v2116
      %v2118 = vrot.slane %v2117, 4
      %v2120 = vshll.u32 %v2092, 16
      %v2122 = vrot.slane %v2120, 5
      %v2123 = vsel %vm2109, %v2118, %v2122
      %v2125 = vshrl.u32 %v2090, 16
      %v2127 = vrot.slane %v2125, 4
      %v2128 = vshll.u32 %v2090, 16
      %v2130 = vrot.slane %v2128, 5
      %v2131 = vor.u32 %v2127, %v2130
      %v2132 = vrot.slane %v2131, 4
      %v2134 = vshll.u32 %v2093, 16
      %v2136 = vrot.slane %v2134, 5
      %v2137 = vsel %vm2109, %v2132, %v2136
      %v2139 = vshrl.u32 %v2091, 16
      %v2141 = vrot.slane %v2139, 4
      %v2142 = vshll.u32 %v2091, 16
      %v2144 = vrot.slane %v2142, 5
      %v2145 = vor.u32 %v2141, %v2144
      %v2146 = vrot.slane %v2145, 4
      %v2148 = vshll.u32 %v2094, 16
      %v2150 = vrot.slane %v2148, 5
      %v2151 = vsel %vm2109, %v2146, %v2150
      %v2152 = vshrl.u32 %v2092, 16
      %v2154 = vrot.slane %v2152, 4
      %v2155 = vor.u32 %v2154, %v2122
      %v2156 = vrot.slane %v2155, 4
      %v2158 = vshll.u32 %v2095, 16
      %v2160 = vrot.slane %v2158, 5
      %v2161 = vsel %vm2109, %v2156, %v2160
      %v2162 = vshrl.u32 %v2093, 16
      %v2164 = vrot.slane %v2162, 4
      %v2165 = vor.u32 %v2164, %v2136
      %v2166 = vrot.slane %v2165, 4
      %v2168 = vshll.u32 %v2096, 16
      %v2170 = vrot.slane %v2168, 5
      %v2171 = vsel %vm2109, %v2166, %v2170
      %v2172 = vshrl.u32 %v2094, 16
      %v2174 = vrot.slane %v2172, 4
      %v2175 = vor.u32 %v2174, %v2150
      %v2176 = vrot.slane %v2175, 4
      %v2178 = vshll.u32 %v2097, 16
      %v2180 = vrot.slane %v2178, 5
      %v2181 = vsel %vm2109, %v2176, %v2180
      %v2183 = vshrl.u32 %v2098, 16
      %v2185 = vrot.slane %v2183, 4
      %v2186 = vshll.u32 %v2098, 16
      %v2188 = vrot.slane %v2186, 5
      %v2189 = vor.u32 %v2185, %v2188
      %v2190 = vrot.slane %v2189, 4
      %v2192 = vshll.u32 %v2101, 16
      %v2194 = vrot.slane %v2192, 5
      %v2195 = vsel %vm2109, %v2190, %v2194
      %v2197 = vshrl.u32 %v2099, 16
      %v2199 = vrot.slane %v2197, 4
      %v2200 = vshll.u32 %v2099, 16
      %v2202 = vrot.slane %v2200, 5
      %v2203 = vor.u32 %v2199, %v2202
      %v2204 = vrot.slane %v2203, 4
      %v2206 = vshll.u32 %v2102, 16
      %v2208 = vrot.slane %v2206, 5
      %v2209 = vsel %vm2109, %v2204, %v2208
      %v2211 = vshrl.u32 %v2100, 16
      %v2213 = vrot.slane %v2211, 4
      %v2214 = vshll.u32 %v2100, 16
      %v2216 = vrot.slane %v2214, 5
      %v2217 = vor.u32 %v2213, %v2216
      %v2218 = vrot.slane %v2217, 4
      %v2220 = vshll.u32 %v2103, 16
      %v2222 = vrot.slane %v2220, 5
      %v2223 = vsel %vm2109, %v2218, %v2222
      %v2224 = vshrl.u32 %v2101, 16
      %v2226 = vrot.slane %v2224, 4
      %v2227 = vor.u32 %v2226, %v2194
      %v2228 = vrot.slane %v2227, 4
      %v2230 = vshll.u32 %v2104, 16
      %v2232 = vrot.slane %v2230, 5
      %v2233 = vsel %vm2109, %v2228, %v2232
      %v2234 = vshrl.u32 %v2102, 16
      %v2236 = vrot.slane %v2234, 4
      %v2237 = vor.u32 %v2236, %v2208
      %v2238 = vrot.slane %v2237, 4
      %v2240 = vshll.u32 %v2105, 16
      %v2242 = vrot.slane %v2240, 5
      %v2243 = vsel %vm2109, %v2238, %v2242
      %v2244 = vshrl.u32 %v2103, 16
      %v2246 = vrot.slane %v2244, 4
      %v2247 = vor.u32 %v2246, %v2222
      %v2248 = vrot.slane %v2247, 4
      %v2250 = vshll.u32 %v2106, 16
      %v2252 = vrot.slane %v2250, 5
      %v2253 = vsel %vm2109, %v2248, %v2252
      %s2254 = scalar_lea.vmem %s1, 1536
      %v2255 = vld [vmem:[%s2254] sm:$0xff]
      %v2256 = vld [vmem:[%s2254 + $0x8] sm:$0xff]
      %v2257 = vld [vmem:[%s2254 + $0x10] sm:$0xff]
      %v2258 = vld [vmem:[%s2254 + $0x18] sm:$0xff]
      %v2259 = vld [vmem:[%s2254 + $0x20] sm:$0xff]
      %v2260 = vld [vmem:[%s2254 + $0x28] sm:$0xff]
      %v2261 = vld [vmem:[%s2254 + $0x30] sm:$0xff]
      %v2262 = vld [vmem:[%s2254 + $0x38] sm:$0xff]
      %v2263 = vld [vmem:[%s2254 + $0x40] sm:$0xff]
      %v2264 = vld [vmem:[%s2254 + $0x48] sm:$0xff]
      %v2265 = vld [vmem:[%s2254 + $0x50] sm:$0xff]
      %v2266 = vld [vmem:[%s2254 + $0x58] sm:$0xff]
      %v2267 = vld [vmem:[%s2254 + $0x60] sm:$0xff]
      %v2268 = vld [vmem:[%s2254 + $0x68] sm:$0xff]
      %v2269 = vld [vmem:[%s2254 + $0x70] sm:$0xff]
      %v2270 = vld [vmem:[%s2254 + $0x78] sm:$0xff]
      %v2271 = vld [vmem:[%s2254 + $0x80] sm:$0xff]
      %v2272 = vld [vmem:[%s2254 + $0x88] sm:$0xff]
      %v2273 = vld [vmem:[%s2254 + $0x90] sm:$0xff]
      %v2274 = vld [vmem:[%s2254 + $0x98] sm:$0xff]
      %v2275 = vld [vmem:[%s2254 + $0xa0] sm:$0xff]
      %v2276 = vld [vmem:[%s2254 + $0xa8] sm:$0xff]
      %v2277 = vld [vmem:[%s2254 + $0xb0] sm:$0xff]
      %v2278 = vld [vmem:[%s2254 + $0xb8] sm:$0xff]
      %v2279 = vld [vmem:[%s2254 + $0xc0] sm:$0xff]
      %v2280 = vld [vmem:[%s2254 + $0xc8] sm:$0xff]
      %v2281 = vld [vmem:[%s2254 + $0xd0] sm:$0xff]
      %v2282 = vld [vmem:[%s2254 + $0xd8] sm:$0xff]
      %v2283 = vld [vmem:[%s2254 + $0xe0] sm:$0xff]
      %v2284 = vld [vmem:[%s2254 + $0xe8] sm:$0xff]
      %v2285 = vld [vmem:[%s2254 + $0xf0] sm:$0xff]
      %v2286 = vld [vmem:[%s2254 + $0xf8] sm:$0xff]
      %v2287 = vld [vmem:[%s2254 + $0x100] sm:$0xff]
      %v2288 = vld [vmem:[%s2254 + $0x108] sm:$0xff]
      %v2289 = vld [vmem:[%s2254 + $0x110] sm:$0xff]
      %v2290 = vld [vmem:[%s2254 + $0x118] sm:$0xff]
      %v2291 = vld [vmem:[%s2254 + $0x120] sm:$0xff]
      %v2292 = vld [vmem:[%s2254 + $0x128] sm:$0xff]
      %v2293 = vld [vmem:[%s2254 + $0x130] sm:$0xff]
      %v2294 = vld [vmem:[%s2254 + $0x138] sm:$0xff]
      %v2295 = vld [vmem:[%s2254 + $0x140] sm:$0xff]
      %v2296 = vld [vmem:[%s2254 + $0x148] sm:$0xff]
      %v2297 = vld [vmem:[%s2254 + $0x150] sm:$0xff]
      %v2298 = vld [vmem:[%s2254 + $0x158] sm:$0xff]
      %v2299 = vld [vmem:[%s2254 + $0x160] sm:$0xff]
      %v2300 = vld [vmem:[%s2254 + $0x168] sm:$0xff]
      %v2301 = vld [vmem:[%s2254 + $0x170] sm:$0xff]
      %v2302 = vld [vmem:[%s2254 + $0x178] sm:$0xff]
      %v2303 = vld [vmem:[%s2254 + $0x180] sm:$0xff]
      %v2304 = vld [vmem:[%s2254 + $0x188] sm:$0xff]
      %v2305 = vld [vmem:[%s2254 + $0x190] sm:$0xff]
      %v2306 = vld [vmem:[%s2254 + $0x198] sm:$0xff]
      %v2307 = vld [vmem:[%s2254 + $0x1a0] sm:$0xff]
      %v2308 = vld [vmem:[%s2254 + $0x1a8] sm:$0xff]
      %v2309 = vld [vmem:[%s2254 + $0x1b0] sm:$0xff]
      %v2310 = vld [vmem:[%s2254 + $0x1b8] sm:$0xff]
      %v2311 = vld [vmem:[%s2254 + $0x1c0] sm:$0xff]
      %v2312 = vld [vmem:[%s2254 + $0x1c8] sm:$0xff]
      %v2313 = vld [vmem:[%s2254 + $0x1d0] sm:$0xff]
      %v2314 = vld [vmem:[%s2254 + $0x1d8] sm:$0xff]
      %v2315 = vld [vmem:[%s2254 + $0x1e0] sm:$0xff]
      %v2316 = vld [vmem:[%s2254 + $0x1e8] sm:$0xff]
      %v2317 = vld [vmem:[%s2254 + $0x1f0] sm:$0xff]
      %v2318 = vld [vmem:[%s2254 + $0x1f8] sm:$0xff]
      %v2319 = vld [vmem:[%s2254 + $0x200] sm:$0xff]
      %v2320 = vld [vmem:[%s2254 + $0x208] sm:$0xff]
      %v2321 = vld [vmem:[%s2254 + $0x210] sm:$0xff]
      %v2322 = vld [vmem:[%s2254 + $0x218] sm:$0xff]
      %v2323 = vld [vmem:[%s2254 + $0x220] sm:$0xff]
      %v2324 = vld [vmem:[%s2254 + $0x228] sm:$0xff]
      %v2325 = vld [vmem:[%s2254 + $0x230] sm:$0xff]
      %v2326 = vld [vmem:[%s2254 + $0x238] sm:$0xff]
      %v2327 = vld [vmem:[%s2254 + $0x240] sm:$0xff]
      %v2328 = vld [vmem:[%s2254 + $0x248] sm:$0xff]
      %v2329 = vld [vmem:[%s2254 + $0x250] sm:$0xff]
      %v2330 = vld [vmem:[%s2254 + $0x258] sm:$0xff]
      %v2331 = vld [vmem:[%s2254 + $0x260] sm:$0xff]
      %v2332 = vld [vmem:[%s2254 + $0x268] sm:$0xff]
      %v2333 = vld [vmem:[%s2254 + $0x270] sm:$0xff]
      %v2334 = vld [vmem:[%s2254 + $0x278] sm:$0xff]
      %v2335 = vld [vmem:[%s2254 + $0x280] sm:$0xff]
      %v2336 = vld [vmem:[%s2254 + $0x288] sm:$0xff]
      %v2337 = vld [vmem:[%s2254 + $0x290] sm:$0xff]
      %v2338 = vld [vmem:[%s2254 + $0x298] sm:$0xff]
      %v2339 = vld [vmem:[%s2254 + $0x2a0] sm:$0xff]
      %v2340 = vld [vmem:[%s2254 + $0x2a8] sm:$0xff]
      %v2341 = vld [vmem:[%s2254 + $0x2b0] sm:$0xff]
      %v2342 = vld [vmem:[%s2254 + $0x2b8] sm:$0xff]
      %v2343 = vld [vmem:[%s2254 + $0x2c0] sm:$0xff]
      %v2344 = vld [vmem:[%s2254 + $0x2c8] sm:$0xff]
      %v2345 = vld [vmem:[%s2254 + $0x2d0] sm:$0xff]
      %v2346 = vld [vmem:[%s2254 + $0x2d8] sm:$0xff]
      %v2347 = vld [vmem:[%s2254 + $0x2e0] sm:$0xff]
      %v2348 = vld [vmem:[%s2254 + $0x2e8] sm:$0xff]
      %v2349 = vld [vmem:[%s2254 + $0x2f0] sm:$0xff]
      %v2350 = vld [vmem:[%s2254 + $0x2f8] sm:$0xff]
      %v2351 = vunpack.c.l.b16 %v2123
      %v2352 = vunpack.c.h.b16 %v2123
      %v2353 = vunpack.c.l.b16 %v2137
      %v2354 = vunpack.c.h.b16 %v2137
      %v2355 = vunpack.c.l.b16 %v2151
      %v2356 = vunpack.c.h.b16 %v2151
      %v2357 = vunpack.c.l.b16 %v2161
      %v2358 = vunpack.c.h.b16 %v2161
      %v2359 = vunpack.c.l.b16 %v2171
      %v2360 = vunpack.c.h.b16 %v2171
      %v2361 = vunpack.c.l.b16 %v2181
      %v2362 = vunpack.c.h.b16 %v2181
      %v2363 = vunpack.c.l.b16 %v2195
      %v2364 = vunpack.c.h.b16 %v2195
      %v2365 = vunpack.c.l.b16 %v2209
      %v2366 = vunpack.c.h.b16 %v2209
      %v2367 = vunpack.c.l.b16 %v2223
      %v2368 = vunpack.c.h.b16 %v2223
      %v2369 = vunpack.c.l.b16 %v2233
      %v2370 = vunpack.c.h.b16 %v2233
      %v2371 = vunpack.c.l.b16 %v2243
      %v2372 = vunpack.c.h.b16 %v2243
      %v2373 = vunpack.c.l.b16 %v2253
      %v2374 = vunpack.c.h.b16 %v2253
      %v2375 = vpack.c.b16 %v2357, %v2351
      %v2376 = vpack.c.b16 %v2358, %v2352
      %v2377 = vpack.c.b16 %v2359, %v2353
      %v2378 = vpack.c.b16 %v2360, %v2354
      %v2379 = vpack.c.b16 %v2361, %v2355
      %v2380 = vpack.c.b16 %v2362, %v2356
      %v2381 = vpack.c.b16 %v2369, %v2363
      %v2382 = vpack.c.b16 %v2370, %v2364
      %v2383 = vpack.c.b16 %v2371, %v2365
      %v2384 = vpack.c.b16 %v2372, %v2366
      %v2385 = vpack.c.b16 %v2373, %v2367
      %v2386 = vpack.c.b16 %v2374, %v2368
      %v2495 = vunpack.c.l.b16 %v2255
      %v2496 = vunpack.c.h.b16 %v2255
      %v2497 = vunpack.c.l.b16 %v2256
      %v2498 = vunpack.c.h.b16 %v2256
      %v2499 = vunpack.c.l.b16 %v2257
      %v2500 = vunpack.c.h.b16 %v2257
      %v2501 = vunpack.c.l.b16 %v2258
      %v2502 = vunpack.c.h.b16 %v2258
      %v2503 = vunpack.c.l.b16 %v2259
      %v2504 = vunpack.c.h.b16 %v2259
      %v2505 = vunpack.c.l.b16 %v2260
      %v2506 = vunpack.c.h.b16 %v2260
      %v2507 = vunpack.c.l.b16 %v2261
      %v2508 = vunpack.c.h.b16 %v2261
      %v2509 = vunpack.c.l.b16 %v2262
      %v2510 = vunpack.c.h.b16 %v2262
      %v2511 = vunpack.c.l.b16 %v2263
      %v2512 = vunpack.c.h.b16 %v2263
      %v2513 = vunpack.c.l.b16 %v2264
      %v2514 = vunpack.c.h.b16 %v2264
      %v2515 = vunpack.c.l.b16 %v2265
      %v2516 = vunpack.c.h.b16 %v2265
      %v2517 = vunpack.c.l.b16 %v2266
      %v2518 = vunpack.c.h.b16 %v2266
      %v2519 = vunpack.c.l.b16 %v2267
      %v2520 = vunpack.c.h.b16 %v2267
      %v2521 = vunpack.c.l.b16 %v2268
      %v2522 = vunpack.c.h.b16 %v2268
      %v2523 = vunpack.c.l.b16 %v2269
      %v2524 = vunpack.c.h.b16 %v2269
      %v2525 = vunpack.c.l.b16 %v2270
      %v2526 = vunpack.c.h.b16 %v2270
      %v2527 = vunpack.c.l.b16 %v2271
      %v2528 = vunpack.c.h.b16 %v2271
      %v2529 = vunpack.c.l.b16 %v2272
      %v2530 = vunpack.c.h.b16 %v2272
      %v2531 = vunpack.c.l.b16 %v2273
      %v2532 = vunpack.c.h.b16 %v2273
      %v2533 = vunpack.c.l.b16 %v2274
      %v2534 = vunpack.c.h.b16 %v2274
      %v2535 = vunpack.c.l.b16 %v2275
      %v2536 = vunpack.c.h.b16 %v2275
      %v2537 = vunpack.c.l.b16 %v2276
      %v2538 = vunpack.c.h.b16 %v2276
      %v2539 = vunpack.c.l.b16 %v2277
      %v2540 = vunpack.c.h.b16 %v2277
      %v2541 = vunpack.c.l.b16 %v2278
      %v2542 = vunpack.c.h.b16 %v2278
      %v2543 = vunpack.c.l.b16 %v2279
      %v2544 = vunpack.c.h.b16 %v2279
      %v2545 = vunpack.c.l.b16 %v2280
      %v2546 = vunpack.c.h.b16 %v2280
      %v2547 = vunpack.c.l.b16 %v2281
      %v2548 = vunpack.c.h.b16 %v2281
      %v2549 = vunpack.c.l.b16 %v2282
      %v2550 = vunpack.c.h.b16 %v2282
      %v2551 = vunpack.c.l.b16 %v2283
      %v2552 = vunpack.c.h.b16 %v2283
      %v2553 = vunpack.c.l.b16 %v2284
      %v2554 = vunpack.c.h.b16 %v2284
      %v2555 = vunpack.c.l.b16 %v2285
      %v2556 = vunpack.c.h.b16 %v2285
      %v2557 = vunpack.c.l.b16 %v2286
      %v2558 = vunpack.c.h.b16 %v2286
      %v2559 = vunpack.c.l.b16 %v2287
      %v2560 = vunpack.c.h.b16 %v2287
      %v2561 = vunpack.c.l.b16 %v2288
      %v2562 = vunpack.c.h.b16 %v2288
      %v2563 = vunpack.c.l.b16 %v2289
      %v2564 = vunpack.c.h.b16 %v2289
      %v2565 = vunpack.c.l.b16 %v2290
      %v2566 = vunpack.c.h.b16 %v2290
      %v2567 = vunpack.c.l.b16 %v2291
      %v2568 = vunpack.c.h.b16 %v2291
      %v2569 = vunpack.c.l.b16 %v2292
      %v2570 = vunpack.c.h.b16 %v2292
      %v2571 = vunpack.c.l.b16 %v2293
      %v2572 = vunpack.c.h.b16 %v2293
      %v2573 = vunpack.c.l.b16 %v2294
      %v2574 = vunpack.c.h.b16 %v2294
      %v2575 = vunpack.c.l.b16 %v2295
      %v2576 = vunpack.c.h.b16 %v2295
      %v2577 = vunpack.c.l.b16 %v2296
      %v2578 = vunpack.c.h.b16 %v2296
      %v2579 = vunpack.c.l.b16 %v2297
      %v2580 = vunpack.c.h.b16 %v2297
      %v2581 = vunpack.c.l.b16 %v2298
      %v2582 = vunpack.c.h.b16 %v2298
      %v2583 = vunpack.c.l.b16 %v2299
      %v2584 = vunpack.c.h.b16 %v2299
      %v2585 = vunpack.c.l.b16 %v2300
      %v2586 = vunpack.c.h.b16 %v2300
      %v2587 = vunpack.c.l.b16 %v2301
      %v2588 = vunpack.c.h.b16 %v2301
      %v2589 = vunpack.c.l.b16 %v2302
      %v2590 = vunpack.c.h.b16 %v2302
      %v2591 = vunpack.c.l.b16 %v2303
      %v2592 = vunpack.c.h.b16 %v2303
      %v2593 = vunpack.c.l.b16 %v2304
      %v2594 = vunpack.c.h.b16 %v2304
      %v2595 = vunpack.c.l.b16 %v2305
      %v2596 = vunpack.c.h.b16 %v2305
      %v2597 = vunpack.c.l.b16 %v2306
      %v2598 = vunpack.c.h.b16 %v2306
      %v2599 = vunpack.c.l.b16 %v2307
      %v2600 = vunpack.c.h.b16 %v2307
      %v2601 = vunpack.c.l.b16 %v2308
      %v2602 = vunpack.c.h.b16 %v2308
      %v2603 = vunpack.c.l.b16 %v2309
      %v2604 = vunpack.c.h.b16 %v2309
      %v2605 = vunpack.c.l.b16 %v2310
      %v2606 = vunpack.c.h.b16 %v2310
      %v2607 = vunpack.c.l.b16 %v2311
      %v2608 = vunpack.c.h.b16 %v2311
      %v2609 = vunpack.c.l.b16 %v2312
      %v2610 = vunpack.c.h.b16 %v2312
      %v2611 = vunpack.c.l.b16 %v2313
      %v2612 = vunpack.c.h.b16 %v2313
      %v2613 = vunpack.c.l.b16 %v2314
      %v2614 = vunpack.c.h.b16 %v2314
      %v2615 = vunpack.c.l.b16 %v2315
      %v2616 = vunpack.c.h.b16 %v2315
      %v2617 = vunpack.c.l.b16 %v2316
      %v2618 = vunpack.c.h.b16 %v2316
      %v2619 = vunpack.c.l.b16 %v2317
      %v2620 = vunpack.c.h.b16 %v2317
      %v2621 = vunpack.c.l.b16 %v2318
      %v2622 = vunpack.c.h.b16 %v2318
      %v2623 = vunpack.c.l.b16 %v2319
      %v2624 = vunpack.c.h.b16 %v2319
      %v2625 = vunpack.c.l.b16 %v2320
      %v2626 = vunpack.c.h.b16 %v2320
      %v2627 = vunpack.c.l.b16 %v2321
      %v2628 = vunpack.c.h.b16 %v2321
      %v2629 = vunpack.c.l.b16 %v2322
      %v2630 = vunpack.c.h.b16 %v2322
      %v2631 = vunpack.c.l.b16 %v2323
      %v2632 = vunpack.c.h.b16 %v2323
      %v2633 = vunpack.c.l.b16 %v2324
      %v2634 = vunpack.c.h.b16 %v2324
      %v2635 = vunpack.c.l.b16 %v2325
      %v2636 = vunpack.c.h.b16 %v2325
      %v2637 = vunpack.c.l.b16 %v2326
      %v2638 = vunpack.c.h.b16 %v2326
      %v2639 = vunpack.c.l.b16 %v2327
      %v2640 = vunpack.c.h.b16 %v2327
      %v2641 = vunpack.c.l.b16 %v2328
      %v2642 = vunpack.c.h.b16 %v2328
      %v2643 = vunpack.c.l.b16 %v2329
      %v2644 = vunpack.c.h.b16 %v2329
      %v2645 = vunpack.c.l.b16 %v2330
      %v2646 = vunpack.c.h.b16 %v2330
      %v2647 = vunpack.c.l.b16 %v2331
      %v2648 = vunpack.c.h.b16 %v2331
      %v2649 = vunpack.c.l.b16 %v2332
      %v2650 = vunpack.c.h.b16 %v2332
      %v2651 = vunpack.c.l.b16 %v2333
      %v2652 = vunpack.c.h.b16 %v2333
      %v2653 = vunpack.c.l.b16 %v2334
      %v2654 = vunpack.c.h.b16 %v2334
      %v2655 = vunpack.c.l.b16 %v2335
      %v2656 = vunpack.c.h.b16 %v2335
      %v2657 = vunpack.c.l.b16 %v2336
      %v2658 = vunpack.c.h.b16 %v2336
      %v2659 = vunpack.c.l.b16 %v2337
      %v2660 = vunpack.c.h.b16 %v2337
      %v2661 = vunpack.c.l.b16 %v2338
      %v2662 = vunpack.c.h.b16 %v2338
      %v2663 = vunpack.c.l.b16 %v2339
      %v2664 = vunpack.c.h.b16 %v2339
      %v2665 = vunpack.c.l.b16 %v2340
      %v2666 = vunpack.c.h.b16 %v2340
      %v2667 = vunpack.c.l.b16 %v2341
      %v2668 = vunpack.c.h.b16 %v2341
      %v2669 = vunpack.c.l.b16 %v2342
      %v2670 = vunpack.c.h.b16 %v2342
      %v2671 = vunpack.c.l.b16 %v2343
      %v2672 = vunpack.c.h.b16 %v2343
      %v2673 = vunpack.c.l.b16 %v2344
      %v2674 = vunpack.c.h.b16 %v2344
      %v2675 = vunpack.c.l.b16 %v2345
      %v2676 = vunpack.c.h.b16 %v2345
      %v2677 = vunpack.c.l.b16 %v2346
      %v2678 = vunpack.c.h.b16 %v2346
      %v2679 = vunpack.c.l.b16 %v2347
      %v2680 = vunpack.c.h.b16 %v2347
      %v2681 = vunpack.c.l.b16 %v2348
      %v2682 = vunpack.c.h.b16 %v2348
      %v2683 = vunpack.c.l.b16 %v2349
      %v2684 = vunpack.c.h.b16 %v2349
      %v2685 = vunpack.c.l.b16 %v2350
      %v2686 = vunpack.c.h.b16 %v2350
      %v2687 = vpack.c.b16 %v2497, %v2495
      %v2688 = vpack.c.b16 %v2498, %v2496
      %v2689 = vpack.c.b16 %v2501, %v2499
      %v2690 = vpack.c.b16 %v2502, %v2500
      %v2691 = vpack.c.b16 %v2505, %v2503
      %v2692 = vpack.c.b16 %v2506, %v2504
      %v2693 = vpack.c.b16 %v2509, %v2507
      %v2694 = vpack.c.b16 %v2510, %v2508
      %v2695 = vpack.c.b16 %v2513, %v2511
      %v2696 = vpack.c.b16 %v2514, %v2512
      %v2697 = vpack.c.b16 %v2517, %v2515
      %v2698 = vpack.c.b16 %v2518, %v2516
      %v2699 = vpack.c.b16 %v2521, %v2519
      %v2700 = vpack.c.b16 %v2522, %v2520
      %v2701 = vpack.c.b16 %v2525, %v2523
      %v2702 = vpack.c.b16 %v2526, %v2524
      %v2703 = vpack.c.b16 %v2529, %v2527
      %v2704 = vpack.c.b16 %v2530, %v2528
      %v2705 = vpack.c.b16 %v2533, %v2531
      %v2706 = vpack.c.b16 %v2534, %v2532
      %v2707 = vpack.c.b16 %v2537, %v2535
      %v2708 = vpack.c.b16 %v2538, %v2536
      %v2709 = vpack.c.b16 %v2541, %v2539
      %v2710 = vpack.c.b16 %v2542, %v2540
      %v2711 = vpack.c.b16 %v2545, %v2543
      %v2712 = vpack.c.b16 %v2546, %v2544
      %v2713 = vpack.c.b16 %v2549, %v2547
      %v2714 = vpack.c.b16 %v2550, %v2548
      %v2715 = vpack.c.b16 %v2553, %v2551
      %v2716 = vpack.c.b16 %v2554, %v2552
      %v2717 = vpack.c.b16 %v2557, %v2555
      %v2718 = vpack.c.b16 %v2558, %v2556
      %v2719 = vpack.c.b16 %v2561, %v2559
      %v2720 = vpack.c.b16 %v2562, %v2560
      %v2721 = vpack.c.b16 %v2565, %v2563
      %v2722 = vpack.c.b16 %v2566, %v2564
      %v2723 = vpack.c.b16 %v2569, %v2567
      %v2724 = vpack.c.b16 %v2570, %v2568
      %v2725 = vpack.c.b16 %v2573, %v2571
      %v2726 = vpack.c.b16 %v2574, %v2572
      %v2727 = vpack.c.b16 %v2577, %v2575
      %v2728 = vpack.c.b16 %v2578, %v2576
      %v2729 = vpack.c.b16 %v2581, %v2579
      %v2730 = vpack.c.b16 %v2582, %v2580
      %v2731 = vpack.c.b16 %v2585, %v2583
      %v2732 = vpack.c.b16 %v2586, %v2584
      %v2733 = vpack.c.b16 %v2589, %v2587
      %v2734 = vpack.c.b16 %v2590, %v2588
      %v2735 = vpack.c.b16 %v2593, %v2591
      %v2736 = vpack.c.b16 %v2594, %v2592
      %v2737 = vpack.c.b16 %v2597, %v2595
      %v2738 = vpack.c.b16 %v2598, %v2596
      %v2739 = vpack.c.b16 %v2601, %v2599
      %v2740 = vpack.c.b16 %v2602, %v2600
      %v2741 = vpack.c.b16 %v2605, %v2603
      %v2742 = vpack.c.b16 %v2606, %v2604
      %v2743 = vpack.c.b16 %v2609, %v2607
      %v2744 = vpack.c.b16 %v2610, %v2608
      %v2745 = vpack.c.b16 %v2613, %v2611
      %v2746 = vpack.c.b16 %v2614, %v2612
      %v2747 = vpack.c.b16 %v2617, %v2615
      %v2748 = vpack.c.b16 %v2618, %v2616
      %v2749 = vpack.c.b16 %v2621, %v2619
      %v2750 = vpack.c.b16 %v2622, %v2620
      %v2751 = vpack.c.b16 %v2625, %v2623
      %v2752 = vpack.c.b16 %v2626, %v2624
      %v2753 = vpack.c.b16 %v2629, %v2627
      %v2754 = vpack.c.b16 %v2630, %v2628
      %v2755 = vpack.c.b16 %v2633, %v2631
      %v2756 = vpack.c.b16 %v2634, %v2632
      %v2757 = vpack.c.b16 %v2637, %v2635
      %v2758 = vpack.c.b16 %v2638, %v2636
      %v2759 = vpack.c.b16 %v2641, %v2639
      %v2760 = vpack.c.b16 %v2642, %v2640
      %v2761 = vpack.c.b16 %v2645, %v2643
      %v2762 = vpack.c.b16 %v2646, %v2644
      %v2763 = vpack.c.b16 %v2649, %v2647
      %v2764 = vpack.c.b16 %v2650, %v2648
      %v2765 = vpack.c.b16 %v2653, %v2651
      %v2766 = vpack.c.b16 %v2654, %v2652
      %v2767 = vpack.c.b16 %v2657, %v2655
      %v2768 = vpack.c.b16 %v2658, %v2656
      %v2769 = vpack.c.b16 %v2661, %v2659
      %v2770 = vpack.c.b16 %v2662, %v2660
      %v2771 = vpack.c.b16 %v2665, %v2663
      %v2772 = vpack.c.b16 %v2666, %v2664
      %v2773 = vpack.c.b16 %v2669, %v2667
      %v2774 = vpack.c.b16 %v2670, %v2668
      %v2775 = vpack.c.b16 %v2673, %v2671
      %v2776 = vpack.c.b16 %v2674, %v2672
      %v2777 = vpack.c.b16 %v2677, %v2675
      %v2778 = vpack.c.b16 %v2678, %v2676
      %v2779 = vpack.c.b16 %v2681, %v2679
      %v2780 = vpack.c.b16 %v2682, %v2680
      %v2781 = vpack.c.b16 %v2685, %v2683
      %v2782 = vpack.c.b16 %v2686, %v2684
      %2879 = vmatprep.subr.bf16.mxu0 %v2702
      %2880 = vmatpush1.bf16.msra.mxu0 %v2701
      %2881 = vmatprep.subr.bf16.mxu0 %v2700
      %2882 = vmatpush1.bf16.msra.mxu0 %v2699
      %2883 = vmatprep.subr.bf16.mxu0 %v2698
      %2884 = vmatpush1.bf16.msra.mxu0 %v2697
      %2885 = vmatprep.subr.bf16.mxu0 %v2696
      %2886 = vmatpush1.bf16.msra.mxu0 %v2695
      %2887 = vmatprep.subr.bf16.mxu0 %v2694
      %2888 = vmatpush1.bf16.msra.mxu0 %v2693
      %2889 = vmatprep.subr.bf16.mxu0 %v2692
      %2890 = vmatpush1.bf16.msra.mxu0 %v2691
      %2891 = vmatprep.subr.bf16.mxu0 %v2690
      %2892 = vmatpush1.bf16.msra.mxu0 %v2689
      %2893 = vmatprep.subr.bf16.mxu0 %v2688
      %2894 = vmatpush1.bf16.msra.mxu0 %v2687
      %2895 = vmatprep.subr.bf16.mxu0 %v2718
      %2896 = vmatpush2.bf16.msra.mxu0 %v2717
      %2897 = vmatprep.subr.bf16.mxu0 %v2716
      %2898 = vmatpush2.bf16.msra.mxu0 %v2715
      %2899 = vmatprep.subr.bf16.mxu0 %v2714
      %2900 = vmatpush2.bf16.msra.mxu0 %v2713
      %2901 = vmatprep.subr.bf16.mxu0 %v2712
      %2902 = vmatpush2.bf16.msra.mxu0 %v2711
      %2903 = vmatprep.subr.bf16.mxu0 %v2710
      %2904 = vmatpush2.bf16.msra.mxu0 %v2709
      %2905 = vmatprep.subr.bf16.mxu0 %v2708
      %2906 = vmatpush2.bf16.msra.mxu0 %v2707
      %2907 = vmatprep.subr.bf16.mxu0 %v2706
      %2908 = vmatpush2.bf16.msra.mxu0 %v2705
      %2909 = vmatprep.subr.bf16.mxu0 %v2704
      %2910 = vmatpush2.bf16.msra.mxu0 %v2703
      %2911 = vmatprep.mubr.bf16.mxu0 %v2376
      %2912 = vmatmul.mubr.bf16.gmra.mxu0 %v2375
      %v2913 = vpop.f32.mrf.mxu0
      %v2914 = vadd.f32 0.0, %v2913
      %v2915 = vpop.f32.mrf.mxu0
      %v2916 = vadd.f32 0.0, %v2915
      %v2917 = vpop.f32.mrf.mxu0
      %v2918 = vadd.f32 0.0, %v2917
      %v2919 = vpop.f32.mrf.mxu0
      %v2920 = vadd.f32 0.0, %v2919
      %2921 = vmatprep.mubr.bf16.mxu0 %v2382
      %2922 = vmatmul.mubr.bf16.gmra.mxu0 %v2381
      %v2923 = vpop.f32.mrf.mxu0
      %v2924 = vadd.f32 0.0, %v2923
      %v2925 = vpop.f32.mrf.mxu0
      %v2926 = vadd.f32 0.0, %v2925
      %v2927 = vpop.f32.mrf.mxu0
      %v2928 = vadd.f32 0.0, %v2927
      %v2929 = vpop.f32.mrf.mxu0
      %v2930 = vadd.f32 0.0, %v2929
      %2931 = vdwg.mxu0
      %2932 = vmatprep.subr.bf16.mxu0 %v2734
      %2933 = vmatpush1.bf16.msra.mxu0 %v2733
      %2934 = vmatprep.subr.bf16.mxu0 %v2732
      %2935 = vmatpush1.bf16.msra.mxu0 %v2731
      %2936 = vmatprep.subr.bf16.mxu0 %v2730
      %2937 = vmatpush1.bf16.msra.mxu0 %v2729
      %2938 = vmatprep.subr.bf16.mxu0 %v2728
      %2939 = vmatpush1.bf16.msra.mxu0 %v2727
      %2940 = vmatprep.subr.bf16.mxu0 %v2726
      %2941 = vmatpush1.bf16.msra.mxu0 %v2725
      %2942 = vmatprep.subr.bf16.mxu0 %v2724
      %2943 = vmatpush1.bf16.msra.mxu0 %v2723
      %2944 = vmatprep.subr.bf16.mxu0 %v2722
      %2945 = vmatpush1.bf16.msra.mxu0 %v2721
      %2946 = vmatprep.subr.bf16.mxu0 %v2720
      %2947 = vmatpush1.bf16.msra.mxu0 %v2719
      %2948 = vmatprep.subr.bf16.mxu0 %v2750
      %2949 = vmatpush2.bf16.msra.mxu0 %v2749
      %2950 = vmatprep.subr.bf16.mxu0 %v2748
      %2951 = vmatpush2.bf16.msra.mxu0 %v2747
      %2952 = vmatprep.subr.bf16.mxu0 %v2746
      %2953 = vmatpush2.bf16.msra.mxu0 %v2745
      %2954 = vmatprep.subr.bf16.mxu0 %v2744
      %2955 = vmatpush2.bf16.msra.mxu0 %v2743
      %2956 = vmatprep.subr.bf16.mxu0 %v2742
      %2957 = vmatpush2.bf16.msra.mxu0 %v2741
      %2958 = vmatprep.subr.bf16.mxu0 %v2740
      %2959 = vmatpush2.bf16.msra.mxu0 %v2739
      %2960 = vmatprep.subr.bf16.mxu0 %v2738
      %2961 = vmatpush2.bf16.msra.mxu0 %v2737
      %2962 = vmatprep.subr.bf16.mxu0 %v2736
      %2963 = vmatpush2.bf16.msra.mxu0 %v2735
      %2964 = vmatprep.mubr.bf16.mxu0 %v2378
      %2965 = vmatmul.mubr.bf16.gmra.mxu0 %v2377
      %v2966 = vpop.f32.mrf.mxu0
      %v2967 = vadd.f32 %v2914, %v2966
      %v2968 = vpop.f32.mrf.mxu0
      %v2969 = vadd.f32 %v2916, %v2968
      %v2970 = vpop.f32.mrf.mxu0
      %v2971 = vadd.f32 %v2918, %v2970
      %v2972 = vpop.f32.mrf.mxu0
      %v2973 = vadd.f32 %v2920, %v2972
      %2974 = vmatprep.mubr.bf16.mxu0 %v2384
      %2975 = vmatmul.mubr.bf16.gmra.mxu0 %v2383
      %v2976 = vpop.f32.mrf.mxu0
      %v2977 = vadd.f32 %v2924, %v2976
      %v2978 = vpop.f32.mrf.mxu0
      %v2979 = vadd.f32 %v2926, %v2978
      %v2980 = vpop.f32.mrf.mxu0
      %v2981 = vadd.f32 %v2928, %v2980
      %v2982 = vpop.f32.mrf.mxu0
      %v2983 = vadd.f32 %v2930, %v2982
      %2984 = vdwg.mxu0
      %2985 = vmatprep.subr.bf16.mxu0 %v2766
      %2986 = vmatpush1.bf16.msra.mxu0 %v2765
      %2987 = vmatprep.subr.bf16.mxu0 %v2764
      %2988 = vmatpush1.bf16.msra.mxu0 %v2763
      %2989 = vmatprep.subr.bf16.mxu0 %v2762
      %2990 = vmatpush1.bf16.msra.mxu0 %v2761
      %2991 = vmatprep.subr.bf16.mxu0 %v2760
      %2992 = vmatpush1.bf16.msra.mxu0 %v2759
      %2993 = vmatprep.subr.bf16.mxu0 %v2758
      %2994 = vmatpush1.bf16.msra.mxu0 %v2757
      %2995 = vmatprep.subr.bf16.mxu0 %v2756
      %2996 = vmatpush1.bf16.msra.mxu0 %v2755
      %2997 = vmatprep.subr.bf16.mxu0 %v2754
      %2998 = vmatpush1.bf16.msra.mxu0 %v2753
      %2999 = vmatprep.subr.bf16.mxu0 %v2752
      %3000 = vmatpush1.bf16.msra.mxu0 %v2751
      %3001 = vmatprep.subr.bf16.mxu0 %v2782
      %3002 = vmatpush2.bf16.msra.mxu0 %v2781
      %3003 = vmatprep.subr.bf16.mxu0 %v2780
      %3004 = vmatpush2.bf16.msra.mxu0 %v2779
      %3005 = vmatprep.subr.bf16.mxu0 %v2778
      %3006 = vmatpush2.bf16.msra.mxu0 %v2777
      %3007 = vmatprep.subr.bf16.mxu0 %v2776
      %3008 = vmatpush2.bf16.msra.mxu0 %v2775
      %3009 = vmatprep.subr.bf16.mxu0 %v2774
      %3010 = vmatpush2.bf16.msra.mxu0 %v2773
      %3011 = vmatprep.subr.bf16.mxu0 %v2772
      %3012 = vmatpush2.bf16.msra.mxu0 %v2771
      %3013 = vmatprep.subr.bf16.mxu0 %v2770
      %3014 = vmatpush2.bf16.msra.mxu0 %v2769
      %3015 = vmatprep.subr.bf16.mxu0 %v2768
      %3016 = vmatpush2.bf16.msra.mxu0 %v2767
      %3017 = vmatprep.mubr.bf16.mxu0 %v2380
      %3018 = vmatmul.mubr.bf16.gmra.mxu0 %v2379
      %v3019 = vpop.f32.mrf.mxu0
      %v3020 = vadd.f32 %v2967, %v3019
      %v3021 = vpop.f32.mrf.mxu0
      %v3022 = vadd.f32 %v2969, %v3021
      %v3023 = vpop.f32.mrf.mxu0
      %v3024 = vadd.f32 %v2971, %v3023
      %v3025 = vpop.f32.mrf.mxu0
      %v3026 = vadd.f32 %v2973, %v3025
      %3027 = vmatprep.mubr.bf16.mxu0 %v2386
      %3028 = vmatmul.mubr.bf16.gmra.mxu0 %v2385
      %v3029 = vpop.f32.mrf.mxu0
      %v3030 = vadd.f32 %v2977, %v3029
      %v3031 = vpop.f32.mrf.mxu0
      %v3032 = vadd.f32 %v2979, %v3031
      %v3033 = vpop.f32.mrf.mxu0
      %v3034 = vadd.f32 %v2981, %v3033
      %v3035 = vpop.f32.mrf.mxu0
      %v3036 = vadd.f32 %v2983, %v3035
      %3037 = vdwg.mxu0
      %v3038 = vadd.f32 %v2071, %v3020
      %v3039 = vadd.f32 %v2073, %v3022
      %v3040 = vadd.f32 %v2075, %v3024
      %v3041 = vadd.f32 %v2077, %v3026
      %v3042 = vadd.f32 %v2081, %v3030
      %v3043 = vadd.f32 %v2083, %v3032
      %v3044 = vadd.f32 %v2085, %v3034
      %v3045 = vadd.f32 %v2087, %v3036
      %v3046 = vmax.f32 %v3038, 0.0
      %v3047 = vmax.f32 %v3039, 0.0
      %v3048 = vmax.f32 %v3040, 0.0
      %v3049 = vmax.f32 %v3041, 0.0
      %v3050 = vmax.f32 %v3042, 0.0
      %v3051 = vmax.f32 %v3043, 0.0
      %v3052 = vmax.f32 %v3044, 0.0
      %v3053 = vmax.f32 %v3045, 0.0
      %v3054 = vpack.c.bf16 %v3048, %v3046
      %v3055 = vpack.c.bf16 %v3049, %v3047
      %v3056 = vpack.c.bf16 %v3052, %v3050
      %v3057 = vpack.c.bf16 %v3053, %v3051
      %v3058 = vld [vmem:[%s2] sm:$0xff]
      %v3059 = vld [vmem:[%s2 + $0x8] sm:$0xff]
      %v3060 = vld [vmem:[%s2 + $0x10] sm:$0xff]
      %v3061 = vld [vmem:[%s2 + $0x18] sm:$0xff]
      %v3062 = vld [vmem:[%s2 + $0x20] sm:$0xff]
      %v3063 = vld [vmem:[%s2 + $0x28] sm:$0xff]
      %v3064 = vld [vmem:[%s2 + $0x30] sm:$0xff]
      %v3065 = vld [vmem:[%s2 + $0x38] sm:$0xff]
      %v3066 = vld [vmem:[%s2 + $0x40] sm:$0xff]
      %v3067 = vld [vmem:[%s2 + $0x48] sm:$0xff]
      %v3068 = vld [vmem:[%s2 + $0x50] sm:$0xff]
      %v3069 = vld [vmem:[%s2 + $0x58] sm:$0xff]
      %v3070 = vld [vmem:[%s2 + $0x60] sm:$0xff]
      %v3071 = vld [vmem:[%s2 + $0x68] sm:$0xff]
      %v3072 = vld [vmem:[%s2 + $0x70] sm:$0xff]
      %v3073 = vld [vmem:[%s2 + $0x78] sm:$0xff]
      %v3074 = vld [vmem:[%s2 + $0x80] sm:$0xff]
      %v3075 = vld [vmem:[%s2 + $0x88] sm:$0xff]
      %v3076 = vld [vmem:[%s2 + $0x90] sm:$0xff]
      %v3077 = vld [vmem:[%s2 + $0x98] sm:$0xff]
      %v3078 = vld [vmem:[%s2 + $0xa0] sm:$0xff]
      %v3079 = vld [vmem:[%s2 + $0xa8] sm:$0xff]
      %v3080 = vld [vmem:[%s2 + $0xb0] sm:$0xff]
      %v3081 = vld [vmem:[%s2 + $0xb8] sm:$0xff]
      %v3082 = vld [vmem:[%s2 + $0xc0] sm:$0xff]
      %v3083 = vld [vmem:[%s2 + $0xc8] sm:$0xff]
      %v3084 = vld [vmem:[%s2 + $0xd0] sm:$0xff]
      %v3085 = vld [vmem:[%s2 + $0xd8] sm:$0xff]
      %v3086 = vld [vmem:[%s2 + $0xe0] sm:$0xff]
      %v3087 = vld [vmem:[%s2 + $0xe8] sm:$0xff]
      %v3088 = vld [vmem:[%s2 + $0xf0] sm:$0xff]
      %v3089 = vld [vmem:[%s2 + $0xf8] sm:$0xff]
      %v3090 = vld [vmem:[%s2 + $0x100] sm:$0xff]
      %v3091 = vld [vmem:[%s2 + $0x108] sm:$0xff]
      %v3092 = vld [vmem:[%s2 + $0x110] sm:$0xff]
      %v3093 = vld [vmem:[%s2 + $0x118] sm:$0xff]
      %v3094 = vld [vmem:[%s2 + $0x120] sm:$0xff]
      %v3095 = vld [vmem:[%s2 + $0x128] sm:$0xff]
      %v3096 = vld [vmem:[%s2 + $0x130] sm:$0xff]
      %v3097 = vld [vmem:[%s2 + $0x138] sm:$0xff]
      %v3098 = vld [vmem:[%s2 + $0x140] sm:$0xff]
      %v3099 = vld [vmem:[%s2 + $0x148] sm:$0xff]
      %v3100 = vld [vmem:[%s2 + $0x150] sm:$0xff]
      %v3101 = vld [vmem:[%s2 + $0x158] sm:$0xff]
      %v3102 = vld [vmem:[%s2 + $0x160] sm:$0xff]
      %v3103 = vld [vmem:[%s2 + $0x168] sm:$0xff]
      %v3104 = vld [vmem:[%s2 + $0x170] sm:$0xff]
      %v3105 = vld [vmem:[%s2 + $0x178] sm:$0xff]
      %v3106 = vld [vmem:[%s2 + $0x180] sm:$0xff]
      %v3107 = vld [vmem:[%s2 + $0x188] sm:$0xff]
      %v3108 = vld [vmem:[%s2 + $0x190] sm:$0xff]
      %v3109 = vld [vmem:[%s2 + $0x198] sm:$0xff]
      %v3110 = vld [vmem:[%s2 + $0x1a0] sm:$0xff]
      %v3111 = vld [vmem:[%s2 + $0x1a8] sm:$0xff]
      %v3112 = vld [vmem:[%s2 + $0x1b0] sm:$0xff]
      %v3113 = vld [vmem:[%s2 + $0x1b8] sm:$0xff]
      %v3114 = vld [vmem:[%s2 + $0x1c0] sm:$0xff]
      %v3115 = vld [vmem:[%s2 + $0x1c8] sm:$0xff]
      %v3116 = vld [vmem:[%s2 + $0x1d0] sm:$0xff]
      %v3117 = vld [vmem:[%s2 + $0x1d8] sm:$0xff]
      %v3118 = vld [vmem:[%s2 + $0x1e0] sm:$0xff]
      %v3119 = vld [vmem:[%s2 + $0x1e8] sm:$0xff]
      %v3120 = vld [vmem:[%s2 + $0x1f0] sm:$0xff]
      %v3121 = vld [vmem:[%s2 + $0x1f8] sm:$0xff]
      %v3186 = vunpack.c.l.b16 %v3058
      %v3187 = vunpack.c.h.b16 %v3058
      %v3188 = vunpack.c.l.b16 %v3059
      %v3189 = vunpack.c.h.b16 %v3059
      %v3190 = vunpack.c.l.b16 %v3060
      %v3191 = vunpack.c.h.b16 %v3060
      %v3192 = vunpack.c.l.b16 %v3061
      %v3193 = vunpack.c.h.b16 %v3061
      %v3194 = vunpack.c.l.b16 %v3062
      %v3195 = vunpack.c.h.b16 %v3062
      %v3196 = vunpack.c.l.b16 %v3063
      %v3197 = vunpack.c.h.b16 %v3063
      %v3198 = vunpack.c.l.b16 %v3064
      %v3199 = vunpack.c.h.b16 %v3064
      %v3200 = vunpack.c.l.b16 %v3065
      %v3201 = vunpack.c.h.b16 %v3065
      %v3202 = vunpack.c.l.b16 %v3066
      %v3203 = vunpack.c.h.b16 %v3066
      %v3204 = vunpack.c.l.b16 %v3067
      %v3205 = vunpack.c.h.b16 %v3067
      %v3206 = vunpack.c.l.b16 %v3068
      %v3207 = vunpack.c.h.b16 %v3068
      %v3208 = vunpack.c.l.b16 %v3069
      %v3209 = vunpack.c.h.b16 %v3069
      %v3210 = vunpack.c.l.b16 %v3070
      %v3211 = vunpack.c.h.b16 %v3070
      %v3212 = vunpack.c.l.b16 %v3071
      %v3213 = vunpack.c.h.b16 %v3071
      %v3214 = vunpack.c.l.b16 %v3072
      %v3215 = vunpack.c.h.b16 %v3072
      %v3216 = vunpack.c.l.b16 %v3073
      %v3217 = vunpack.c.h.b16 %v3073
      %v3218 = vunpack.c.l.b16 %v3074
      %v3219 = vunpack.c.h.b16 %v3074
      %v3220 = vunpack.c.l.b16 %v3075
      %v3221 = vunpack.c.h.b16 %v3075
      %v3222 = vunpack.c.l.b16 %v3076
      %v3223 = vunpack.c.h.b16 %v3076
      %v3224 = vunpack.c.l.b16 %v3077
      %v3225 = vunpack.c.h.b16 %v3077
      %v3226 = vunpack.c.l.b16 %v3078
      %v3227 = vunpack.c.h.b16 %v3078
      %v3228 = vunpack.c.l.b16 %v3079
      %v3229 = vunpack.c.h.b16 %v3079
      %v3230 = vunpack.c.l.b16 %v3080
      %v3231 = vunpack.c.h.b16 %v3080
      %v3232 = vunpack.c.l.b16 %v3081
      %v3233 = vunpack.c.h.b16 %v3081
      %v3234 = vunpack.c.l.b16 %v3082
      %v3235 = vunpack.c.h.b16 %v3082
      %v3236 = vunpack.c.l.b16 %v3083
      %v3237 = vunpack.c.h.b16 %v3083
      %v3238 = vunpack.c.l.b16 %v3084
      %v3239 = vunpack.c.h.b16 %v3084
      %v3240 = vunpack.c.l.b16 %v3085
      %v3241 = vunpack.c.h.b16 %v3085
      %v3242 = vunpack.c.l.b16 %v3086
      %v3243 = vunpack.c.h.b16 %v3086
      %v3244 = vunpack.c.l.b16 %v3087
      %v3245 = vunpack.c.h.b16 %v3087
      %v3246 = vunpack.c.l.b16 %v3088
      %v3247 = vunpack.c.h.b16 %v3088
      %v3248 = vunpack.c.l.b16 %v3089
      %v3249 = vunpack.c.h.b16 %v3089
      %v3250 = vunpack.c.l.b16 %v3090
      %v3251 = vunpack.c.h.b16 %v3090
      %v3252 = vunpack.c.l.b16 %v3091
      %v3253 = vunpack.c.h.b16 %v3091
      %v3254 = vunpack.c.l.b16 %v3092
      %v3255 = vunpack.c.h.b16 %v3092
      %v3256 = vunpack.c.l.b16 %v3093
      %v3257 = vunpack.c.h.b16 %v3093
      %v3258 = vunpack.c.l.b16 %v3094
      %v3259 = vunpack.c.h.b16 %v3094
      %v3260 = vunpack.c.l.b16 %v3095
      %v3261 = vunpack.c.h.b16 %v3095
      %v3262 = vunpack.c.l.b16 %v3096
      %v3263 = vunpack.c.h.b16 %v3096
      %v3264 = vunpack.c.l.b16 %v3097
      %v3265 = vunpack.c.h.b16 %v3097
      %v3266 = vunpack.c.l.b16 %v3098
      %v3267 = vunpack.c.h.b16 %v3098
      %v3268 = vunpack.c.l.b16 %v3099
      %v3269 = vunpack.c.h.b16 %v3099
      %v3270 = vunpack.c.l.b16 %v3100
      %v3271 = vunpack.c.h.b16 %v3100
      %v3272 = vunpack.c.l.b16 %v3101
      %v3273 = vunpack.c.h.b16 %v3101
      %v3274 = vunpack.c.l.b16 %v3102
      %v3275 = vunpack.c.h.b16 %v3102
      %v3276 = vunpack.c.l.b16 %v3103
      %v3277 = vunpack.c.h.b16 %v3103
      %v3278 = vunpack.c.l.b16 %v3104
      %v3279 = vunpack.c.h.b16 %v3104
      %v3280 = vunpack.c.l.b16 %v3105
      %v3281 = vunpack.c.h.b16 %v3105
      %v3282 = vunpack.c.l.b16 %v3106
      %v3283 = vunpack.c.h.b16 %v3106
      %v3284 = vunpack.c.l.b16 %v3107
      %v3285 = vunpack.c.h.b16 %v3107
      %v3286 = vunpack.c.l.b16 %v3108
      %v3287 = vunpack.c.h.b16 %v3108
      %v3288 = vunpack.c.l.b16 %v3109
      %v3289 = vunpack.c.h.b16 %v3109
      %v3290 = vunpack.c.l.b16 %v3110
      %v3291 = vunpack.c.h.b16 %v3110
      %v3292 = vunpack.c.l.b16 %v3111
      %v3293 = vunpack.c.h.b16 %v3111
      %v3294 = vunpack.c.l.b16 %v3112
      %v3295 = vunpack.c.h.b16 %v3112
      %v3296 = vunpack.c.l.b16 %v3113
      %v3297 = vunpack.c.h.b16 %v3113
      %v3298 = vunpack.c.l.b16 %v3114
      %v3299 = vunpack.c.h.b16 %v3114
      %v3300 = vunpack.c.l.b16 %v3115
      %v3301 = vunpack.c.h.b16 %v3115
      %v3302 = vunpack.c.l.b16 %v3116
      %v3303 = vunpack.c.h.b16 %v3116
      %v3304 = vunpack.c.l.b16 %v3117
      %v3305 = vunpack.c.h.b16 %v3117
      %v3306 = vunpack.c.l.b16 %v3118
      %v3307 = vunpack.c.h.b16 %v3118
      %v3308 = vunpack.c.l.b16 %v3119
      %v3309 = vunpack.c.h.b16 %v3119
      %v3310 = vunpack.c.l.b16 %v3120
      %v3311 = vunpack.c.h.b16 %v3120
      %v3312 = vunpack.c.l.b16 %v3121
      %v3313 = vunpack.c.h.b16 %v3121
      %v3314 = vpack.c.b16 %v3190, %v3186
      %v3315 = vpack.c.b16 %v3191, %v3187
      %v3316 = vpack.c.b16 %v3192, %v3188
      %v3317 = vpack.c.b16 %v3193, %v3189
      %v3318 = vpack.c.b16 %v3198, %v3194
      %v3319 = vpack.c.b16 %v3199, %v3195
      %v3320 = vpack.c.b16 %v3200, %v3196
      %v3321 = vpack.c.b16 %v3201, %v3197
      %v3322 = vpack.c.b16 %v3206, %v3202
      %v3323 = vpack.c.b16 %v3207, %v3203
      %v3324 = vpack.c.b16 %v3208, %v3204
      %v3325 = vpack.c.b16 %v3209, %v3205
      %v3326 = vpack.c.b16 %v3214, %v3210
      %v3327 = vpack.c.b16 %v3215, %v3211
      %v3328 = vpack.c.b16 %v3216, %v3212
      %v3329 = vpack.c.b16 %v3217, %v3213
      %v3330 = vpack.c.b16 %v3222, %v3218
      %v3331 = vpack.c.b16 %v3223, %v3219
      %v3332 = vpack.c.b16 %v3224, %v3220
      %v3333 = vpack.c.b16 %v3225, %v3221
      %v3334 = vpack.c.b16 %v3230, %v3226
      %v3335 = vpack.c.b16 %v3231, %v3227
      %v3336 = vpack.c.b16 %v3232, %v3228
      %v3337 = vpack.c.b16 %v3233, %v3229
      %v3338 = vpack.c.b16 %v3238, %v3234
      %v3339 = vpack.c.b16 %v3239, %v3235
      %v3340 = vpack.c.b16 %v3240, %v3236
      %v3341 = vpack.c.b16 %v3241, %v3237
      %v3342 = vpack.c.b16 %v3246, %v3242
      %v3343 = vpack.c.b16 %v3247, %v3243
      %v3344 = vpack.c.b16 %v3248, %v3244
      %v3345 = vpack.c.b16 %v3249, %v3245
      %v3346 = vpack.c.b16 %v3254, %v3250
      %v3347 = vpack.c.b16 %v3255, %v3251
      %v3348 = vpack.c.b16 %v3256, %v3252
      %v3349 = vpack.c.b16 %v3257, %v3253
      %v3350 = vpack.c.b16 %v3262, %v3258
      %v3351 = vpack.c.b16 %v3263, %v3259
      %v3352 = vpack.c.b16 %v3264, %v3260
      %v3353 = vpack.c.b16 %v3265, %v3261
      %v3354 = vpack.c.b16 %v3270, %v3266
      %v3355 = vpack.c.b16 %v3271, %v3267
      %v3356 = vpack.c.b16 %v3272, %v3268
      %v3357 = vpack.c.b16 %v3273, %v3269
      %v3358 = vpack.c.b16 %v3278, %v3274
      %v3359 = vpack.c.b16 %v3279, %v3275
      %v3360 = vpack.c.b16 %v3280, %v3276
      %v3361 = vpack.c.b16 %v3281, %v3277
      %v3362 = vpack.c.b16 %v3286, %v3282
      %v3363 = vpack.c.b16 %v3287, %v3283
      %v3364 = vpack.c.b16 %v3288, %v3284
      %v3365 = vpack.c.b16 %v3289, %v3285
      %v3366 = vpack.c.b16 %v3294, %v3290
      %v3367 = vpack.c.b16 %v3295, %v3291
      %v3368 = vpack.c.b16 %v3296, %v3292
      %v3369 = vpack.c.b16 %v3297, %v3293
      %v3370 = vpack.c.b16 %v3302, %v3298
      %v3371 = vpack.c.b16 %v3303, %v3299
      %v3372 = vpack.c.b16 %v3304, %v3300
      %v3373 = vpack.c.b16 %v3305, %v3301
      %v3374 = vpack.c.b16 %v3310, %v3306
      %v3375 = vpack.c.b16 %v3311, %v3307
      %v3376 = vpack.c.b16 %v3312, %v3308
      %v3377 = vpack.c.b16 %v3313, %v3309
      %3442 = vmatprep.subr.bf16.mxu0 %v3343
      %3443 = vmatpush1.bf16.msra.mxu0 %v3342
      %3444 = vmatprep.subr.bf16.mxu0 %v3339
      %3445 = vmatpush1.bf16.msra.mxu0 %v3338
      %3446 = vmatprep.subr.bf16.mxu0 %v3335
      %3447 = vmatpush1.bf16.msra.mxu0 %v3334
      %3448 = vmatprep.subr.bf16.mxu0 %v3331
      %3449 = vmatpush1.bf16.msra.mxu0 %v3330
      %3450 = vmatprep.subr.bf16.mxu0 %v3327
      %3451 = vmatpush1.bf16.msra.mxu0 %v3326
      %3452 = vmatprep.subr.bf16.mxu0 %v3323
      %3453 = vmatpush1.bf16.msra.mxu0 %v3322
      %3454 = vmatprep.subr.bf16.mxu0 %v3319
      %3455 = vmatpush1.bf16.msra.mxu0 %v3318
      %3456 = vmatprep.subr.bf16.mxu0 %v3315
      %3457 = vmatpush1.bf16.msra.mxu0 %v3314
      %3458 = vmatprep.subr.bf16.mxu0 %v3375
      %3459 = vmatpush2.bf16.msra.mxu0 %v3374
      %3460 = vmatprep.subr.bf16.mxu0 %v3371
      %3461 = vmatpush2.bf16.msra.mxu0 %v3370
      %3462 = vmatprep.subr.bf16.mxu0 %v3367
      %3463 = vmatpush2.bf16.msra.mxu0 %v3366
      %3464 = vmatprep.subr.bf16.mxu0 %v3363
      %3465 = vmatpush2.bf16.msra.mxu0 %v3362
      %3466 = vmatprep.subr.bf16.mxu0 %v3359
      %3467 = vmatpush2.bf16.msra.mxu0 %v3358
      %3468 = vmatprep.subr.bf16.mxu0 %v3355
      %3469 = vmatpush2.bf16.msra.mxu0 %v3354
      %3470 = vmatprep.subr.bf16.mxu0 %v3351
      %3471 = vmatpush2.bf16.msra.mxu0 %v3350
      %3472 = vmatprep.subr.bf16.mxu0 %v3347
      %3473 = vmatpush2.bf16.msra.mxu0 %v3346
      %3474 = vmatprep.mubr.bf16.mxu0 %v3055
      %3475 = vmatmul.mubr.bf16.gmra.mxu0 %v3054
      %v3476 = vpop.f32.mrf.mxu0
      %v3477 = vadd.f32 0.0, %v3476
      %v3478 = vpop.f32.mrf.mxu0
      %v3479 = vadd.f32 0.0, %v3478
      %v3480 = vpop.f32.mrf.mxu0
      %v3481 = vadd.f32 0.0, %v3480
      %v3482 = vpop.f32.mrf.mxu0
      %v3483 = vadd.f32 0.0, %v3482
      %3484 = vmatprep.mubr.bf16.mxu0 %v3057
      %3485 = vmatmul.mubr.bf16.gmra.mxu0 %v3056
      %v3486 = vpop.f32.mrf.mxu0
      %v3487 = vadd.f32 0.0, %v3486
      %v3488 = vpop.f32.mrf.mxu0
      %v3489 = vadd.f32 0.0, %v3488
      %v3490 = vpop.f32.mrf.mxu0
      %v3491 = vadd.f32 0.0, %v3490
      %v3492 = vpop.f32.mrf.mxu0
      %v3493 = vadd.f32 0.0, %v3492
      %3494 = vdwg.mxu0
      %3495 = vmatprep.subr.bf16.mxu0 %v3345
      %3496 = vmatpush1.bf16.msra.mxu0 %v3344
      %3497 = vmatprep.subr.bf16.mxu0 %v3341
      %3498 = vmatpush1.bf16.msra.mxu0 %v3340
      %3499 = vmatprep.subr.bf16.mxu0 %v3337
      %3500 = vmatpush1.bf16.msra.mxu0 %v3336
      %3501 = vmatprep.subr.bf16.mxu0 %v3333
      %3502 = vmatpush1.bf16.msra.mxu0 %v3332
      %3503 = vmatprep.subr.bf16.mxu0 %v3329
      %3504 = vmatpush1.bf16.msra.mxu0 %v3328
      %3505 = vmatprep.subr.bf16.mxu0 %v3325
      %3506 = vmatpush1.bf16.msra.mxu0 %v3324
      %3507 = vmatprep.subr.bf16.mxu0 %v3321
      %3508 = vmatpush1.bf16.msra.mxu0 %v3320
      %3509 = vmatprep.subr.bf16.mxu0 %v3317
      %3510 = vmatpush1.bf16.msra.mxu0 %v3316
      %3511 = vmatprep.subr.bf16.mxu0 %v3377
      %3512 = vmatpush2.bf16.msra.mxu0 %v3376
      %3513 = vmatprep.subr.bf16.mxu0 %v3373
      %3514 = vmatpush2.bf16.msra.mxu0 %v3372
      %3515 = vmatprep.subr.bf16.mxu0 %v3369
      %3516 = vmatpush2.bf16.msra.mxu0 %v3368
      %3517 = vmatprep.subr.bf16.mxu0 %v3365
      %3518 = vmatpush2.bf16.msra.mxu0 %v3364
      %3519 = vmatprep.subr.bf16.mxu0 %v3361
      %3520 = vmatpush2.bf16.msra.mxu0 %v3360
      %3521 = vmatprep.subr.bf16.mxu0 %v3357
      %3522 = vmatpush2.bf16.msra.mxu0 %v3356
      %3523 = vmatprep.subr.bf16.mxu0 %v3353
      %3524 = vmatpush2.bf16.msra.mxu0 %v3352
      %3525 = vmatprep.subr.bf16.mxu0 %v3349
      %3526 = vmatpush2.bf16.msra.mxu0 %v3348
      %3527 = vmatprep.mubr.bf16.mxu0 %v3055
      %3528 = vmatmul.mubr.bf16.gmra.mxu0 %v3054
      %v3529 = vpop.f32.mrf.mxu0
      %v3530 = vadd.f32 0.0, %v3529
      %v3531 = vpop.f32.mrf.mxu0
      %v3532 = vadd.f32 0.0, %v3531
      %v3533 = vpop.f32.mrf.mxu0
      %v3534 = vadd.f32 0.0, %v3533
      %v3535 = vpop.f32.mrf.mxu0
      %v3536 = vadd.f32 0.0, %v3535
      %3537 = vmatprep.mubr.bf16.mxu0 %v3057
      %3538 = vmatmul.mubr.bf16.gmra.mxu0 %v3056
      %v3539 = vpop.f32.mrf.mxu0
      %v3540 = vadd.f32 0.0, %v3539
      %v3541 = vpop.f32.mrf.mxu0
      %v3542 = vadd.f32 0.0, %v3541
      %v3543 = vpop.f32.mrf.mxu0
      %v3544 = vadd.f32 0.0, %v3543
      %v3545 = vpop.f32.mrf.mxu0
      %v3546 = vadd.f32 0.0, %v3545
      %3547 = vdwg.mxu0
      %v3548 = vld [vmem:[#allocation2] sm:$0xff]
      %v3549 = vld [vmem:[#allocation2 + $0x8] sm:$0xff]
      %v3550 = vld [vmem:[#allocation2 + $0x10] sm:$0xff]
      %v3551 = vld [vmem:[#allocation2 + $0x18] sm:$0xff]
      %v3552 = vld [vmem:[#allocation2 + $0x20] sm:$0xff]
      %v3553 = vld [vmem:[#allocation2 + $0x28] sm:$0xff]
      %v3554 = vld [vmem:[#allocation2 + $0x30] sm:$0xff]
      %v3555 = vld [vmem:[#allocation2 + $0x38] sm:$0xff]
      %v3556 = vld [vmem:[#allocation2 + $0x40] sm:$0xff]
      %v3557 = vld [vmem:[#allocation2 + $0x48] sm:$0xff]
      %v3558 = vld [vmem:[#allocation2 + $0x50] sm:$0xff]
      %v3559 = vld [vmem:[#allocation2 + $0x58] sm:$0xff]
      %v3560 = vld [vmem:[#allocation2 + $0x60] sm:$0xff]
      %v3561 = vld [vmem:[#allocation2 + $0x68] sm:$0xff]
      %v3562 = vld [vmem:[#allocation2 + $0x70] sm:$0xff]
      %v3563 = vld [vmem:[#allocation2 + $0x78] sm:$0xff]
      %v3564 = vadd.f32 %v3548, %v3477
      %v3565 = vadd.f32 %v3549, %v3479
      %v3566 = vadd.f32 %v3550, %v3530
      %v3567 = vadd.f32 %v3551, %v3532
      %v3568 = vadd.f32 %v3552, %v3481
      %v3569 = vadd.f32 %v3553, %v3483
      %v3570 = vadd.f32 %v3554, %v3534
      %v3571 = vadd.f32 %v3555, %v3536
      %v3572 = vadd.f32 %v3556, %v3487
      %v3573 = vadd.f32 %v3557, %v3489
      %v3574 = vadd.f32 %v3558, %v3540
      %v3575 = vadd.f32 %v3559, %v3542
      %v3576 = vadd.f32 %v3560, %v3491
      %v3577 = vadd.f32 %v3561, %v3493
      %v3578 = vadd.f32 %v3562, %v3544
      %v3579 = vadd.f32 %v3563, %v3546
      %3580 = vst [vmem:[#allocation2] sm:$0xff] %v3564
      %3581 = vst [vmem:[#allocation2 + $0x8] sm:$0xff] %v3565
      %3582 = vst [vmem:[#allocation2 + $0x10] sm:$0xff] %v3566
      %3583 = vst [vmem:[#allocation2 + $0x18] sm:$0xff] %v3567
      %3584 = vst [vmem:[#allocation2 + $0x20] sm:$0xff] %v3568
      %3585 = vst [vmem:[#allocation2 + $0x28] sm:$0xff] %v3569
      %3586 = vst [vmem:[#allocation2 + $0x30] sm:$0xff] %v3570
      %3587 = vst [vmem:[#allocation2 + $0x38] sm:$0xff] %v3571
      %3588 = vst [vmem:[#allocation2 + $0x40] sm:$0xff] %v3572
      %3589 = vst [vmem:[#allocation2 + $0x48] sm:$0xff] %v3573
      %3590 = vst [vmem:[#allocation2 + $0x50] sm:$0xff] %v3574
      %3591 = vst [vmem:[#allocation2 + $0x58] sm:$0xff] %v3575
      %3592 = vst [vmem:[#allocation2 + $0x60] sm:$0xff] %v3576
      %3593 = vst [vmem:[#allocation2 + $0x68] sm:$0xff] %v3577
      %3594 = vst [vmem:[#allocation2 + $0x70] sm:$0xff] %v3578
      %3595 = vst [vmem:[#allocation2 + $0x78] sm:$0xff] %v3579
      %v3596 = vld [vmem:[#allocation2] sm:$0xff]
      %v3597 = vld [vmem:[#allocation2 + $0x8] sm:$0xff]
      %v3598 = vld [vmem:[#allocation2 + $0x10] sm:$0xff]
      %v3599 = vld [vmem:[#allocation2 + $0x18] sm:$0xff]
      %v3600 = vld [vmem:[#allocation2 + $0x20] sm:$0xff]
      %v3601 = vld [vmem:[#allocation2 + $0x28] sm:$0xff]
      %v3602 = vld [vmem:[#allocation2 + $0x30] sm:$0xff]
      %v3603 = vld [vmem:[#allocation2 + $0x38] sm:$0xff]
      %v3604 = vld [vmem:[#allocation2 + $0x40] sm:$0xff]
      %v3605 = vld [vmem:[#allocation2 + $0x48] sm:$0xff]
      %v3606 = vld [vmem:[#allocation2 + $0x50] sm:$0xff]
      %v3607 = vld [vmem:[#allocation2 + $0x58] sm:$0xff]
      %v3608 = vld [vmem:[#allocation2 + $0x60] sm:$0xff]
      %v3609 = vld [vmem:[#allocation2 + $0x68] sm:$0xff]
      %v3610 = vld [vmem:[#allocation2 + $0x70] sm:$0xff]
      %v3611 = vld [vmem:[#allocation2 + $0x78] sm:$0xff]
      %v3612 = vmax.f32 %v3596, 0.0
      %v3613 = vmax.f32 %v3597, 0.0
      %v3614 = vmax.f32 %v3598, 0.0
      %v3615 = vmax.f32 %v3599, 0.0
      %v3616 = vmax.f32 %v3600, 0.0
      %v3617 = vmax.f32 %v3601, 0.0
      %v3618 = vmax.f32 %v3602, 0.0
      %v3619 = vmax.f32 %v3603, 0.0
      %v3620 = vmax.f32 %v3604, 0.0
      %v3621 = vmax.f32 %v3605, 0.0
      %v3622 = vmax.f32 %v3606, 0.0
      %v3623 = vmax.f32 %v3607, 0.0
      %v3624 = vmax.f32 %v3608, 0.0
      %v3625 = vmax.f32 %v3609, 0.0
      %v3626 = vmax.f32 %v3610, 0.0
      %v3627 = vmax.f32 %v3611, 0.0
      %v3628 = vpack.c.bf16 %v3616, %v3612
      %v3629 = vpack.c.bf16 %v3617, %v3613
      %v3630 = vpack.c.bf16 %v3618, %v3614
      %v3631 = vpack.c.bf16 %v3619, %v3615
      %v3632 = vpack.c.bf16 %v3624, %v3620
      %v3633 = vpack.c.bf16 %v3625, %v3621
      %v3634 = vpack.c.bf16 %v3626, %v3622
      %v3635 = vpack.c.bf16 %v3627, %v3623
      %v3644 = vunpack.c.l.b16 %v3628
      %v3645 = vunpack.c.l.b16 %v3629
      %v3646 = vunpack.c.l.b16 %v3630
      %v3647 = vunpack.c.l.b16 %v3631
      %v3648 = vunpack.c.h.b16 %v3628
      %v3649 = vunpack.c.h.b16 %v3629
      %v3650 = vunpack.c.h.b16 %v3630
      %v3651 = vunpack.c.h.b16 %v3631
      %v3652 = vunpack.c.l.b16 %v3632
      %v3653 = vunpack.c.l.b16 %v3633
      %v3654 = vunpack.c.l.b16 %v3634
      %v3655 = vunpack.c.l.b16 %v3635
      %v3656 = vunpack.c.h.b16 %v3632
      %v3657 = vunpack.c.h.b16 %v3633
      %v3658 = vunpack.c.h.b16 %v3634
      %v3659 = vunpack.c.h.b16 %v3635
      %v3660 = vpack.c.b16 %v3645, %v3644
      %v3661 = vpack.c.b16 %v3647, %v3646
      %v3662 = vpack.c.b16 %v3649, %v3648
      %v3663 = vpack.c.b16 %v3651, %v3650
      %v3664 = vpack.c.b16 %v3653, %v3652
      %v3665 = vpack.c.b16 %v3655, %v3654
      %v3666 = vpack.c.b16 %v3657, %v3656
      %v3667 = vpack.c.b16 %v3659, %v3658
      %3676 = vst [vmem:[#allocation3 + $0x1c] sm:$0xff] %v3660
      %3677 = vst [vmem:[#allocation3 + $0x24] sm:$0xff] %v3661
      %3678 = vst [vmem:[#allocation3 + $0x34] sm:$0xff] %v3662
      %3679 = vst [vmem:[#allocation3 + $0x3c] sm:$0xff] %v3663
      %3680 = vst [vmem:[#allocation3 + $0x7c] sm:$0xff] %v3664
      %3681 = vst [vmem:[#allocation3 + $0x84] sm:$0xff] %v3665
      %3682 = vst [vmem:[#allocation3 + $0x94] sm:$0xff] %v3666
      %3683 = vst [vmem:[#allocation3 + $0x9c] sm:$0xff] %v3667
      %v3684 = vld [vmem:[#allocation3] sm:$0x88]
      %v3685 = vld [vmem:[#allocation3 + $0x8] sm:$0x88]
      %v3686 = vld [vmem:[#allocation3 + $0x10] sm:$0x88]
      %v3687 = vld [vmem:[#allocation3 + $0x18] sm:$0xff]
      %v3688 = vld [vmem:[#allocation3 + $0x20] sm:$0xff]
      %v3689 = vld [vmem:[#allocation3 + $0x28] sm:$0xff]
      %v3690 = vld [vmem:[#allocation3 + $0x30] sm:$0xff]
      %v3691 = vld [vmem:[#allocation3 + $0x38] sm:$0xff]
      %v3692 = vld [vmem:[#allocation3 + $0x40] sm:$0xff]
      %v3693 = vld [vmem:[#allocation3 + $0x60] sm:$0x88]
      %v3694 = vld [vmem:[#allocation3 + $0x68] sm:$0x88]
      %v3695 = vld [vmem:[#allocation3 + $0x70] sm:$0x88]
      %v3696 = vld [vmem:[#allocation3 + $0x78] sm:$0xff]
      %v3697 = vld [vmem:[#allocation3 + $0x80] sm:$0xff]
      %v3698 = vld [vmem:[#allocation3 + $0x88] sm:$0xff]
      %v3699 = vld [vmem:[#allocation3 + $0x90] sm:$0xff]
      %v3700 = vld [vmem:[#allocation3 + $0x98] sm:$0xff]
      %v3701 = vld [vmem:[#allocation3 + $0xa0] sm:$0xff]
      %v3703 = vshrl.u32 %v3684, 16
      %v3705 = vrot.slane %v3703, 7
      %v3706 = vrot.slane %v3705, 4
      %v3708 = vshrl.u32 %v3687, 16
      %v3710 = vrot.slane %v3708, 7
      %v3711 = vshll.u32 %v3687, 16
      %v3713 = vor.u32 %v3710, %v3711
      %v3714 = vsel %vm377, %v3706, %v3713
      %v3716 = vshrl.u32 %v3685, 16
      %v3718 = vrot.slane %v3716, 7
      %v3719 = vrot.slane %v3718, 4
      %v3721 = vshrl.u32 %v3688, 16
      %v3723 = vrot.slane %v3721, 7
      %v3724 = vshll.u32 %v3688, 16
      %v3726 = vor.u32 %v3723, %v3724
      %v3727 = vsel %vm377, %v3719, %v3726
      %v3729 = vshrl.u32 %v3686, 16
      %v3731 = vrot.slane %v3729, 7
      %v3732 = vrot.slane %v3731, 4
      %v3734 = vshrl.u32 %v3689, 16
      %v3736 = vrot.slane %v3734, 7
      %v3737 = vshll.u32 %v3689, 16
      %v3739 = vor.u32 %v3736, %v3737
      %v3740 = vsel %vm377, %v3732, %v3739
      %v3741 = vrot.slane %v3710, 4
      %v3743 = vshrl.u32 %v3690, 16
      %v3745 = vrot.slane %v3743, 7
      %v3746 = vshll.u32 %v3690, 16
      %v3748 = vor.u32 %v3745, %v3746
      %v3749 = vsel %vm377, %v3741, %v3748
      %v3750 = vrot.slane %v3723, 4
      %v3752 = vshrl.u32 %v3691, 16
      %v3754 = vrot.slane %v3752, 7
      %v3755 = vshll.u32 %v3691, 16
      %v3757 = vor.u32 %v3754, %v3755
      %v3758 = vsel %vm377, %v3750, %v3757
      %v3759 = vrot.slane %v3736, 4
      %v3761 = vshrl.u32 %v3692, 16
      %v3763 = vrot.slane %v3761, 7
      %v3764 = vshll.u32 %v3692, 16
      %v3766 = vor.u32 %v3763, %v3764
      %v3767 = vsel %vm377, %v3759, %v3766
      %v3769 = vshrl.u32 %v3693, 16
      %v3771 = vrot.slane %v3769, 7
      %v3772 = vrot.slane %v3771, 4
      %v3774 = vshrl.u32 %v3696, 16
      %v3776 = vrot.slane %v3774, 7
      %v3777 = vshll.u32 %v3696, 16
      %v3779 = vor.u32 %v3776, %v3777
      %v3780 = vsel %vm377, %v3772, %v3779
      %v3782 = vshrl.u32 %v3694, 16
      %v3784 = vrot.slane %v3782, 7
      %v3785 = vrot.slane %v3784, 4
      %v3787 = vshrl.u32 %v3697, 16
      %v3789 = vrot.slane %v3787, 7
      %v3790 = vshll.u32 %v3697, 16
      %v3792 = vor.u32 %v3789, %v3790
      %v3793 = vsel %vm377, %v3785, %v3792
      %v3795 = vshrl.u32 %v3695, 16
      %v3797 = vrot.slane %v3795, 7
      %v3798 = vrot.slane %v3797, 4
      %v3800 = vshrl.u32 %v3698, 16
      %v3802 = vrot.slane %v3800, 7
      %v3803 = vshll.u32 %v3698, 16
      %v3805 = vor.u32 %v3802, %v3803
      %v3806 = vsel %vm377, %v3798, %v3805
      %v3807 = vrot.slane %v3776, 4
      %v3809 = vshrl.u32 %v3699, 16
      %v3811 = vrot.slane %v3809, 7
      %v3812 = vshll.u32 %v3699, 16
      %v3814 = vor.u32 %v3811, %v3812
      %v3815 = vsel %vm377, %v3807, %v3814
      %v3816 = vrot.slane %v3789, 4
      %v3818 = vshrl.u32 %v3700, 16
      %v3820 = vrot.slane %v3818, 7
      %v3821 = vshll.u32 %v3700, 16
      %v3823 = vor.u32 %v3820, %v3821
      %v3824 = vsel %vm377, %v3816, %v3823
      %v3825 = vrot.slane %v3802, 4
      %v3827 = vshrl.u32 %v3701, 16
      %v3829 = vrot.slane %v3827, 7
      %v3830 = vshll.u32 %v3701, 16
      %v3832 = vor.u32 %v3829, %v3830
      %v3833 = vsel %vm377, %v3825, %v3832
      %s3834 = scalar_lea.vmem %s1, 2304
      %v3835 = vld [vmem:[%s3834] sm:$0xff]
      %v3836 = vld [vmem:[%s3834 + $0x8] sm:$0xff]
      %v3837 = vld [vmem:[%s3834 + $0x10] sm:$0xff]
      %v3838 = vld [vmem:[%s3834 + $0x18] sm:$0xff]
      %v3839 = vld [vmem:[%s3834 + $0x20] sm:$0xff]
      %v3840 = vld [vmem:[%s3834 + $0x28] sm:$0xff]
      %v3841 = vld [vmem:[%s3834 + $0x30] sm:$0xff]
      %v3842 = vld [vmem:[%s3834 + $0x38] sm:$0xff]
      %v3843 = vld [vmem:[%s3834 + $0x40] sm:$0xff]
      %v3844 = vld [vmem:[%s3834 + $0x48] sm:$0xff]
      %v3845 = vld [vmem:[%s3834 + $0x50] sm:$0xff]
      %v3846 = vld [vmem:[%s3834 + $0x58] sm:$0xff]
      %v3847 = vld [vmem:[%s3834 + $0x60] sm:$0xff]
      %v3848 = vld [vmem:[%s3834 + $0x68] sm:$0xff]
      %v3849 = vld [vmem:[%s3834 + $0x70] sm:$0xff]
      %v3850 = vld [vmem:[%s3834 + $0x78] sm:$0xff]
      %v3851 = vld [vmem:[%s3834 + $0x80] sm:$0xff]
      %v3852 = vld [vmem:[%s3834 + $0x88] sm:$0xff]
      %v3853 = vld [vmem:[%s3834 + $0x90] sm:$0xff]
      %v3854 = vld [vmem:[%s3834 + $0x98] sm:$0xff]
      %v3855 = vld [vmem:[%s3834 + $0xa0] sm:$0xff]
      %v3856 = vld [vmem:[%s3834 + $0xa8] sm:$0xff]
      %v3857 = vld [vmem:[%s3834 + $0xb0] sm:$0xff]
      %v3858 = vld [vmem:[%s3834 + $0xb8] sm:$0xff]
      %v3859 = vld [vmem:[%s3834 + $0xc0] sm:$0xff]
      %v3860 = vld [vmem:[%s3834 + $0xc8] sm:$0xff]
      %v3861 = vld [vmem:[%s3834 + $0xd0] sm:$0xff]
      %v3862 = vld [vmem:[%s3834 + $0xd8] sm:$0xff]
      %v3863 = vld [vmem:[%s3834 + $0xe0] sm:$0xff]
      %v3864 = vld [vmem:[%s3834 + $0xe8] sm:$0xff]
      %v3865 = vld [vmem:[%s3834 + $0xf0] sm:$0xff]
      %v3866 = vld [vmem:[%s3834 + $0xf8] sm:$0xff]
      %v3867 = vld [vmem:[%s3834 + $0x100] sm:$0xff]
      %v3868 = vld [vmem:[%s3834 + $0x108] sm:$0xff]
      %v3869 = vld [vmem:[%s3834 + $0x110] sm:$0xff]
      %v3870 = vld [vmem:[%s3834 + $0x118] sm:$0xff]
      %v3871 = vld [vmem:[%s3834 + $0x120] sm:$0xff]
      %v3872 = vld [vmem:[%s3834 + $0x128] sm:$0xff]
      %v3873 = vld [vmem:[%s3834 + $0x130] sm:$0xff]
      %v3874 = vld [vmem:[%s3834 + $0x138] sm:$0xff]
      %v3875 = vld [vmem:[%s3834 + $0x140] sm:$0xff]
      %v3876 = vld [vmem:[%s3834 + $0x148] sm:$0xff]
      %v3877 = vld [vmem:[%s3834 + $0x150] sm:$0xff]
      %v3878 = vld [vmem:[%s3834 + $0x158] sm:$0xff]
      %v3879 = vld [vmem:[%s3834 + $0x160] sm:$0xff]
      %v3880 = vld [vmem:[%s3834 + $0x168] sm:$0xff]
      %v3881 = vld [vmem:[%s3834 + $0x170] sm:$0xff]
      %v3882 = vld [vmem:[%s3834 + $0x178] sm:$0xff]
      %v3883 = vld [vmem:[%s3834 + $0x180] sm:$0xff]
      %v3884 = vld [vmem:[%s3834 + $0x188] sm:$0xff]
      %v3885 = vld [vmem:[%s3834 + $0x190] sm:$0xff]
      %v3886 = vld [vmem:[%s3834 + $0x198] sm:$0xff]
      %v3887 = vld [vmem:[%s3834 + $0x1a0] sm:$0xff]
      %v3888 = vld [vmem:[%s3834 + $0x1a8] sm:$0xff]
      %v3889 = vld [vmem:[%s3834 + $0x1b0] sm:$0xff]
      %v3890 = vld [vmem:[%s3834 + $0x1b8] sm:$0xff]
      %v3891 = vld [vmem:[%s3834 + $0x1c0] sm:$0xff]
      %v3892 = vld [vmem:[%s3834 + $0x1c8] sm:$0xff]
      %v3893 = vld [vmem:[%s3834 + $0x1d0] sm:$0xff]
      %v3894 = vld [vmem:[%s3834 + $0x1d8] sm:$0xff]
      %v3895 = vld [vmem:[%s3834 + $0x1e0] sm:$0xff]
      %v3896 = vld [vmem:[%s3834 + $0x1e8] sm:$0xff]
      %v3897 = vld [vmem:[%s3834 + $0x1f0] sm:$0xff]
      %v3898 = vld [vmem:[%s3834 + $0x1f8] sm:$0xff]
      %v3899 = vld [vmem:[%s3834 + $0x200] sm:$0xff]
      %v3900 = vld [vmem:[%s3834 + $0x208] sm:$0xff]
      %v3901 = vld [vmem:[%s3834 + $0x210] sm:$0xff]
      %v3902 = vld [vmem:[%s3834 + $0x218] sm:$0xff]
      %v3903 = vld [vmem:[%s3834 + $0x220] sm:$0xff]
      %v3904 = vld [vmem:[%s3834 + $0x228] sm:$0xff]
      %v3905 = vld [vmem:[%s3834 + $0x230] sm:$0xff]
      %v3906 = vld [vmem:[%s3834 + $0x238] sm:$0xff]
      %v3907 = vld [vmem:[%s3834 + $0x240] sm:$0xff]
      %v3908 = vld [vmem:[%s3834 + $0x248] sm:$0xff]
      %v3909 = vld [vmem:[%s3834 + $0x250] sm:$0xff]
      %v3910 = vld [vmem:[%s3834 + $0x258] sm:$0xff]
      %v3911 = vld [vmem:[%s3834 + $0x260] sm:$0xff]
      %v3912 = vld [vmem:[%s3834 + $0x268] sm:$0xff]
      %v3913 = vld [vmem:[%s3834 + $0x270] sm:$0xff]
      %v3914 = vld [vmem:[%s3834 + $0x278] sm:$0xff]
      %v3915 = vld [vmem:[%s3834 + $0x280] sm:$0xff]
      %v3916 = vld [vmem:[%s3834 + $0x288] sm:$0xff]
      %v3917 = vld [vmem:[%s3834 + $0x290] sm:$0xff]
      %v3918 = vld [vmem:[%s3834 + $0x298] sm:$0xff]
      %v3919 = vld [vmem:[%s3834 + $0x2a0] sm:$0xff]
      %v3920 = vld [vmem:[%s3834 + $0x2a8] sm:$0xff]
      %v3921 = vld [vmem:[%s3834 + $0x2b0] sm:$0xff]
      %v3922 = vld [vmem:[%s3834 + $0x2b8] sm:$0xff]
      %v3923 = vld [vmem:[%s3834 + $0x2c0] sm:$0xff]
      %v3924 = vld [vmem:[%s3834 + $0x2c8] sm:$0xff]
      %v3925 = vld [vmem:[%s3834 + $0x2d0] sm:$0xff]
      %v3926 = vld [vmem:[%s3834 + $0x2d8] sm:$0xff]
      %v3927 = vld [vmem:[%s3834 + $0x2e0] sm:$0xff]
      %v3928 = vld [vmem:[%s3834 + $0x2e8] sm:$0xff]
      %v3929 = vld [vmem:[%s3834 + $0x2f0] sm:$0xff]
      %v3930 = vld [vmem:[%s3834 + $0x2f8] sm:$0xff]
      %s3931 = scalar_lea.vmem %s1, 3072
      %v3932 = vld [vmem:[%s3931] sm:$0xff]
      %v3933 = vld [vmem:[%s3931 + $0x8] sm:$0xff]
      %v3934 = vld [vmem:[%s3931 + $0x10] sm:$0xff]
      %v3935 = vld [vmem:[%s3931 + $0x18] sm:$0xff]
      %v3936 = vld [vmem:[%s3931 + $0x20] sm:$0xff]
      %v3937 = vld [vmem:[%s3931 + $0x28] sm:$0xff]
      %v3938 = vld [vmem:[%s3931 + $0x30] sm:$0xff]
      %v3939 = vld [vmem:[%s3931 + $0x38] sm:$0xff]
      %v3940 = vld [vmem:[%s3931 + $0x40] sm:$0xff]
      %v3941 = vld [vmem:[%s3931 + $0x48] sm:$0xff]
      %v3942 = vld [vmem:[%s3931 + $0x50] sm:$0xff]
      %v3943 = vld [vmem:[%s3931 + $0x58] sm:$0xff]
      %v3944 = vld [vmem:[%s3931 + $0x60] sm:$0xff]
      %v3945 = vld [vmem:[%s3931 + $0x68] sm:$0xff]
      %v3946 = vld [vmem:[%s3931 + $0x70] sm:$0xff]
      %v3947 = vld [vmem:[%s3931 + $0x78] sm:$0xff]
      %v3948 = vld [vmem:[%s3931 + $0x80] sm:$0xff]
      %v3949 = vld [vmem:[%s3931 + $0x88] sm:$0xff]
      %v3950 = vld [vmem:[%s3931 + $0x90] sm:$0xff]
      %v3951 = vld [vmem:[%s3931 + $0x98] sm:$0xff]
      %v3952 = vld [vmem:[%s3931 + $0xa0] sm:$0xff]
      %v3953 = vld [vmem:[%s3931 + $0xa8] sm:$0xff]
      %v3954 = vld [vmem:[%s3931 + $0xb0] sm:$0xff]
      %v3955 = vld [vmem:[%s3931 + $0xb8] sm:$0xff]
      %v3956 = vld [vmem:[%s3931 + $0xc0] sm:$0xff]
      %v3957 = vld [vmem:[%s3931 + $0xc8] sm:$0xff]
      %v3958 = vld [vmem:[%s3931 + $0xd0] sm:$0xff]
      %v3959 = vld [vmem:[%s3931 + $0xd8] sm:$0xff]
      %v3960 = vld [vmem:[%s3931 + $0xe0] sm:$0xff]
      %v3961 = vld [vmem:[%s3931 + $0xe8] sm:$0xff]
      %v3962 = vld [vmem:[%s3931 + $0xf0] sm:$0xff]
      %v3963 = vld [vmem:[%s3931 + $0xf8] sm:$0xff]
      %v3964 = vld [vmem:[%s3931 + $0x100] sm:$0xff]
      %v3965 = vld [vmem:[%s3931 + $0x108] sm:$0xff]
      %v3966 = vld [vmem:[%s3931 + $0x110] sm:$0xff]
      %v3967 = vld [vmem:[%s3931 + $0x118] sm:$0xff]
      %v3968 = vld [vmem:[%s3931 + $0x120] sm:$0xff]
      %v3969 = vld [vmem:[%s3931 + $0x128] sm:$0xff]
      %v3970 = vld [vmem:[%s3931 + $0x130] sm:$0xff]
      %v3971 = vld [vmem:[%s3931 + $0x138] sm:$0xff]
      %v3972 = vld [vmem:[%s3931 + $0x140] sm:$0xff]
      %v3973 = vld [vmem:[%s3931 + $0x148] sm:$0xff]
      %v3974 = vld [vmem:[%s3931 + $0x150] sm:$0xff]
      %v3975 = vld [vmem:[%s3931 + $0x158] sm:$0xff]
      %v3976 = vld [vmem:[%s3931 + $0x160] sm:$0xff]
      %v3977 = vld [vmem:[%s3931 + $0x168] sm:$0xff]
      %v3978 = vld [vmem:[%s3931 + $0x170] sm:$0xff]
      %v3979 = vld [vmem:[%s3931 + $0x178] sm:$0xff]
      %v3980 = vld [vmem:[%s3931 + $0x180] sm:$0xff]
      %v3981 = vld [vmem:[%s3931 + $0x188] sm:$0xff]
      %v3982 = vld [vmem:[%s3931 + $0x190] sm:$0xff]
      %v3983 = vld [vmem:[%s3931 + $0x198] sm:$0xff]
      %v3984 = vld [vmem:[%s3931 + $0x1a0] sm:$0xff]
      %v3985 = vld [vmem:[%s3931 + $0x1a8] sm:$0xff]
      %v3986 = vld [vmem:[%s3931 + $0x1b0] sm:$0xff]
      %v3987 = vld [vmem:[%s3931 + $0x1b8] sm:$0xff]
      %v3988 = vld [vmem:[%s3931 + $0x1c0] sm:$0xff]
      %v3989 = vld [vmem:[%s3931 + $0x1c8] sm:$0xff]
      %v3990 = vld [vmem:[%s3931 + $0x1d0] sm:$0xff]
      %v3991 = vld [vmem:[%s3931 + $0x1d8] sm:$0xff]
      %v3992 = vld [vmem:[%s3931 + $0x1e0] sm:$0xff]
      %v3993 = vld [vmem:[%s3931 + $0x1e8] sm:$0xff]
      %v3994 = vld [vmem:[%s3931 + $0x1f0] sm:$0xff]
      %v3995 = vld [vmem:[%s3931 + $0x1f8] sm:$0xff]
      %v3996 = vld [vmem:[%s3931 + $0x200] sm:$0xff]
      %v3997 = vld [vmem:[%s3931 + $0x208] sm:$0xff]
      %v3998 = vld [vmem:[%s3931 + $0x210] sm:$0xff]
      %v3999 = vld [vmem:[%s3931 + $0x218] sm:$0xff]
      %v4000 = vld [vmem:[%s3931 + $0x220] sm:$0xff]
      %v4001 = vld [vmem:[%s3931 + $0x228] sm:$0xff]
      %v4002 = vld [vmem:[%s3931 + $0x230] sm:$0xff]
      %v4003 = vld [vmem:[%s3931 + $0x238] sm:$0xff]
      %v4004 = vld [vmem:[%s3931 + $0x240] sm:$0xff]
      %v4005 = vld [vmem:[%s3931 + $0x248] sm:$0xff]
      %v4006 = vld [vmem:[%s3931 + $0x250] sm:$0xff]
      %v4007 = vld [vmem:[%s3931 + $0x258] sm:$0xff]
      %v4008 = vld [vmem:[%s3931 + $0x260] sm:$0xff]
      %v4009 = vld [vmem:[%s3931 + $0x268] sm:$0xff]
      %v4010 = vld [vmem:[%s3931 + $0x270] sm:$0xff]
      %v4011 = vld [vmem:[%s3931 + $0x278] sm:$0xff]
      %v4012 = vld [vmem:[%s3931 + $0x280] sm:$0xff]
      %v4013 = vld [vmem:[%s3931 + $0x288] sm:$0xff]
      %v4014 = vld [vmem:[%s3931 + $0x290] sm:$0xff]
      %v4015 = vld [vmem:[%s3931 + $0x298] sm:$0xff]
      %v4016 = vld [vmem:[%s3931 + $0x2a0] sm:$0xff]
      %v4017 = vld [vmem:[%s3931 + $0x2a8] sm:$0xff]
      %v4018 = vld [vmem:[%s3931 + $0x2b0] sm:$0xff]
      %v4019 = vld [vmem:[%s3931 + $0x2b8] sm:$0xff]
      %v4020 = vld [vmem:[%s3931 + $0x2c0] sm:$0xff]
      %v4021 = vld [vmem:[%s3931 + $0x2c8] sm:$0xff]
      %v4022 = vld [vmem:[%s3931 + $0x2d0] sm:$0xff]
      %v4023 = vld [vmem:[%s3931 + $0x2d8] sm:$0xff]
      %v4024 = vld [vmem:[%s3931 + $0x2e0] sm:$0xff]
      %v4025 = vld [vmem:[%s3931 + $0x2e8] sm:$0xff]
      %v4026 = vld [vmem:[%s3931 + $0x2f0] sm:$0xff]
      %v4027 = vld [vmem:[%s3931 + $0x2f8] sm:$0xff]
      %v4040 = vunpack.c.l.b16 %v3687
      %v4041 = vunpack.c.h.b16 %v3687
      %v4042 = vunpack.c.l.b16 %v3688
      %v4043 = vunpack.c.h.b16 %v3688
      %v4044 = vunpack.c.l.b16 %v3689
      %v4045 = vunpack.c.h.b16 %v3689
      %v4046 = vunpack.c.l.b16 %v3690
      %v4047 = vunpack.c.h.b16 %v3690
      %v4048 = vunpack.c.l.b16 %v3691
      %v4049 = vunpack.c.h.b16 %v3691
      %v4050 = vunpack.c.l.b16 %v3692
      %v4051 = vunpack.c.h.b16 %v3692
      %v4052 = vunpack.c.l.b16 %v3696
      %v4053 = vunpack.c.h.b16 %v3696
      %v4054 = vunpack.c.l.b16 %v3697
      %v4055 = vunpack.c.h.b16 %v3697
      %v4056 = vunpack.c.l.b16 %v3698
      %v4057 = vunpack.c.h.b16 %v3698
      %v4058 = vunpack.c.l.b16 %v3699
      %v4059 = vunpack.c.h.b16 %v3699
      %v4060 = vunpack.c.l.b16 %v3700
      %v4061 = vunpack.c.h.b16 %v3700
      %v4062 = vunpack.c.l.b16 %v3701
      %v4063 = vunpack.c.h.b16 %v3701
      %v4064 = vpack.c.b16 %v4046, %v4040
      %v4065 = vpack.c.b16 %v4047, %v4041
      %v4066 = vpack.c.b16 %v4048, %v4042
      %v4067 = vpack.c.b16 %v4049, %v4043
      %v4068 = vpack.c.b16 %v4050, %v4044
      %v4069 = vpack.c.b16 %v4051, %v4045
      %v4070 = vpack.c.b16 %v4058, %v4052
      %v4071 = vpack.c.b16 %v4059, %v4053
      %v4072 = vpack.c.b16 %v4060, %v4054
      %v4073 = vpack.c.b16 %v4061, %v4055
      %v4074 = vpack.c.b16 %v4062, %v4056
      %v4075 = vpack.c.b16 %v4063, %v4057
      %v4184 = vunpack.c.l.b16 %v3932
      %v4185 = vunpack.c.h.b16 %v3932
      %v4186 = vunpack.c.l.b16 %v3933
      %v4187 = vunpack.c.h.b16 %v3933
      %v4188 = vunpack.c.l.b16 %v3934
      %v4189 = vunpack.c.h.b16 %v3934
      %v4190 = vunpack.c.l.b16 %v3935
      %v4191 = vunpack.c.h.b16 %v3935
      %v4192 = vunpack.c.l.b16 %v3936
      %v4193 = vunpack.c.h.b16 %v3936
      %v4194 = vunpack.c.l.b16 %v3937
      %v4195 = vunpack.c.h.b16 %v3937
      %v4196 = vunpack.c.l.b16 %v3938
      %v4197 = vunpack.c.h.b16 %v3938
      %v4198 = vunpack.c.l.b16 %v3939
      %v4199 = vunpack.c.h.b16 %v3939
      %v4200 = vunpack.c.l.b16 %v3940
      %v4201 = vunpack.c.h.b16 %v3940
      %v4202 = vunpack.c.l.b16 %v3941
      %v4203 = vunpack.c.h.b16 %v3941
      %v4204 = vunpack.c.l.b16 %v3942
      %v4205 = vunpack.c.h.b16 %v3942
      %v4206 = vunpack.c.l.b16 %v3943
      %v4207 = vunpack.c.h.b16 %v3943
      %v4208 = vunpack.c.l.b16 %v3944
      %v4209 = vunpack.c.h.b16 %v3944
      %v4210 = vunpack.c.l.b16 %v3945
      %v4211 = vunpack.c.h.b16 %v3945
      %v4212 = vunpack.c.l.b16 %v3946
      %v4213 = vunpack.c.h.b16 %v3946
      %v4214 = vunpack.c.l.b16 %v3947
      %v4215 = vunpack.c.h.b16 %v3947
      %v4216 = vunpack.c.l.b16 %v3948
      %v4217 = vunpack.c.h.b16 %v3948
      %v4218 = vunpack.c.l.b16 %v3949
      %v4219 = vunpack.c.h.b16 %v3949
      %v4220 = vunpack.c.l.b16 %v3950
      %v4221 = vunpack.c.h.b16 %v3950
      %v4222 = vunpack.c.l.b16 %v3951
      %v4223 = vunpack.c.h.b16 %v3951
      %v4224 = vunpack.c.l.b16 %v3952
      %v4225 = vunpack.c.h.b16 %v3952
      %v4226 = vunpack.c.l.b16 %v3953
      %v4227 = vunpack.c.h.b16 %v3953
      %v4228 = vunpack.c.l.b16 %v3954
      %v4229 = vunpack.c.h.b16 %v3954
      %v4230 = vunpack.c.l.b16 %v3955
      %v4231 = vunpack.c.h.b16 %v3955
      %v4232 = vunpack.c.l.b16 %v3956
      %v4233 = vunpack.c.h.b16 %v3956
      %v4234 = vunpack.c.l.b16 %v3957
      %v4235 = vunpack.c.h.b16 %v3957
      %v4236 = vunpack.c.l.b16 %v3958
      %v4237 = vunpack.c.h.b16 %v3958
      %v4238 = vunpack.c.l.b16 %v3959
      %v4239 = vunpack.c.h.b16 %v3959
      %v4240 = vunpack.c.l.b16 %v3960
      %v4241 = vunpack.c.h.b16 %v3960
      %v4242 = vunpack.c.l.b16 %v3961
      %v4243 = vunpack.c.h.b16 %v3961
      %v4244 = vunpack.c.l.b16 %v3962
      %v4245 = vunpack.c.h.b16 %v3962
      %v4246 = vunpack.c.l.b16 %v3963
      %v4247 = vunpack.c.h.b16 %v3963
      %v4248 = vunpack.c.l.b16 %v3964
      %v4249 = vunpack.c.h.b16 %v3964
      %v4250 = vunpack.c.l.b16 %v3965
      %v4251 = vunpack.c.h.b16 %v3965
      %v4252 = vunpack.c.l.b16 %v3966
      %v4253 = vunpack.c.h.b16 %v3966
      %v4254 = vunpack.c.l.b16 %v3967
      %v4255 = vunpack.c.h.b16 %v3967
      %v4256 = vunpack.c.l.b16 %v3968
      %v4257 = vunpack.c.h.b16 %v3968
      %v4258 = vunpack.c.l.b16 %v3969
      %v4259 = vunpack.c.h.b16 %v3969
      %v4260 = vunpack.c.l.b16 %v3970
      %v4261 = vunpack.c.h.b16 %v3970
      %v4262 = vunpack.c.l.b16 %v3971
      %v4263 = vunpack.c.h.b16 %v3971
      %v4264 = vunpack.c.l.b16 %v3972
      %v4265 = vunpack.c.h.b16 %v3972
      %v4266 = vunpack.c.l.b16 %v3973
      %v4267 = vunpack.c.h.b16 %v3973
      %v4268 = vunpack.c.l.b16 %v3974
      %v4269 = vunpack.c.h.b16 %v3974
      %v4270 = vunpack.c.l.b16 %v3975
      %v4271 = vunpack.c.h.b16 %v3975
      %v4272 = vunpack.c.l.b16 %v3976
      %v4273 = vunpack.c.h.b16 %v3976
      %v4274 = vunpack.c.l.b16 %v3977
      %v4275 = vunpack.c.h.b16 %v3977
      %v4276 = vunpack.c.l.b16 %v3978
      %v4277 = vunpack.c.h.b16 %v3978
      %v4278 = vunpack.c.l.b16 %v3979
      %v4279 = vunpack.c.h.b16 %v3979
      %v4280 = vunpack.c.l.b16 %v3980
      %v4281 = vunpack.c.h.b16 %v3980
      %v4282 = vunpack.c.l.b16 %v3981
      %v4283 = vunpack.c.h.b16 %v3981
      %v4284 = vunpack.c.l.b16 %v3982
      %v4285 = vunpack.c.h.b16 %v3982
      %v4286 = vunpack.c.l.b16 %v3983
      %v4287 = vunpack.c.h.b16 %v3983
      %v4288 = vunpack.c.l.b16 %v3984
      %v4289 = vunpack.c.h.b16 %v3984
      %v4290 = vunpack.c.l.b16 %v3985
      %v4291 = vunpack.c.h.b16 %v3985
      %v4292 = vunpack.c.l.b16 %v3986
      %v4293 = vunpack.c.h.b16 %v3986
      %v4294 = vunpack.c.l.b16 %v3987
      %v4295 = vunpack.c.h.b16 %v3987
      %v4296 = vunpack.c.l.b16 %v3988
      %v4297 = vunpack.c.h.b16 %v3988
      %v4298 = vunpack.c.l.b16 %v3989
      %v4299 = vunpack.c.h.b16 %v3989
      %v4300 = vunpack.c.l.b16 %v3990
      %v4301 = vunpack.c.h.b16 %v3990
      %v4302 = vunpack.c.l.b16 %v3991
      %v4303 = vunpack.c.h.b16 %v3991
      %v4304 = vunpack.c.l.b16 %v3992
      %v4305 = vunpack.c.h.b16 %v3992
      %v4306 = vunpack.c.l.b16 %v3993
      %v4307 = vunpack.c.h.b16 %v3993
      %v4308 = vunpack.c.l.b16 %v3994
      %v4309 = vunpack.c.h.b16 %v3994
      %v4310 = vunpack.c.l.b16 %v3995
      %v4311 = vunpack.c.h.b16 %v3995
      %v4312 = vunpack.c.l.b16 %v3996
      %v4313 = vunpack.c.h.b16 %v3996
      %v4314 = vunpack.c.l.b16 %v3997
      %v4315 = vunpack.c.h.b16 %v3997
      %v4316 = vunpack.c.l.b16 %v3998
      %v4317 = vunpack.c.h.b16 %v3998
      %v4318 = vunpack.c.l.b16 %v3999
      %v4319 = vunpack.c.h.b16 %v3999
      %v4320 = vunpack.c.l.b16 %v4000
      %v4321 = vunpack.c.h.b16 %v4000
      %v4322 = vunpack.c.l.b16 %v4001
      %v4323 = vunpack.c.h.b16 %v4001
      %v4324 = vunpack.c.l.b16 %v4002
      %v4325 = vunpack.c.h.b16 %v4002
      %v4326 = vunpack.c.l.b16 %v4003
      %v4327 = vunpack.c.h.b16 %v4003
      %v4328 = vunpack.c.l.b16 %v4004
      %v4329 = vunpack.c.h.b16 %v4004
      %v4330 = vunpack.c.l.b16 %v4005
      %v4331 = vunpack.c.h.b16 %v4005
      %v4332 = vunpack.c.l.b16 %v4006
      %v4333 = vunpack.c.h.b16 %v4006
      %v4334 = vunpack.c.l.b16 %v4007
      %v4335 = vunpack.c.h.b16 %v4007
      %v4336 = vunpack.c.l.b16 %v4008
      %v4337 = vunpack.c.h.b16 %v4008
      %v4338 = vunpack.c.l.b16 %v4009
      %v4339 = vunpack.c.h.b16 %v4009
      %v4340 = vunpack.c.l.b16 %v4010
      %v4341 = vunpack.c.h.b16 %v4010
      %v4342 = vunpack.c.l.b16 %v4011
      %v4343 = vunpack.c.h.b16 %v4011
      %v4344 = vunpack.c.l.b16 %v4012
      %v4345 = vunpack.c.h.b16 %v4012
      %v4346 = vunpack.c.l.b16 %v4013
      %v4347 = vunpack.c.h.b16 %v4013
      %v4348 = vunpack.c.l.b16 %v4014
      %v4349 = vunpack.c.h.b16 %v4014
      %v4350 = vunpack.c.l.b16 %v4015
      %v4351 = vunpack.c.h.b16 %v4015
      %v4352 = vunpack.c.l.b16 %v4016
      %v4353 = vunpack.c.h.b16 %v4016
      %v4354 = vunpack.c.l.b16 %v4017
      %v4355 = vunpack.c.h.b16 %v4017
      %v4356 = vunpack.c.l.b16 %v4018
      %v4357 = vunpack.c.h.b16 %v4018
      %v4358 = vunpack.c.l.b16 %v4019
      %v4359 = vunpack.c.h.b16 %v4019
      %v4360 = vunpack.c.l.b16 %v4020
      %v4361 = vunpack.c.h.b16 %v4020
      %v4362 = vunpack.c.l.b16 %v4021
      %v4363 = vunpack.c.h.b16 %v4021
      %v4364 = vunpack.c.l.b16 %v4022
      %v4365 = vunpack.c.h.b16 %v4022
      %v4366 = vunpack.c.l.b16 %v4023
      %v4367 = vunpack.c.h.b16 %v4023
      %v4368 = vunpack.c.l.b16 %v4024
      %v4369 = vunpack.c.h.b16 %v4024
      %v4370 = vunpack.c.l.b16 %v4025
      %v4371 = vunpack.c.h.b16 %v4025
      %v4372 = vunpack.c.l.b16 %v4026
      %v4373 = vunpack.c.h.b16 %v4026
      %v4374 = vunpack.c.l.b16 %v4027
      %v4375 = vunpack.c.h.b16 %v4027
      %v4376 = vpack.c.b16 %v4186, %v4184
      %v4377 = vpack.c.b16 %v4187, %v4185
      %v4378 = vpack.c.b16 %v4190, %v4188
      %v4379 = vpack.c.b16 %v4191, %v4189
      %v4380 = vpack.c.b16 %v4194, %v4192
      %v4381 = vpack.c.b16 %v4195, %v4193
      %v4382 = vpack.c.b16 %v4198, %v4196
      %v4383 = vpack.c.b16 %v4199, %v4197
      %v4384 = vpack.c.b16 %v4202, %v4200
      %v4385 = vpack.c.b16 %v4203, %v4201
      %v4386 = vpack.c.b16 %v4206, %v4204
      %v4387 = vpack.c.b16 %v4207, %v4205
      %v4388 = vpack.c.b16 %v4210, %v4208
      %v4389 = vpack.c.b16 %v4211, %v4209
      %v4390 = vpack.c.b16 %v4214, %v4212
      %v4391 = vpack.c.b16 %v4215, %v4213
      %v4392 = vpack.c.b16 %v4218, %v4216
      %v4393 = vpack.c.b16 %v4219, %v4217
      %v4394 = vpack.c.b16 %v4222, %v4220
      %v4395 = vpack.c.b16 %v4223, %v4221
      %v4396 = vpack.c.b16 %v4226, %v4224
      %v4397 = vpack.c.b16 %v4227, %v4225
      %v4398 = vpack.c.b16 %v4230, %v4228
      %v4399 = vpack.c.b16 %v4231, %v4229
      %v4400 = vpack.c.b16 %v4234, %v4232
      %v4401 = vpack.c.b16 %v4235, %v4233
      %v4402 = vpack.c.b16 %v4238, %v4236
      %v4403 = vpack.c.b16 %v4239, %v4237
      %v4404 = vpack.c.b16 %v4242, %v4240
      %v4405 = vpack.c.b16 %v4243, %v4241
      %v4406 = vpack.c.b16 %v4246, %v4244
      %v4407 = vpack.c.b16 %v4247, %v4245
      %v4408 = vpack.c.b16 %v4250, %v4248
      %v4409 = vpack.c.b16 %v4251, %v4249
      %v4410 = vpack.c.b16 %v4254, %v4252
      %v4411 = vpack.c.b16 %v4255, %v4253
      %v4412 = vpack.c.b16 %v4258, %v4256
      %v4413 = vpack.c.b16 %v4259, %v4257
      %v4414 = vpack.c.b16 %v4262, %v4260
      %v4415 = vpack.c.b16 %v4263, %v4261
      %v4416 = vpack.c.b16 %v4266, %v4264
      %v4417 = vpack.c.b16 %v4267, %v4265
      %v4418 = vpack.c.b16 %v4270, %v4268
      %v4419 = vpack.c.b16 %v4271, %v4269
      %v4420 = vpack.c.b16 %v4274, %v4272
      %v4421 = vpack.c.b16 %v4275, %v4273
      %v4422 = vpack.c.b16 %v4278, %v4276
      %v4423 = vpack.c.b16 %v4279, %v4277
      %v4424 = vpack.c.b16 %v4282, %v4280
      %v4425 = vpack.c.b16 %v4283, %v4281
      %v4426 = vpack.c.b16 %v4286, %v4284
      %v4427 = vpack.c.b16 %v4287, %v4285
      %v4428 = vpack.c.b16 %v4290, %v4288
      %v4429 = vpack.c.b16 %v4291, %v4289
      %v4430 = vpack.c.b16 %v4294, %v4292
      %v4431 = vpack.c.b16 %v4295, %v4293
      %v4432 = vpack.c.b16 %v4298, %v4296
      %v4433 = vpack.c.b16 %v4299, %v4297
      %v4434 = vpack.c.b16 %v4302, %v4300
      %v4435 = vpack.c.b16 %v4303, %v4301
      %v4436 = vpack.c.b16 %v4306, %v4304
      %v4437 = vpack.c.b16 %v4307, %v4305
      %v4438 = vpack.c.b16 %v4310, %v4308
      %v4439 = vpack.c.b16 %v4311, %v4309
      %v4440 = vpack.c.b16 %v4314, %v4312
      %v4441 = vpack.c.b16 %v4315, %v4313
      %v4442 = vpack.c.b16 %v4318, %v4316
      %v4443 = vpack.c.b16 %v4319, %v4317
      %v4444 = vpack.c.b16 %v4322, %v4320
      %v4445 = vpack.c.b16 %v4323, %v4321
      %v4446 = vpack.c.b16 %v4326, %v4324
      %v4447 = vpack.c.b16 %v4327, %v4325
      %v4448 = vpack.c.b16 %v4330, %v4328
      %v4449 = vpack.c.b16 %v4331, %v4329
      %v4450 = vpack.c.b16 %v4334, %v4332
      %v4451 = vpack.c.b16 %v4335, %v4333
      %v4452 = vpack.c.b16 %v4338, %v4336
      %v4453 = vpack.c.b16 %v4339, %v4337
      %v4454 = vpack.c.b16 %v4342, %v4340
      %v4455 = vpack.c.b16 %v4343, %v4341
      %v4456 = vpack.c.b16 %v4346, %v4344
      %v4457 = vpack.c.b16 %v4347, %v4345
      %v4458 = vpack.c.b16 %v4350, %v4348
      %v4459 = vpack.c.b16 %v4351, %v4349
      %v4460 = vpack.c.b16 %v4354, %v4352
      %v4461 = vpack.c.b16 %v4355, %v4353
      %v4462 = vpack.c.b16 %v4358, %v4356
      %v4463 = vpack.c.b16 %v4359, %v4357
      %v4464 = vpack.c.b16 %v4362, %v4360
      %v4465 = vpack.c.b16 %v4363, %v4361
      %v4466 = vpack.c.b16 %v4366, %v4364
      %v4467 = vpack.c.b16 %v4367, %v4365
      %v4468 = vpack.c.b16 %v4370, %v4368
      %v4469 = vpack.c.b16 %v4371, %v4369
      %v4470 = vpack.c.b16 %v4374, %v4372
      %v4471 = vpack.c.b16 %v4375, %v4373
      %4568 = vmatprep.subr.bf16.mxu0 %v4391
      %4569 = vmatpush1.bf16.msra.mxu0 %v4390
      %4570 = vmatprep.subr.bf16.mxu0 %v4389
      %4571 = vmatpush1.bf16.msra.mxu0 %v4388
      %4572 = vmatprep.subr.bf16.mxu0 %v4387
      %4573 = vmatpush1.bf16.msra.mxu0 %v4386
      %4574 = vmatprep.subr.bf16.mxu0 %v4385
      %4575 = vmatpush1.bf16.msra.mxu0 %v4384
      %4576 = vmatprep.subr.bf16.mxu0 %v4383
      %4577 = vmatpush1.bf16.msra.mxu0 %v4382
      %4578 = vmatprep.subr.bf16.mxu0 %v4381
      %4579 = vmatpush1.bf16.msra.mxu0 %v4380
      %4580 = vmatprep.subr.bf16.mxu0 %v4379
      %4581 = vmatpush1.bf16.msra.mxu0 %v4378
      %4582 = vmatprep.subr.bf16.mxu0 %v4377
      %4583 = vmatpush1.bf16.msra.mxu0 %v4376
      %4584 = vmatprep.subr.bf16.mxu0 %v4407
      %4585 = vmatpush2.bf16.msra.mxu0 %v4406
      %4586 = vmatprep.subr.bf16.mxu0 %v4405
      %4587 = vmatpush2.bf16.msra.mxu0 %v4404
      %4588 = vmatprep.subr.bf16.mxu0 %v4403
      %4589 = vmatpush2.bf16.msra.mxu0 %v4402
      %4590 = vmatprep.subr.bf16.mxu0 %v4401
      %4591 = vmatpush2.bf16.msra.mxu0 %v4400
      %4592 = vmatprep.subr.bf16.mxu0 %v4399
      %4593 = vmatpush2.bf16.msra.mxu0 %v4398
      %4594 = vmatprep.subr.bf16.mxu0 %v4397
      %4595 = vmatpush2.bf16.msra.mxu0 %v4396
      %4596 = vmatprep.subr.bf16.mxu0 %v4395
      %4597 = vmatpush2.bf16.msra.mxu0 %v4394
      %4598 = vmatprep.subr.bf16.mxu0 %v4393
      %4599 = vmatpush2.bf16.msra.mxu0 %v4392
      %4600 = vmatprep.mubr.bf16.mxu0 %v4065
      %4601 = vmatmul.mubr.bf16.gmra.mxu0 %v4064
      %v4602 = vpop.f32.mrf.mxu0
      %v4603 = vadd.f32 0.0, %v4602
      %v4604 = vpop.f32.mrf.mxu0
      %v4605 = vadd.f32 0.0, %v4604
      %v4606 = vpop.f32.mrf.mxu0
      %v4607 = vadd.f32 0.0, %v4606
      %v4608 = vpop.f32.mrf.mxu0
      %v4609 = vadd.f32 0.0, %v4608
      %4610 = vmatprep.mubr.bf16.mxu0 %v4071
      %4611 = vmatmul.mubr.bf16.gmra.mxu0 %v4070
      %v4612 = vpop.f32.mrf.mxu0
      %v4613 = vadd.f32 0.0, %v4612
      %v4614 = vpop.f32.mrf.mxu0
      %v4615 = vadd.f32 0.0, %v4614
      %v4616 = vpop.f32.mrf.mxu0
      %v4617 = vadd.f32 0.0, %v4616
      %v4618 = vpop.f32.mrf.mxu0
      %v4619 = vadd.f32 0.0, %v4618
      %4620 = vdwg.mxu0
      %4621 = vmatprep.subr.bf16.mxu0 %v4423
      %4622 = vmatpush1.bf16.msra.mxu0 %v4422
      %4623 = vmatprep.subr.bf16.mxu0 %v4421
      %4624 = vmatpush1.bf16.msra.mxu0 %v4420
      %4625 = vmatprep.subr.bf16.mxu0 %v4419
      %4626 = vmatpush1.bf16.msra.mxu0 %v4418
      %4627 = vmatprep.subr.bf16.mxu0 %v4417
      %4628 = vmatpush1.bf16.msra.mxu0 %v4416
      %4629 = vmatprep.subr.bf16.mxu0 %v4415
      %4630 = vmatpush1.bf16.msra.mxu0 %v4414
      %4631 = vmatprep.subr.bf16.mxu0 %v4413
      %4632 = vmatpush1.bf16.msra.mxu0 %v4412
      %4633 = vmatprep.subr.bf16.mxu0 %v4411
      %4634 = vmatpush1.bf16.msra.mxu0 %v4410
      %4635 = vmatprep.subr.bf16.mxu0 %v4409
      %4636 = vmatpush1.bf16.msra.mxu0 %v4408
      %4637 = vmatprep.subr.bf16.mxu0 %v4439
      %4638 = vmatpush2.bf16.msra.mxu0 %v4438
      %4639 = vmatprep.subr.bf16.mxu0 %v4437
      %4640 = vmatpush2.bf16.msra.mxu0 %v4436
      %4641 = vmatprep.subr.bf16.mxu0 %v4435
      %4642 = vmatpush2.bf16.msra.mxu0 %v4434
      %4643 = vmatprep.subr.bf16.mxu0 %v4433
      %4644 = vmatpush2.bf16.msra.mxu0 %v4432
      %4645 = vmatprep.subr.bf16.mxu0 %v4431
      %4646 = vmatpush2.bf16.msra.mxu0 %v4430
      %4647 = vmatprep.subr.bf16.mxu0 %v4429
      %4648 = vmatpush2.bf16.msra.mxu0 %v4428
      %4649 = vmatprep.subr.bf16.mxu0 %v4427
      %4650 = vmatpush2.bf16.msra.mxu0 %v4426
      %4651 = vmatprep.subr.bf16.mxu0 %v4425
      %4652 = vmatpush2.bf16.msra.mxu0 %v4424
      %4653 = vmatprep.mubr.bf16.mxu0 %v4067
      %4654 = vmatmul.mubr.bf16.gmra.mxu0 %v4066
      %v4655 = vpop.f32.mrf.mxu0
      %v4656 = vadd.f32 %v4603, %v4655
      %v4657 = vpop.f32.mrf.mxu0
      %v4658 = vadd.f32 %v4605, %v4657
      %v4659 = vpop.f32.mrf.mxu0
      %v4660 = vadd.f32 %v4607, %v4659
      %v4661 = vpop.f32.mrf.mxu0
      %v4662 = vadd.f32 %v4609, %v4661
      %4663 = vmatprep.mubr.bf16.mxu0 %v4073
      %4664 = vmatmul.mubr.bf16.gmra.mxu0 %v4072
      %v4665 = vpop.f32.mrf.mxu0
      %v4666 = vadd.f32 %v4613, %v4665
      %v4667 = vpop.f32.mrf.mxu0
      %v4668 = vadd.f32 %v4615, %v4667
      %v4669 = vpop.f32.mrf.mxu0
      %v4670 = vadd.f32 %v4617, %v4669
      %v4671 = vpop.f32.mrf.mxu0
      %v4672 = vadd.f32 %v4619, %v4671
      %4673 = vdwg.mxu0
      %4674 = vmatprep.subr.bf16.mxu0 %v4455
      %4675 = vmatpush1.bf16.msra.mxu0 %v4454
      %4676 = vmatprep.subr.bf16.mxu0 %v4453
      %4677 = vmatpush1.bf16.msra.mxu0 %v4452
      %4678 = vmatprep.subr.bf16.mxu0 %v4451
      %4679 = vmatpush1.bf16.msra.mxu0 %v4450
      %4680 = vmatprep.subr.bf16.mxu0 %v4449
      %4681 = vmatpush1.bf16.msra.mxu0 %v4448
      %4682 = vmatprep.subr.bf16.mxu0 %v4447
      %4683 = vmatpush1.bf16.msra.mxu0 %v4446
      %4684 = vmatprep.subr.bf16.mxu0 %v4445
      %4685 = vmatpush1.bf16.msra.mxu0 %v4444
      %4686 = vmatprep.subr.bf16.mxu0 %v4443
      %4687 = vmatpush1.bf16.msra.mxu0 %v4442
      %4688 = vmatprep.subr.bf16.mxu0 %v4441
      %4689 = vmatpush1.bf16.msra.mxu0 %v4440
      %4690 = vmatprep.subr.bf16.mxu0 %v4471
      %4691 = vmatpush2.bf16.msra.mxu0 %v4470
      %4692 = vmatprep.subr.bf16.mxu0 %v4469
      %4693 = vmatpush2.bf16.msra.mxu0 %v4468
      %4694 = vmatprep.subr.bf16.mxu0 %v4467
      %4695 = vmatpush2.bf16.msra.mxu0 %v4466
      %4696 = vmatprep.subr.bf16.mxu0 %v4465
      %4697 = vmatpush2.bf16.msra.mxu0 %v4464
      %4698 = vmatprep.subr.bf16.mxu0 %v4463
      %4699 = vmatpush2.bf16.msra.mxu0 %v4462
      %4700 = vmatprep.subr.bf16.mxu0 %v4461
      %4701 = vmatpush2.bf16.msra.mxu0 %v4460
      %4702 = vmatprep.subr.bf16.mxu0 %v4459
      %4703 = vmatpush2.bf16.msra.mxu0 %v4458
      %4704 = vmatprep.subr.bf16.mxu0 %v4457
      %4705 = vmatpush2.bf16.msra.mxu0 %v4456
      %4706 = vmatprep.mubr.bf16.mxu0 %v4069
      %4707 = vmatmul.mubr.bf16.gmra.mxu0 %v4068
      %v4708 = vpop.f32.mrf.mxu0
      %v4709 = vadd.f32 %v4656, %v4708
      %v4710 = vpop.f32.mrf.mxu0
      %v4711 = vadd.f32 %v4658, %v4710
      %v4712 = vpop.f32.mrf.mxu0
      %v4713 = vadd.f32 %v4660, %v4712
      %v4714 = vpop.f32.mrf.mxu0
      %v4715 = vadd.f32 %v4662, %v4714
      %4716 = vmatprep.mubr.bf16.mxu0 %v4075
      %4717 = vmatmul.mubr.bf16.gmra.mxu0 %v4074
      %v4718 = vpop.f32.mrf.mxu0
      %v4719 = vadd.f32 %v4666, %v4718
      %v4720 = vpop.f32.mrf.mxu0
      %v4721 = vadd.f32 %v4668, %v4720
      %v4722 = vpop.f32.mrf.mxu0
      %v4723 = vadd.f32 %v4670, %v4722
      %v4724 = vpop.f32.mrf.mxu0
      %v4725 = vadd.f32 %v4672, %v4724
      %4726 = vdwg.mxu0
      %v4727 = vunpack.c.l.b16 %v3714
      %v4728 = vunpack.c.h.b16 %v3714
      %v4729 = vunpack.c.l.b16 %v3727
      %v4730 = vunpack.c.h.b16 %v3727
      %v4731 = vunpack.c.l.b16 %v3740
      %v4732 = vunpack.c.h.b16 %v3740
      %v4733 = vunpack.c.l.b16 %v3749
      %v4734 = vunpack.c.h.b16 %v3749
      %v4735 = vunpack.c.l.b16 %v3758
      %v4736 = vunpack.c.h.b16 %v3758
      %v4737 = vunpack.c.l.b16 %v3767
      %v4738 = vunpack.c.h.b16 %v3767
      %v4739 = vunpack.c.l.b16 %v3780
      %v4740 = vunpack.c.h.b16 %v3780
      %v4741 = vunpack.c.l.b16 %v3793
      %v4742 = vunpack.c.h.b16 %v3793
      %v4743 = vunpack.c.l.b16 %v3806
      %v4744 = vunpack.c.h.b16 %v3806
      %v4745 = vunpack.c.l.b16 %v3815
      %v4746 = vunpack.c.h.b16 %v3815
      %v4747 = vunpack.c.l.b16 %v3824
      %v4748 = vunpack.c.h.b16 %v3824
      %v4749 = vunpack.c.l.b16 %v3833
      %v4750 = vunpack.c.h.b16 %v3833
      %v4751 = vpack.c.b16 %v4733, %v4727
      %v4752 = vpack.c.b16 %v4734, %v4728
      %v4753 = vpack.c.b16 %v4735, %v4729
      %v4754 = vpack.c.b16 %v4736, %v4730
      %v4755 = vpack.c.b16 %v4737, %v4731
      %v4756 = vpack.c.b16 %v4738, %v4732
      %v4757 = vpack.c.b16 %v4745, %v4739
      %v4758 = vpack.c.b16 %v4746, %v4740
      %v4759 = vpack.c.b16 %v4747, %v4741
      %v4760 = vpack.c.b16 %v4748, %v4742
      %v4761 = vpack.c.b16 %v4749, %v4743
      %v4762 = vpack.c.b16 %v4750, %v4744
      %v4871 = vunpack.c.l.b16 %v3835
      %v4872 = vunpack.c.h.b16 %v3835
      %v4873 = vunpack.c.l.b16 %v3836
      %v4874 = vunpack.c.h.b16 %v3836
      %v4875 = vunpack.c.l.b16 %v3837
      %v4876 = vunpack.c.h.b16 %v3837
      %v4877 = vunpack.c.l.b16 %v3838
      %v4878 = vunpack.c.h.b16 %v3838
      %v4879 = vunpack.c.l.b16 %v3839
      %v4880 = vunpack.c.h.b16 %v3839
      %v4881 = vunpack.c.l.b16 %v3840
      %v4882 = vunpack.c.h.b16 %v3840
      %v4883 = vunpack.c.l.b16 %v3841
      %v4884 = vunpack.c.h.b16 %v3841
      %v4885 = vunpack.c.l.b16 %v3842
      %v4886 = vunpack.c.h.b16 %v3842
      %v4887 = vunpack.c.l.b16 %v3843
      %v4888 = vunpack.c.h.b16 %v3843
      %v4889 = vunpack.c.l.b16 %v3844
      %v4890 = vunpack.c.h.b16 %v3844
      %v4891 = vunpack.c.l.b16 %v3845
      %v4892 = vunpack.c.h.b16 %v3845
      %v4893 = vunpack.c.l.b16 %v3846
      %v4894 = vunpack.c.h.b16 %v3846
      %v4895 = vunpack.c.l.b16 %v3847
      %v4896 = vunpack.c.h.b16 %v3847
      %v4897 = vunpack.c.l.b16 %v3848
      %v4898 = vunpack.c.h.b16 %v3848
      %v4899 = vunpack.c.l.b16 %v3849
      %v4900 = vunpack.c.h.b16 %v3849
      %v4901 = vunpack.c.l.b16 %v3850
      %v4902 = vunpack.c.h.b16 %v3850
      %v4903 = vunpack.c.l.b16 %v3851
      %v4904 = vunpack.c.h.b16 %v3851
      %v4905 = vunpack.c.l.b16 %v3852
      %v4906 = vunpack.c.h.b16 %v3852
      %v4907 = vunpack.c.l.b16 %v3853
      %v4908 = vunpack.c.h.b16 %v3853
      %v4909 = vunpack.c.l.b16 %v3854
      %v4910 = vunpack.c.h.b16 %v3854
      %v4911 = vunpack.c.l.b16 %v3855
      %v4912 = vunpack.c.h.b16 %v3855
      %v4913 = vunpack.c.l.b16 %v3856
      %v4914 = vunpack.c.h.b16 %v3856
      %v4915 = vunpack.c.l.b16 %v3857
      %v4916 = vunpack.c.h.b16 %v3857
      %v4917 = vunpack.c.l.b16 %v3858
      %v4918 = vunpack.c.h.b16 %v3858
      %v4919 = vunpack.c.l.b16 %v3859
      %v4920 = vunpack.c.h.b16 %v3859
      %v4921 = vunpack.c.l.b16 %v3860
      %v4922 = vunpack.c.h.b16 %v3860
      %v4923 = vunpack.c.l.b16 %v3861
      %v4924 = vunpack.c.h.b16 %v3861
      %v4925 = vunpack.c.l.b16 %v3862
      %v4926 = vunpack.c.h.b16 %v3862
      %v4927 = vunpack.c.l.b16 %v3863
      %v4928 = vunpack.c.h.b16 %v3863
      %v4929 = vunpack.c.l.b16 %v3864
      %v4930 = vunpack.c.h.b16 %v3864
      %v4931 = vunpack.c.l.b16 %v3865
      %v4932 = vunpack.c.h.b16 %v3865
      %v4933 = vunpack.c.l.b16 %v3866
      %v4934 = vunpack.c.h.b16 %v3866
      %v4935 = vunpack.c.l.b16 %v3867
      %v4936 = vunpack.c.h.b16 %v3867
      %v4937 = vunpack.c.l.b16 %v3868
      %v4938 = vunpack.c.h.b16 %v3868
      %v4939 = vunpack.c.l.b16 %v3869
      %v4940 = vunpack.c.h.b16 %v3869
      %v4941 = vunpack.c.l.b16 %v3870
      %v4942 = vunpack.c.h.b16 %v3870
      %v4943 = vunpack.c.l.b16 %v3871
      %v4944 = vunpack.c.h.b16 %v3871
      %v4945 = vunpack.c.l.b16 %v3872
      %v4946 = vunpack.c.h.b16 %v3872
      %v4947 = vunpack.c.l.b16 %v3873
      %v4948 = vunpack.c.h.b16 %v3873
      %v4949 = vunpack.c.l.b16 %v3874
      %v4950 = vunpack.c.h.b16 %v3874
      %v4951 = vunpack.c.l.b16 %v3875
      %v4952 = vunpack.c.h.b16 %v3875
      %v4953 = vunpack.c.l.b16 %v3876
      %v4954 = vunpack.c.h.b16 %v3876
      %v4955 = vunpack.c.l.b16 %v3877
      %v4956 = vunpack.c.h.b16 %v3877
      %v4957 = vunpack.c.l.b16 %v3878
      %v4958 = vunpack.c.h.b16 %v3878
      %v4959 = vunpack.c.l.b16 %v3879
      %v4960 = vunpack.c.h.b16 %v3879
      %v4961 = vunpack.c.l.b16 %v3880
      %v4962 = vunpack.c.h.b16 %v3880
      %v4963 = vunpack.c.l.b16 %v3881
      %v4964 = vunpack.c.h.b16 %v3881
      %v4965 = vunpack.c.l.b16 %v3882
      %v4966 = vunpack.c.h.b16 %v3882
      %v4967 = vunpack.c.l.b16 %v3883
      %v4968 = vunpack.c.h.b16 %v3883
      %v4969 = vunpack.c.l.b16 %v3884
      %v4970 = vunpack.c.h.b16 %v3884
      %v4971 = vunpack.c.l.b16 %v3885
      %v4972 = vunpack.c.h.b16 %v3885
      %v4973 = vunpack.c.l.b16 %v3886
      %v4974 = vunpack.c.h.b16 %v3886
      %v4975 = vunpack.c.l.b16 %v3887
      %v4976 = vunpack.c.h.b16 %v3887
      %v4977 = vunpack.c.l.b16 %v3888
      %v4978 = vunpack.c.h.b16 %v3888
      %v4979 = vunpack.c.l.b16 %v3889
      %v4980 = vunpack.c.h.b16 %v3889
      %v4981 = vunpack.c.l.b16 %v3890
      %v4982 = vunpack.c.h.b16 %v3890
      %v4983 = vunpack.c.l.b16 %v3891
      %v4984 = vunpack.c.h.b16 %v3891
      %v4985 = vunpack.c.l.b16 %v3892
      %v4986 = vunpack.c.h.b16 %v3892
      %v4987 = vunpack.c.l.b16 %v3893
      %v4988 = vunpack.c.h.b16 %v3893
      %v4989 = vunpack.c.l.b16 %v3894
      %v4990 = vunpack.c.h.b16 %v3894
      %v4991 = vunpack.c.l.b16 %v3895
      %v4992 = vunpack.c.h.b16 %v3895
      %v4993 = vunpack.c.l.b16 %v3896
      %v4994 = vunpack.c.h.b16 %v3896
      %v4995 = vunpack.c.l.b16 %v3897
      %v4996 = vunpack.c.h.b16 %v3897
      %v4997 = vunpack.c.l.b16 %v3898
      %v4998 = vunpack.c.h.b16 %v3898
      %v4999 = vunpack.c.l.b16 %v3899
      %v5000 = vunpack.c.h.b16 %v3899
      %v5001 = vunpack.c.l.b16 %v3900
      %v5002 = vunpack.c.h.b16 %v3900
      %v5003 = vunpack.c.l.b16 %v3901
      %v5004 = vunpack.c.h.b16 %v3901
      %v5005 = vunpack.c.l.b16 %v3902
      %v5006 = vunpack.c.h.b16 %v3902
      %v5007 = vunpack.c.l.b16 %v3903
      %v5008 = vunpack.c.h.b16 %v3903
      %v5009 = vunpack.c.l.b16 %v3904
      %v5010 = vunpack.c.h.b16 %v3904
      %v5011 = vunpack.c.l.b16 %v3905
      %v5012 = vunpack.c.h.b16 %v3905
      %v5013 = vunpack.c.l.b16 %v3906
      %v5014 = vunpack.c.h.b16 %v3906
      %v5015 = vunpack.c.l.b16 %v3907
      %v5016 = vunpack.c.h.b16 %v3907
      %v5017 = vunpack.c.l.b16 %v3908
      %v5018 = vunpack.c.h.b16 %v3908
      %v5019 = vunpack.c.l.b16 %v3909
      %v5020 = vunpack.c.h.b16 %v3909
      %v5021 = vunpack.c.l.b16 %v3910
      %v5022 = vunpack.c.h.b16 %v3910
      %v5023 = vunpack.c.l.b16 %v3911
      %v5024 = vunpack.c.h.b16 %v3911
      %v5025 = vunpack.c.l.b16 %v3912
      %v5026 = vunpack.c.h.b16 %v3912
      %v5027 = vunpack.c.l.b16 %v3913
      %v5028 = vunpack.c.h.b16 %v3913
      %v5029 = vunpack.c.l.b16 %v3914
      %v5030 = vunpack.c.h.b16 %v3914
      %v5031 = vunpack.c.l.b16 %v3915
      %v5032 = vunpack.c.h.b16 %v3915
      %v5033 = vunpack.c.l.b16 %v3916
      %v5034 = vunpack.c.h.b16 %v3916
      %v5035 = vunpack.c.l.b16 %v3917
      %v5036 = vunpack.c.h.b16 %v3917
      %v5037 = vunpack.c.l.b16 %v3918
      %v5038 = vunpack.c.h.b16 %v3918
      %v5039 = vunpack.c.l.b16 %v3919
      %v5040 = vunpack.c.h.b16 %v3919
      %v5041 = vunpack.c.l.b16 %v3920
      %v5042 = vunpack.c.h.b16 %v3920
      %v5043 = vunpack.c.l.b16 %v3921
      %v5044 = vunpack.c.h.b16 %v3921
      %v5045 = vunpack.c.l.b16 %v3922
      %v5046 = vunpack.c.h.b16 %v3922
      %v5047 = vunpack.c.l.b16 %v3923
      %v5048 = vunpack.c.h.b16 %v3923
      %v5049 = vunpack.c.l.b16 %v3924
      %v5050 = vunpack.c.h.b16 %v3924
      %v5051 = vunpack.c.l.b16 %v3925
      %v5052 = vunpack.c.h.b16 %v3925
      %v5053 = vunpack.c.l.b16 %v3926
      %v5054 = vunpack.c.h.b16 %v3926
      %v5055 = vunpack.c.l.b16 %v3927
      %v5056 = vunpack.c.h.b16 %v3927
      %v5057 = vunpack.c.l.b16 %v3928
      %v5058 = vunpack.c.h.b16 %v3928
      %v5059 = vunpack.c.l.b16 %v3929
      %v5060 = vunpack.c.h.b16 %v3929
      %v5061 = vunpack.c.l.b16 %v3930
      %v5062 = vunpack.c.h.b16 %v3930
      %v5063 = vpack.c.b16 %v4873, %v4871
      %v5064 = vpack.c.b16 %v4874, %v4872
      %v5065 = vpack.c.b16 %v4877, %v4875
      %v5066 = vpack.c.b16 %v4878, %v4876
      %v5067 = vpack.c.b16 %v4881, %v4879
      %v5068 = vpack.c.b16 %v4882, %v4880
      %v5069 = vpack.c.b16 %v4885, %v4883
      %v5070 = vpack.c.b16 %v4886, %v4884
      %v5071 = vpack.c.b16 %v4889, %v4887
      %v5072 = vpack.c.b16 %v4890, %v4888
      %v5073 = vpack.c.b16 %v4893, %v4891
      %v5074 = vpack.c.b16 %v4894, %v4892
      %v5075 = vpack.c.b16 %v4897, %v4895
      %v5076 = vpack.c.b16 %v4898, %v4896
      %v5077 = vpack.c.b16 %v4901, %v4899
      %v5078 = vpack.c.b16 %v4902, %v4900
      %v5079 = vpack.c.b16 %v4905, %v4903
      %v5080 = vpack.c.b16 %v4906, %v4904
      %v5081 = vpack.c.b16 %v4909, %v4907
      %v5082 = vpack.c.b16 %v4910, %v4908
      %v5083 = vpack.c.b16 %v4913, %v4911
      %v5084 = vpack.c.b16 %v4914, %v4912
      %v5085 = vpack.c.b16 %v4917, %v4915
      %v5086 = vpack.c.b16 %v4918, %v4916
      %v5087 = vpack.c.b16 %v4921, %v4919
      %v5088 = vpack.c.b16 %v4922, %v4920
      %v5089 = vpack.c.b16 %v4925, %v4923
      %v5090 = vpack.c.b16 %v4926, %v4924
      %v5091 = vpack.c.b16 %v4929, %v4927
      %v5092 = vpack.c.b16 %v4930, %v4928
      %v5093 = vpack.c.b16 %v4933, %v4931
      %v5094 = vpack.c.b16 %v4934, %v4932
      %v5095 = vpack.c.b16 %v4937, %v4935
      %v5096 = vpack.c.b16 %v4938, %v4936
      %v5097 = vpack.c.b16 %v4941, %v4939
      %v5098 = vpack.c.b16 %v4942, %v4940
      %v5099 = vpack.c.b16 %v4945, %v4943
      %v5100 = vpack.c.b16 %v4946, %v4944
      %v5101 = vpack.c.b16 %v4949, %v4947
      %v5102 = vpack.c.b16 %v4950, %v4948
      %v5103 = vpack.c.b16 %v4953, %v4951
      %v5104 = vpack.c.b16 %v4954, %v4952
      %v5105 = vpack.c.b16 %v4957, %v4955
      %v5106 = vpack.c.b16 %v4958, %v4956
      %v5107 = vpack.c.b16 %v4961, %v4959
      %v5108 = vpack.c.b16 %v4962, %v4960
      %v5109 = vpack.c.b16 %v4965, %v4963
      %v5110 = vpack.c.b16 %v4966, %v4964
      %v5111 = vpack.c.b16 %v4969, %v4967
      %v5112 = vpack.c.b16 %v4970, %v4968
      %v5113 = vpack.c.b16 %v4973, %v4971
      %v5114 = vpack.c.b16 %v4974, %v4972
      %v5115 = vpack.c.b16 %v4977, %v4975
      %v5116 = vpack.c.b16 %v4978, %v4976
      %v5117 = vpack.c.b16 %v4981, %v4979
      %v5118 = vpack.c.b16 %v4982, %v4980
      %v5119 = vpack.c.b16 %v4985, %v4983
      %v5120 = vpack.c.b16 %v4986, %v4984
      %v5121 = vpack.c.b16 %v4989, %v4987
      %v5122 = vpack.c.b16 %v4990, %v4988
      %v5123 = vpack.c.b16 %v4993, %v4991
      %v5124 = vpack.c.b16 %v4994, %v4992
      %v5125 = vpack.c.b16 %v4997, %v4995
      %v5126 = vpack.c.b16 %v4998, %v4996
      %v5127 = vpack.c.b16 %v5001, %v4999
      %v5128 = vpack.c.b16 %v5002, %v5000
      %v5129 = vpack.c.b16 %v5005, %v5003
      %v5130 = vpack.c.b16 %v5006, %v5004
      %v5131 = vpack.c.b16 %v5009, %v5007
      %v5132 = vpack.c.b16 %v5010, %v5008
      %v5133 = vpack.c.b16 %v5013, %v5011
      %v5134 = vpack.c.b16 %v5014, %v5012
      %v5135 = vpack.c.b16 %v5017, %v5015
      %v5136 = vpack.c.b16 %v5018, %v5016
      %v5137 = vpack.c.b16 %v5021, %v5019
      %v5138 = vpack.c.b16 %v5022, %v5020
      %v5139 = vpack.c.b16 %v5025, %v5023
      %v5140 = vpack.c.b16 %v5026, %v5024
      %v5141 = vpack.c.b16 %v5029, %v5027
      %v5142 = vpack.c.b16 %v5030, %v5028
      %v5143 = vpack.c.b16 %v5033, %v5031
      %v5144 = vpack.c.b16 %v5034, %v5032
      %v5145 = vpack.c.b16 %v5037, %v5035
      %v5146 = vpack.c.b16 %v5038, %v5036
      %v5147 = vpack.c.b16 %v5041, %v5039
      %v5148 = vpack.c.b16 %v5042, %v5040
      %v5149 = vpack.c.b16 %v5045, %v5043
      %v5150 = vpack.c.b16 %v5046, %v5044
      %v5151 = vpack.c.b16 %v5049, %v5047
      %v5152 = vpack.c.b16 %v5050, %v5048
      %v5153 = vpack.c.b16 %v5053, %v5051
      %v5154 = vpack.c.b16 %v5054, %v5052
      %v5155 = vpack.c.b16 %v5057, %v5055
      %v5156 = vpack.c.b16 %v5058, %v5056
      %v5157 = vpack.c.b16 %v5061, %v5059
      %v5158 = vpack.c.b16 %v5062, %v5060
      %5255 = vmatprep.subr.bf16.mxu0 %v5078
      %5256 = vmatpush1.bf16.msra.mxu0 %v5077
      %5257 = vmatprep.subr.bf16.mxu0 %v5076
      %5258 = vmatpush1.bf16.msra.mxu0 %v5075
      %5259 = vmatprep.subr.bf16.mxu0 %v5074
      %5260 = vmatpush1.bf16.msra.mxu0 %v5073
      %5261 = vmatprep.subr.bf16.mxu0 %v5072
      %5262 = vmatpush1.bf16.msra.mxu0 %v5071
      %5263 = vmatprep.subr.bf16.mxu0 %v5070
      %5264 = vmatpush1.bf16.msra.mxu0 %v5069
      %5265 = vmatprep.subr.bf16.mxu0 %v5068
      %5266 = vmatpush1.bf16.msra.mxu0 %v5067
      %5267 = vmatprep.subr.bf16.mxu0 %v5066
      %5268 = vmatpush1.bf16.msra.mxu0 %v5065
      %5269 = vmatprep.subr.bf16.mxu0 %v5064
      %5270 = vmatpush1.bf16.msra.mxu0 %v5063
      %5271 = vmatprep.subr.bf16.mxu0 %v5094
      %5272 = vmatpush2.bf16.msra.mxu0 %v5093
      %5273 = vmatprep.subr.bf16.mxu0 %v5092
      %5274 = vmatpush2.bf16.msra.mxu0 %v5091
      %5275 = vmatprep.subr.bf16.mxu0 %v5090
      %5276 = vmatpush2.bf16.msra.mxu0 %v5089
      %5277 = vmatprep.subr.bf16.mxu0 %v5088
      %5278 = vmatpush2.bf16.msra.mxu0 %v5087
      %5279 = vmatprep.subr.bf16.mxu0 %v5086
      %5280 = vmatpush2.bf16.msra.mxu0 %v5085
      %5281 = vmatprep.subr.bf16.mxu0 %v5084
      %5282 = vmatpush2.bf16.msra.mxu0 %v5083
      %5283 = vmatprep.subr.bf16.mxu0 %v5082
      %5284 = vmatpush2.bf16.msra.mxu0 %v5081
      %5285 = vmatprep.subr.bf16.mxu0 %v5080
      %5286 = vmatpush2.bf16.msra.mxu0 %v5079
      %5287 = vmatprep.mubr.bf16.mxu0 %v4752
      %5288 = vmatmul.mubr.bf16.gmra.mxu0 %v4751
      %v5289 = vpop.f32.mrf.mxu0
      %v5290 = vadd.f32 %v4709, %v5289
      %v5291 = vpop.f32.mrf.mxu0
      %v5292 = vadd.f32 %v4711, %v5291
      %v5293 = vpop.f32.mrf.mxu0
      %v5294 = vadd.f32 %v4713, %v5293
      %v5295 = vpop.f32.mrf.mxu0
      %v5296 = vadd.f32 %v4715, %v5295
      %5297 = vmatprep.mubr.bf16.mxu0 %v4758
      %5298 = vmatmul.mubr.bf16.gmra.mxu0 %v4757
      %v5299 = vpop.f32.mrf.mxu0
      %v5300 = vadd.f32 %v4719, %v5299
      %v5301 = vpop.f32.mrf.mxu0
      %v5302 = vadd.f32 %v4721, %v5301
      %v5303 = vpop.f32.mrf.mxu0
      %v5304 = vadd.f32 %v4723, %v5303
      %v5305 = vpop.f32.mrf.mxu0
      %v5306 = vadd.f32 %v4725, %v5305
      %5307 = vdwg.mxu0
      %5308 = vmatprep.subr.bf16.mxu0 %v5110
      %5309 = vmatpush1.bf16.msra.mxu0 %v5109
      %5310 = vmatprep.subr.bf16.mxu0 %v5108
      %5311 = vmatpush1.bf16.msra.mxu0 %v5107
      %5312 = vmatprep.subr.bf16.mxu0 %v5106
      %5313 = vmatpush1.bf16.msra.mxu0 %v5105
      %5314 = vmatprep.subr.bf16.mxu0 %v5104
      %5315 = vmatpush1.bf16.msra.mxu0 %v5103
      %5316 = vmatprep.subr.bf16.mxu0 %v5102
      %5317 = vmatpush1.bf16.msra.mxu0 %v5101
      %5318 = vmatprep.subr.bf16.mxu0 %v5100
      %5319 = vmatpush1.bf16.msra.mxu0 %v5099
      %5320 = vmatprep.subr.bf16.mxu0 %v5098
      %5321 = vmatpush1.bf16.msra.mxu0 %v5097
      %5322 = vmatprep.subr.bf16.mxu0 %v5096
      %5323 = vmatpush1.bf16.msra.mxu0 %v5095
      %5324 = vmatprep.subr.bf16.mxu0 %v5126
      %5325 = vmatpush2.bf16.msra.mxu0 %v5125
      %5326 = vmatprep.subr.bf16.mxu0 %v5124
      %5327 = vmatpush2.bf16.msra.mxu0 %v5123
      %5328 = vmatprep.subr.bf16.mxu0 %v5122
      %5329 = vmatpush2.bf16.msra.mxu0 %v5121
      %5330 = vmatprep.subr.bf16.mxu0 %v5120
      %5331 = vmatpush2.bf16.msra.mxu0 %v5119
      %5332 = vmatprep.subr.bf16.mxu0 %v5118
      %5333 = vmatpush2.bf16.msra.mxu0 %v5117
      %5334 = vmatprep.subr.bf16.mxu0 %v5116
      %5335 = vmatpush2.bf16.msra.mxu0 %v5115
      %5336 = vmatprep.subr.bf16.mxu0 %v5114
      %5337 = vmatpush2.bf16.msra.mxu0 %v5113
      %5338 = vmatprep.subr.bf16.mxu0 %v5112
      %5339 = vmatpush2.bf16.msra.mxu0 %v5111
      %5340 = vmatprep.mubr.bf16.mxu0 %v4754
      %5341 = vmatmul.mubr.bf16.gmra.mxu0 %v4753
      %v5342 = vpop.f32.mrf.mxu0
      %v5343 = vadd.f32 %v5290, %v5342
      %v5344 = vpop.f32.mrf.mxu0
      %v5345 = vadd.f32 %v5292, %v5344
      %v5346 = vpop.f32.mrf.mxu0
      %v5347 = vadd.f32 %v5294, %v5346
      %v5348 = vpop.f32.mrf.mxu0
      %v5349 = vadd.f32 %v5296, %v5348
      %5350 = vmatprep.mubr.bf16.mxu0 %v4760
      %5351 = vmatmul.mubr.bf16.gmra.mxu0 %v4759
      %v5352 = vpop.f32.mrf.mxu0
      %v5353 = vadd.f32 %v5300, %v5352
      %v5354 = vpop.f32.mrf.mxu0
      %v5355 = vadd.f32 %v5302, %v5354
      %v5356 = vpop.f32.mrf.mxu0
      %v5357 = vadd.f32 %v5304, %v5356
      %v5358 = vpop.f32.mrf.mxu0
      %v5359 = vadd.f32 %v5306, %v5358
      %5360 = vdwg.mxu0
      %5361 = vmatprep.subr.bf16.mxu0 %v5142
      %5362 = vmatpush1.bf16.msra.mxu0 %v5141
      %5363 = vmatprep.subr.bf16.mxu0 %v5140
      %5364 = vmatpush1.bf16.msra.mxu0 %v5139
      %5365 = vmatprep.subr.bf16.mxu0 %v5138
      %5366 = vmatpush1.bf16.msra.mxu0 %v5137
      %5367 = vmatprep.subr.bf16.mxu0 %v5136
      %5368 = vmatpush1.bf16.msra.mxu0 %v5135
      %5369 = vmatprep.subr.bf16.mxu0 %v5134
      %5370 = vmatpush1.bf16.msra.mxu0 %v5133
      %5371 = vmatprep.subr.bf16.mxu0 %v5132
      %5372 = vmatpush1.bf16.msra.mxu0 %v5131
      %5373 = vmatprep.subr.bf16.mxu0 %v5130
      %5374 = vmatpush1.bf16.msra.mxu0 %v5129
      %5375 = vmatprep.subr.bf16.mxu0 %v5128
      %5376 = vmatpush1.bf16.msra.mxu0 %v5127
      %5377 = vmatprep.subr.bf16.mxu0 %v5158
      %5378 = vmatpush2.bf16.msra.mxu0 %v5157
      %5379 = vmatprep.subr.bf16.mxu0 %v5156
      %5380 = vmatpush2.bf16.msra.mxu0 %v5155
      %5381 = vmatprep.subr.bf16.mxu0 %v5154
      %5382 = vmatpush2.bf16.msra.mxu0 %v5153
      %5383 = vmatprep.subr.bf16.mxu0 %v5152
      %5384 = vmatpush2.bf16.msra.mxu0 %v5151
      %5385 = vmatprep.subr.bf16.mxu0 %v5150
      %5386 = vmatpush2.bf16.msra.mxu0 %v5149
      %5387 = vmatprep.subr.bf16.mxu0 %v5148
      %5388 = vmatpush2.bf16.msra.mxu0 %v5147
      %5389 = vmatprep.subr.bf16.mxu0 %v5146
      %5390 = vmatpush2.bf16.msra.mxu0 %v5145
      %5391 = vmatprep.subr.bf16.mxu0 %v5144
      %5392 = vmatpush2.bf16.msra.mxu0 %v5143
      %5393 = vmatprep.mubr.bf16.mxu0 %v4756
      %5394 = vmatmul.mubr.bf16.gmra.mxu0 %v4755
      %v5395 = vpop.f32.mrf.mxu0
      %v5396 = vadd.f32 %v5343, %v5395
      %v5397 = vpop.f32.mrf.mxu0
      %v5398 = vadd.f32 %v5345, %v5397
      %v5399 = vpop.f32.mrf.mxu0
      %v5400 = vadd.f32 %v5347, %v5399
      %v5401 = vpop.f32.mrf.mxu0
      %v5402 = vadd.f32 %v5349, %v5401
      %5403 = vmatprep.mubr.bf16.mxu0 %v4762
      %5404 = vmatmul.mubr.bf16.gmra.mxu0 %v4761
      %v5405 = vpop.f32.mrf.mxu0
      %v5406 = vadd.f32 %v5353, %v5405
      %v5407 = vpop.f32.mrf.mxu0
      %v5408 = vadd.f32 %v5355, %v5407
      %v5409 = vpop.f32.mrf.mxu0
      %v5410 = vadd.f32 %v5357, %v5409
      %v5411 = vpop.f32.mrf.mxu0
      %v5412 = vadd.f32 %v5359, %v5411
      %5413 = vdwg.mxu0
      %v5414 = vld [vmem:[#allocation3 + $0x18] sm:$0xff]
      %v5415 = vld [vmem:[#allocation3 + $0x20] sm:$0xff]
      %v5416 = vld [vmem:[#allocation3 + $0x28] sm:$0xff]
      %v5417 = vld [vmem:[#allocation3 + $0x30] sm:$0xff]
      %v5418 = vld [vmem:[#allocation3 + $0x38] sm:$0xff]
      %v5419 = vld [vmem:[#allocation3 + $0x40] sm:$0xff]
      %v5420 = vld [vmem:[#allocation3 + $0x48] sm:$0x11]
      %v5421 = vld [vmem:[#allocation3 + $0x50] sm:$0x11]
      %v5422 = vld [vmem:[#allocation3 + $0x58] sm:$0x11]
      %v5423 = vld [vmem:[#allocation3 + $0x78] sm:$0xff]
      %v5424 = vld [vmem:[#allocation3 + $0x80] sm:$0xff]
      %v5425 = vld [vmem:[#allocation3 + $0x88] sm:$0xff]
      %v5426 = vld [vmem:[#allocation3 + $0x90] sm:$0xff]
      %v5427 = vld [vmem:[#allocation3 + $0x98] sm:$0xff]
      %v5428 = vld [vmem:[#allocation3 + $0xa0] sm:$0xff]
      %v5429 = vld [vmem:[#allocation3 + $0xa8] sm:$0x11]
      %v5430 = vld [vmem:[#allocation3 + $0xb0] sm:$0x11]
      %v5431 = vld [vmem:[#allocation3 + $0xb8] sm:$0x11]
      %v5433 = vshrl.u32 %v5414, 16
      %v5435 = vrot.slane %v5433, 4
      %v5436 = vshll.u32 %v5414, 16
      %v5438 = vrot.slane %v5436, 5
      %v5439 = vor.u32 %v5435, %v5438
      %v5440 = vrot.slane %v5439, 4
      %v5442 = vshll.u32 %v5417, 16
      %v5444 = vrot.slane %v5442, 5
      %v5445 = vsel %vm2109, %v5440, %v5444
      %v5447 = vshrl.u32 %v5415, 16
      %v5449 = vrot.slane %v5447, 4
      %v5450 = vshll.u32 %v5415, 16
      %v5452 = vrot.slane %v5450, 5
      %v5453 = vor.u32 %v5449, %v5452
      %v5454 = vrot.slane %v5453, 4
      %v5456 = vshll.u32 %v5418, 16
      %v5458 = vrot.slane %v5456, 5
      %v5459 = vsel %vm2109, %v5454, %v5458
      %v5461 = vshrl.u32 %v5416, 16
      %v5463 = vrot.slane %v5461, 4
      %v5464 = vshll.u32 %v5416, 16
      %v5466 = vrot.slane %v5464, 5
      %v5467 = vor.u32 %v5463, %v5466
      %v5468 = vrot.slane %v5467, 4
      %v5470 = vshll.u32 %v5419, 16
      %v5472 = vrot.slane %v5470, 5
      %v5473 = vsel %vm2109, %v5468, %v5472
      %v5474 = vshrl.u32 %v5417, 16
      %v5476 = vrot.slane %v5474, 4
      %v5477 = vor.u32 %v5476, %v5444
      %v5478 = vrot.slane %v5477, 4
      %v5480 = vshll.u32 %v5420, 16
      %v5482 = vrot.slane %v5480, 5
      %v5483 = vsel %vm2109, %v5478, %v5482
      %v5484 = vshrl.u32 %v5418, 16
      %v5486 = vrot.slane %v5484, 4
      %v5487 = vor.u32 %v5486, %v5458
      %v5488 = vrot.slane %v5487, 4
      %v5490 = vshll.u32 %v5421, 16
      %v5492 = vrot.slane %v5490, 5
      %v5493 = vsel %vm2109, %v5488, %v5492
      %v5494 = vshrl.u32 %v5419, 16
      %v5496 = vrot.slane %v5494, 4
      %v5497 = vor.u32 %v5496, %v5472
      %v5498 = vrot.slane %v5497, 4
      %v5500 = vshll.u32 %v5422, 16
      %v5502 = vrot.slane %v5500, 5
      %v5503 = vsel %vm2109, %v5498, %v5502
      %v5505 = vshrl.u32 %v5423, 16
      %v5507 = vrot.slane %v5505, 4
      %v5508 = vshll.u32 %v5423, 16
      %v5510 = vrot.slane %v5508, 5
      %v5511 = vor.u32 %v5507, %v5510
      %v5512 = vrot.slane %v5511, 4
      %v5514 = vshll.u32 %v5426, 16
      %v5516 = vrot.slane %v5514, 5
      %v5517 = vsel %vm2109, %v5512, %v5516
      %v5519 = vshrl.u32 %v5424, 16
      %v5521 = vrot.slane %v5519, 4
      %v5522 = vshll.u32 %v5424, 16
      %v5524 = vrot.slane %v5522, 5
      %v5525 = vor.u32 %v5521, %v5524
      %v5526 = vrot.slane %v5525, 4
      %v5528 = vshll.u32 %v5427, 16
      %v5530 = vrot.slane %v5528, 5
      %v5531 = vsel %vm2109, %v5526, %v5530
      %v5533 = vshrl.u32 %v5425, 16
      %v5535 = vrot.slane %v5533, 4
      %v5536 = vshll.u32 %v5425, 16
      %v5538 = vrot.slane %v5536, 5
      %v5539 = vor.u32 %v5535, %v5538
      %v5540 = vrot.slane %v5539, 4
      %v5542 = vshll.u32 %v5428, 16
      %v5544 = vrot.slane %v5542, 5
      %v5545 = vsel %vm2109, %v5540, %v5544
      %v5546 = vshrl.u32 %v5426, 16
      %v5548 = vrot.slane %v5546, 4
      %v5549 = vor.u32 %v5548, %v5516
      %v5550 = vrot.slane %v5549, 4
      %v5552 = vshll.u32 %v5429, 16
      %v5554 = vrot.slane %v5552, 5
      %v5555 = vsel %vm2109, %v5550, %v5554
      %v5556 = vshrl.u32 %v5427, 16
      %v5558 = vrot.slane %v5556, 4
      %v5559 = vor.u32 %v5558, %v5530
      %v5560 = vrot.slane %v5559, 4
      %v5562 = vshll.u32 %v5430, 16
      %v5564 = vrot.slane %v5562, 5
      %v5565 = vsel %vm2109, %v5560, %v5564
      %v5566 = vshrl.u32 %v5428, 16
      %v5568 = vrot.slane %v5566, 4
      %v5569 = vor.u32 %v5568, %v5544
      %v5570 = vrot.slane %v5569, 4
      %v5572 = vshll.u32 %v5431, 16
      %v5574 = vrot.slane %v5572, 5
      %v5575 = vsel %vm2109, %v5570, %v5574
      %s5576 = scalar_lea.vmem %s1, 3840
      %v5577 = vld [vmem:[%s5576] sm:$0xff]
      %v5578 = vld [vmem:[%s5576 + $0x8] sm:$0xff]
      %v5579 = vld [vmem:[%s5576 + $0x10] sm:$0xff]
      %v5580 = vld [vmem:[%s5576 + $0x18] sm:$0xff]
      %v5581 = vld [vmem:[%s5576 + $0x20] sm:$0xff]
      %v5582 = vld [vmem:[%s5576 + $0x28] sm:$0xff]
      %v5583 = vld [vmem:[%s5576 + $0x30] sm:$0xff]
      %v5584 = vld [vmem:[%s5576 + $0x38] sm:$0xff]
      %v5585 = vld [vmem:[%s5576 + $0x40] sm:$0xff]
      %v5586 = vld [vmem:[%s5576 + $0x48] sm:$0xff]
      %v5587 = vld [vmem:[%s5576 + $0x50] sm:$0xff]
      %v5588 = vld [vmem:[%s5576 + $0x58] sm:$0xff]
      %v5589 = vld [vmem:[%s5576 + $0x60] sm:$0xff]
      %v5590 = vld [vmem:[%s5576 + $0x68] sm:$0xff]
      %v5591 = vld [vmem:[%s5576 + $0x70] sm:$0xff]
      %v5592 = vld [vmem:[%s5576 + $0x78] sm:$0xff]
      %v5593 = vld [vmem:[%s5576 + $0x80] sm:$0xff]
      %v5594 = vld [vmem:[%s5576 + $0x88] sm:$0xff]
      %v5595 = vld [vmem:[%s5576 + $0x90] sm:$0xff]
      %v5596 = vld [vmem:[%s5576 + $0x98] sm:$0xff]
      %v5597 = vld [vmem:[%s5576 + $0xa0] sm:$0xff]
      %v5598 = vld [vmem:[%s5576 + $0xa8] sm:$0xff]
      %v5599 = vld [vmem:[%s5576 + $0xb0] sm:$0xff]
      %v5600 = vld [vmem:[%s5576 + $0xb8] sm:$0xff]
      %v5601 = vld [vmem:[%s5576 + $0xc0] sm:$0xff]
      %v5602 = vld [vmem:[%s5576 + $0xc8] sm:$0xff]
      %v5603 = vld [vmem:[%s5576 + $0xd0] sm:$0xff]
      %v5604 = vld [vmem:[%s5576 + $0xd8] sm:$0xff]
      %v5605 = vld [vmem:[%s5576 + $0xe0] sm:$0xff]
      %v5606 = vld [vmem:[%s5576 + $0xe8] sm:$0xff]
      %v5607 = vld [vmem:[%s5576 + $0xf0] sm:$0xff]
      %v5608 = vld [vmem:[%s5576 + $0xf8] sm:$0xff]
      %v5609 = vld [vmem:[%s5576 + $0x100] sm:$0xff]
      %v5610 = vld [vmem:[%s5576 + $0x108] sm:$0xff]
      %v5611 = vld [vmem:[%s5576 + $0x110] sm:$0xff]
      %v5612 = vld [vmem:[%s5576 + $0x118] sm:$0xff]
      %v5613 = vld [vmem:[%s5576 + $0x120] sm:$0xff]
      %v5614 = vld [vmem:[%s5576 + $0x128] sm:$0xff]
      %v5615 = vld [vmem:[%s5576 + $0x130] sm:$0xff]
      %v5616 = vld [vmem:[%s5576 + $0x138] sm:$0xff]
      %v5617 = vld [vmem:[%s5576 + $0x140] sm:$0xff]
      %v5618 = vld [vmem:[%s5576 + $0x148] sm:$0xff]
      %v5619 = vld [vmem:[%s5576 + $0x150] sm:$0xff]
      %v5620 = vld [vmem:[%s5576 + $0x158] sm:$0xff]
      %v5621 = vld [vmem:[%s5576 + $0x160] sm:$0xff]
      %v5622 = vld [vmem:[%s5576 + $0x168] sm:$0xff]
      %v5623 = vld [vmem:[%s5576 + $0x170] sm:$0xff]
      %v5624 = vld [vmem:[%s5576 + $0x178] sm:$0xff]
      %v5625 = vld [vmem:[%s5576 + $0x180] sm:$0xff]
      %v5626 = vld [vmem:[%s5576 + $0x188] sm:$0xff]
      %v5627 = vld [vmem:[%s5576 + $0x190] sm:$0xff]
      %v5628 = vld [vmem:[%s5576 + $0x198] sm:$0xff]
      %v5629 = vld [vmem:[%s5576 + $0x1a0] sm:$0xff]
      %v5630 = vld [vmem:[%s5576 + $0x1a8] sm:$0xff]
      %v5631 = vld [vmem:[%s5576 + $0x1b0] sm:$0xff]
      %v5632 = vld [vmem:[%s5576 + $0x1b8] sm:$0xff]
      %v5633 = vld [vmem:[%s5576 + $0x1c0] sm:$0xff]
      %v5634 = vld [vmem:[%s5576 + $0x1c8] sm:$0xff]
      %v5635 = vld [vmem:[%s5576 + $0x1d0] sm:$0xff]
      %v5636 = vld [vmem:[%s5576 + $0x1d8] sm:$0xff]
      %v5637 = vld [vmem:[%s5576 + $0x1e0] sm:$0xff]
      %v5638 = vld [vmem:[%s5576 + $0x1e8] sm:$0xff]
      %v5639 = vld [vmem:[%s5576 + $0x1f0] sm:$0xff]
      %v5640 = vld [vmem:[%s5576 + $0x1f8] sm:$0xff]
      %v5641 = vld [vmem:[%s5576 + $0x200] sm:$0xff]
      %v5642 = vld [vmem:[%s5576 + $0x208] sm:$0xff]
      %v5643 = vld [vmem:[%s5576 + $0x210] sm:$0xff]
      %v5644 = vld [vmem:[%s5576 + $0x218] sm:$0xff]
      %v5645 = vld [vmem:[%s5576 + $0x220] sm:$0xff]
      %v5646 = vld [vmem:[%s5576 + $0x228] sm:$0xff]
      %v5647 = vld [vmem:[%s5576 + $0x230] sm:$0xff]
      %v5648 = vld [vmem:[%s5576 + $0x238] sm:$0xff]
      %v5649 = vld [vmem:[%s5576 + $0x240] sm:$0xff]
      %v5650 = vld [vmem:[%s5576 + $0x248] sm:$0xff]
      %v5651 = vld [vmem:[%s5576 + $0x250] sm:$0xff]
      %v5652 = vld [vmem:[%s5576 + $0x258] sm:$0xff]
      %v5653 = vld [vmem:[%s5576 + $0x260] sm:$0xff]
      %v5654 = vld [vmem:[%s5576 + $0x268] sm:$0xff]
      %v5655 = vld [vmem:[%s5576 + $0x270] sm:$0xff]
      %v5656 = vld [vmem:[%s5576 + $0x278] sm:$0xff]
      %v5657 = vld [vmem:[%s5576 + $0x280] sm:$0xff]
      %v5658 = vld [vmem:[%s5576 + $0x288] sm:$0xff]
      %v5659 = vld [vmem:[%s5576 + $0x290] sm:$0xff]
      %v5660 = vld [vmem:[%s5576 + $0x298] sm:$0xff]
      %v5661 = vld [vmem:[%s5576 + $0x2a0] sm:$0xff]
      %v5662 = vld [vmem:[%s5576 + $0x2a8] sm:$0xff]
      %v5663 = vld [vmem:[%s5576 + $0x2b0] sm:$0xff]
      %v5664 = vld [vmem:[%s5576 + $0x2b8] sm:$0xff]
      %v5665 = vld [vmem:[%s5576 + $0x2c0] sm:$0xff]
      %v5666 = vld [vmem:[%s5576 + $0x2c8] sm:$0xff]
      %v5667 = vld [vmem:[%s5576 + $0x2d0] sm:$0xff]
      %v5668 = vld [vmem:[%s5576 + $0x2d8] sm:$0xff]
      %v5669 = vld [vmem:[%s5576 + $0x2e0] sm:$0xff]
      %v5670 = vld [vmem:[%s5576 + $0x2e8] sm:$0xff]
      %v5671 = vld [vmem:[%s5576 + $0x2f0] sm:$0xff]
      %v5672 = vld [vmem:[%s5576 + $0x2f8] sm:$0xff]
      %v5673 = vunpack.c.l.b16 %v5445
      %v5674 = vunpack.c.h.b16 %v5445
      %v5675 = vunpack.c.l.b16 %v5459
      %v5676 = vunpack.c.h.b16 %v5459
      %v5677 = vunpack.c.l.b16 %v5473
      %v5678 = vunpack.c.h.b16 %v5473
      %v5679 = vunpack.c.l.b16 %v5483
      %v5680 = vunpack.c.h.b16 %v5483
      %v5681 = vunpack.c.l.b16 %v5493
      %v5682 = vunpack.c.h.b16 %v5493
      %v5683 = vunpack.c.l.b16 %v5503
      %v5684 = vunpack.c.h.b16 %v5503
      %v5685 = vunpack.c.l.b16 %v5517
      %v5686 = vunpack.c.h.b16 %v5517
      %v5687 = vunpack.c.l.b16 %v5531
      %v5688 = vunpack.c.h.b16 %v5531
      %v5689 = vunpack.c.l.b16 %v5545
      %v5690 = vunpack.c.h.b16 %v5545
      %v5691 = vunpack.c.l.b16 %v5555
      %v5692 = vunpack.c.h.b16 %v5555
      %v5693 = vunpack.c.l.b16 %v5565
      %v5694 = vunpack.c.h.b16 %v5565
      %v5695 = vunpack.c.l.b16 %v5575
      %v5696 = vunpack.c.h.b16 %v5575
      %v5697 = vpack.c.b16 %v5679, %v5673
      %v5698 = vpack.c.b16 %v5680, %v5674
      %v5699 = vpack.c.b16 %v5681, %v5675
      %v5700 = vpack.c.b16 %v5682, %v5676
      %v5701 = vpack.c.b16 %v5683, %v5677
      %v5702 = vpack.c.b16 %v5684, %v5678
      %v5703 = vpack.c.b16 %v5691, %v5685
      %v5704 = vpack.c.b16 %v5692, %v5686
      %v5705 = vpack.c.b16 %v5693, %v5687
      %v5706 = vpack.c.b16 %v5694, %v5688
      %v5707 = vpack.c.b16 %v5695, %v5689
      %v5708 = vpack.c.b16 %v5696, %v5690
      %v5817 = vunpack.c.l.b16 %v5577
      %v5818 = vunpack.c.h.b16 %v5577
      %v5819 = vunpack.c.l.b16 %v5578
      %v5820 = vunpack.c.h.b16 %v5578
      %v5821 = vunpack.c.l.b16 %v5579
      %v5822 = vunpack.c.h.b16 %v5579
      %v5823 = vunpack.c.l.b16 %v5580
      %v5824 = vunpack.c.h.b16 %v5580
      %v5825 = vunpack.c.l.b16 %v5581
      %v5826 = vunpack.c.h.b16 %v5581
      %v5827 = vunpack.c.l.b16 %v5582
      %v5828 = vunpack.c.h.b16 %v5582
      %v5829 = vunpack.c.l.b16 %v5583
      %v5830 = vunpack.c.h.b16 %v5583
      %v5831 = vunpack.c.l.b16 %v5584
      %v5832 = vunpack.c.h.b16 %v5584
      %v5833 = vunpack.c.l.b16 %v5585
      %v5834 = vunpack.c.h.b16 %v5585
      %v5835 = vunpack.c.l.b16 %v5586
      %v5836 = vunpack.c.h.b16 %v5586
      %v5837 = vunpack.c.l.b16 %v5587
      %v5838 = vunpack.c.h.b16 %v5587
      %v5839 = vunpack.c.l.b16 %v5588
      %v5840 = vunpack.c.h.b16 %v5588
      %v5841 = vunpack.c.l.b16 %v5589
      %v5842 = vunpack.c.h.b16 %v5589
      %v5843 = vunpack.c.l.b16 %v5590
      %v5844 = vunpack.c.h.b16 %v5590
      %v5845 = vunpack.c.l.b16 %v5591
      %v5846 = vunpack.c.h.b16 %v5591
      %v5847 = vunpack.c.l.b16 %v5592
      %v5848 = vunpack.c.h.b16 %v5592
      %v5849 = vunpack.c.l.b16 %v5593
      %v5850 = vunpack.c.h.b16 %v5593
      %v5851 = vunpack.c.l.b16 %v5594
      %v5852 = vunpack.c.h.b16 %v5594
      %v5853 = vunpack.c.l.b16 %v5595
      %v5854 = vunpack.c.h.b16 %v5595
      %v5855 = vunpack.c.l.b16 %v5596
      %v5856 = vunpack.c.h.b16 %v5596
      %v5857 = vunpack.c.l.b16 %v5597
      %v5858 = vunpack.c.h.b16 %v5597
      %v5859 = vunpack.c.l.b16 %v5598
      %v5860 = vunpack.c.h.b16 %v5598
      %v5861 = vunpack.c.l.b16 %v5599
      %v5862 = vunpack.c.h.b16 %v5599
      %v5863 = vunpack.c.l.b16 %v5600
      %v5864 = vunpack.c.h.b16 %v5600
      %v5865 = vunpack.c.l.b16 %v5601
      %v5866 = vunpack.c.h.b16 %v5601
      %v5867 = vunpack.c.l.b16 %v5602
      %v5868 = vunpack.c.h.b16 %v5602
      %v5869 = vunpack.c.l.b16 %v5603
      %v5870 = vunpack.c.h.b16 %v5603
      %v5871 = vunpack.c.l.b16 %v5604
      %v5872 = vunpack.c.h.b16 %v5604
      %v5873 = vunpack.c.l.b16 %v5605
      %v5874 = vunpack.c.h.b16 %v5605
      %v5875 = vunpack.c.l.b16 %v5606
      %v5876 = vunpack.c.h.b16 %v5606
      %v5877 = vunpack.c.l.b16 %v5607
      %v5878 = vunpack.c.h.b16 %v5607
      %v5879 = vunpack.c.l.b16 %v5608
      %v5880 = vunpack.c.h.b16 %v5608
      %v5881 = vunpack.c.l.b16 %v5609
      %v5882 = vunpack.c.h.b16 %v5609
      %v5883 = vunpack.c.l.b16 %v5610
      %v5884 = vunpack.c.h.b16 %v5610
      %v5885 = vunpack.c.l.b16 %v5611
      %v5886 = vunpack.c.h.b16 %v5611
      %v5887 = vunpack.c.l.b16 %v5612
      %v5888 = vunpack.c.h.b16 %v5612
      %v5889 = vunpack.c.l.b16 %v5613
      %v5890 = vunpack.c.h.b16 %v5613
      %v5891 = vunpack.c.l.b16 %v5614
      %v5892 = vunpack.c.h.b16 %v5614
      %v5893 = vunpack.c.l.b16 %v5615
      %v5894 = vunpack.c.h.b16 %v5615
      %v5895 = vunpack.c.l.b16 %v5616
      %v5896 = vunpack.c.h.b16 %v5616
      %v5897 = vunpack.c.l.b16 %v5617
      %v5898 = vunpack.c.h.b16 %v5617
      %v5899 = vunpack.c.l.b16 %v5618
      %v5900 = vunpack.c.h.b16 %v5618
      %v5901 = vunpack.c.l.b16 %v5619
      %v5902 = vunpack.c.h.b16 %v5619
      %v5903 = vunpack.c.l.b16 %v5620
      %v5904 = vunpack.c.h.b16 %v5620
      %v5905 = vunpack.c.l.b16 %v5621
      %v5906 = vunpack.c.h.b16 %v5621
      %v5907 = vunpack.c.l.b16 %v5622
      %v5908 = vunpack.c.h.b16 %v5622
      %v5909 = vunpack.c.l.b16 %v5623
      %v5910 = vunpack.c.h.b16 %v5623
      %v5911 = vunpack.c.l.b16 %v5624
      %v5912 = vunpack.c.h.b16 %v5624
      %v5913 = vunpack.c.l.b16 %v5625
      %v5914 = vunpack.c.h.b16 %v5625
      %v5915 = vunpack.c.l.b16 %v5626
      %v5916 = vunpack.c.h.b16 %v5626
      %v5917 = vunpack.c.l.b16 %v5627
      %v5918 = vunpack.c.h.b16 %v5627
      %v5919 = vunpack.c.l.b16 %v5628
      %v5920 = vunpack.c.h.b16 %v5628
      %v5921 = vunpack.c.l.b16 %v5629
      %v5922 = vunpack.c.h.b16 %v5629
      %v5923 = vunpack.c.l.b16 %v5630
      %v5924 = vunpack.c.h.b16 %v5630
      %v5925 = vunpack.c.l.b16 %v5631
      %v5926 = vunpack.c.h.b16 %v5631
      %v5927 = vunpack.c.l.b16 %v5632
      %v5928 = vunpack.c.h.b16 %v5632
      %v5929 = vunpack.c.l.b16 %v5633
      %v5930 = vunpack.c.h.b16 %v5633
      %v5931 = vunpack.c.l.b16 %v5634
      %v5932 = vunpack.c.h.b16 %v5634
      %v5933 = vunpack.c.l.b16 %v5635
      %v5934 = vunpack.c.h.b16 %v5635
      %v5935 = vunpack.c.l.b16 %v5636
      %v5936 = vunpack.c.h.b16 %v5636
      %v5937 = vunpack.c.l.b16 %v5637
      %v5938 = vunpack.c.h.b16 %v5637
      %v5939 = vunpack.c.l.b16 %v5638
      %v5940 = vunpack.c.h.b16 %v5638
      %v5941 = vunpack.c.l.b16 %v5639
      %v5942 = vunpack.c.h.b16 %v5639
      %v5943 = vunpack.c.l.b16 %v5640
      %v5944 = vunpack.c.h.b16 %v5640
      %v5945 = vunpack.c.l.b16 %v5641
      %v5946 = vunpack.c.h.b16 %v5641
      %v5947 = vunpack.c.l.b16 %v5642
      %v5948 = vunpack.c.h.b16 %v5642
      %v5949 = vunpack.c.l.b16 %v5643
      %v5950 = vunpack.c.h.b16 %v5643
      %v5951 = vunpack.c.l.b16 %v5644
      %v5952 = vunpack.c.h.b16 %v5644
      %v5953 = vunpack.c.l.b16 %v5645
      %v5954 = vunpack.c.h.b16 %v5645
      %v5955 = vunpack.c.l.b16 %v5646
      %v5956 = vunpack.c.h.b16 %v5646
      %v5957 = vunpack.c.l.b16 %v5647
      %v5958 = vunpack.c.h.b16 %v5647
      %v5959 = vunpack.c.l.b16 %v5648
      %v5960 = vunpack.c.h.b16 %v5648
      %v5961 = vunpack.c.l.b16 %v5649
      %v5962 = vunpack.c.h.b16 %v5649
      %v5963 = vunpack.c.l.b16 %v5650
      %v5964 = vunpack.c.h.b16 %v5650
      %v5965 = vunpack.c.l.b16 %v5651
      %v5966 = vunpack.c.h.b16 %v5651
      %v5967 = vunpack.c.l.b16 %v5652
      %v5968 = vunpack.c.h.b16 %v5652
      %v5969 = vunpack.c.l.b16 %v5653
      %v5970 = vunpack.c.h.b16 %v5653
      %v5971 = vunpack.c.l.b16 %v5654
      %v5972 = vunpack.c.h.b16 %v5654
      %v5973 = vunpack.c.l.b16 %v5655
      %v5974 = vunpack.c.h.b16 %v5655
      %v5975 = vunpack.c.l.b16 %v5656
      %v5976 = vunpack.c.h.b16 %v5656
      %v5977 = vunpack.c.l.b16 %v5657
      %v5978 = vunpack.c.h.b16 %v5657
      %v5979 = vunpack.c.l.b16 %v5658
      %v5980 = vunpack.c.h.b16 %v5658
      %v5981 = vunpack.c.l.b16 %v5659
      %v5982 = vunpack.c.h.b16 %v5659
      %v5983 = vunpack.c.l.b16 %v5660
      %v5984 = vunpack.c.h.b16 %v5660
      %v5985 = vunpack.c.l.b16 %v5661
      %v5986 = vunpack.c.h.b16 %v5661
      %v5987 = vunpack.c.l.b16 %v5662
      %v5988 = vunpack.c.h.b16 %v5662
      %v5989 = vunpack.c.l.b16 %v5663
      %v5990 = vunpack.c.h.b16 %v5663
      %v5991 = vunpack.c.l.b16 %v5664
      %v5992 = vunpack.c.h.b16 %v5664
      %v5993 = vunpack.c.l.b16 %v5665
      %v5994 = vunpack.c.h.b16 %v5665
      %v5995 = vunpack.c.l.b16 %v5666
      %v5996 = vunpack.c.h.b16 %v5666
      %v5997 = vunpack.c.l.b16 %v5667
      %v5998 = vunpack.c.h.b16 %v5667
      %v5999 = vunpack.c.l.b16 %v5668
      %v6000 = vunpack.c.h.b16 %v5668
      %v6001 = vunpack.c.l.b16 %v5669
      %v6002 = vunpack.c.h.b16 %v5669
      %v6003 = vunpack.c.l.b16 %v5670
      %v6004 = vunpack.c.h.b16 %v5670
      %v6005 = vunpack.c.l.b16 %v5671
      %v6006 = vunpack.c.h.b16 %v5671
      %v6007 = vunpack.c.l.b16 %v5672
      %v6008 = vunpack.c.h.b16 %v5672
      %v6009 = vpack.c.b16 %v5819, %v5817
      %v6010 = vpack.c.b16 %v5820, %v5818
      %v6011 = vpack.c.b16 %v5823, %v5821
      %v6012 = vpack.c.b16 %v5824, %v5822
      %v6013 = vpack.c.b16 %v5827, %v5825
      %v6014 = vpack.c.b16 %v5828, %v5826
      %v6015 = vpack.c.b16 %v5831, %v5829
      %v6016 = vpack.c.b16 %v5832, %v5830
      %v6017 = vpack.c.b16 %v5835, %v5833
      %v6018 = vpack.c.b16 %v5836, %v5834
      %v6019 = vpack.c.b16 %v5839, %v5837
      %v6020 = vpack.c.b16 %v5840, %v5838
      %v6021 = vpack.c.b16 %v5843, %v5841
      %v6022 = vpack.c.b16 %v5844, %v5842
      %v6023 = vpack.c.b16 %v5847, %v5845
      %v6024 = vpack.c.b16 %v5848, %v5846
      %v6025 = vpack.c.b16 %v5851, %v5849
      %v6026 = vpack.c.b16 %v5852, %v5850
      %v6027 = vpack.c.b16 %v5855, %v5853
      %v6028 = vpack.c.b16 %v5856, %v5854
      %v6029 = vpack.c.b16 %v5859, %v5857
      %v6030 = vpack.c.b16 %v5860, %v5858
      %v6031 = vpack.c.b16 %v5863, %v5861
      %v6032 = vpack.c.b16 %v5864, %v5862
      %v6033 = vpack.c.b16 %v5867, %v5865
      %v6034 = vpack.c.b16 %v5868, %v5866
      %v6035 = vpack.c.b16 %v5871, %v5869
      %v6036 = vpack.c.b16 %v5872, %v5870
      %v6037 = vpack.c.b16 %v5875, %v5873
      %v6038 = vpack.c.b16 %v5876, %v5874
      %v6039 = vpack.c.b16 %v5879, %v5877
      %v6040 = vpack.c.b16 %v5880, %v5878
      %v6041 = vpack.c.b16 %v5883, %v5881
      %v6042 = vpack.c.b16 %v5884, %v5882
      %v6043 = vpack.c.b16 %v5887, %v5885
      %v6044 = vpack.c.b16 %v5888, %v5886
      %v6045 = vpack.c.b16 %v5891, %v5889
      %v6046 = vpack.c.b16 %v5892, %v5890
      %v6047 = vpack.c.b16 %v5895, %v5893
      %v6048 = vpack.c.b16 %v5896, %v5894
      %v6049 = vpack.c.b16 %v5899, %v5897
      %v6050 = vpack.c.b16 %v5900, %v5898
      %v6051 = vpack.c.b16 %v5903, %v5901
      %v6052 = vpack.c.b16 %v5904, %v5902
      %v6053 = vpack.c.b16 %v5907, %v5905
      %v6054 = vpack.c.b16 %v5908, %v5906
      %v6055 = vpack.c.b16 %v5911, %v5909
      %v6056 = vpack.c.b16 %v5912, %v5910
      %v6057 = vpack.c.b16 %v5915, %v5913
      %v6058 = vpack.c.b16 %v5916, %v5914
      %v6059 = vpack.c.b16 %v5919, %v5917
      %v6060 = vpack.c.b16 %v5920, %v5918
      %v6061 = vpack.c.b16 %v5923, %v5921
      %v6062 = vpack.c.b16 %v5924, %v5922
      %v6063 = vpack.c.b16 %v5927, %v5925
      %v6064 = vpack.c.b16 %v5928, %v5926
      %v6065 = vpack.c.b16 %v5931, %v5929
      %v6066 = vpack.c.b16 %v5932, %v5930
      %v6067 = vpack.c.b16 %v5935, %v5933
      %v6068 = vpack.c.b16 %v5936, %v5934
      %v6069 = vpack.c.b16 %v5939, %v5937
      %v6070 = vpack.c.b16 %v5940, %v5938
      %v6071 = vpack.c.b16 %v5943, %v5941
      %v6072 = vpack.c.b16 %v5944, %v5942
      %v6073 = vpack.c.b16 %v5947, %v5945
      %v6074 = vpack.c.b16 %v5948, %v5946
      %v6075 = vpack.c.b16 %v5951, %v5949
      %v6076 = vpack.c.b16 %v5952, %v5950
      %v6077 = vpack.c.b16 %v5955, %v5953
      %v6078 = vpack.c.b16 %v5956, %v5954
      %v6079 = vpack.c.b16 %v5959, %v5957
      %v6080 = vpack.c.b16 %v5960, %v5958
      %v6081 = vpack.c.b16 %v5963, %v5961
      %v6082 = vpack.c.b16 %v5964, %v5962
      %v6083 = vpack.c.b16 %v5967, %v5965
      %v6084 = vpack.c.b16 %v5968, %v5966
      %v6085 = vpack.c.b16 %v5971, %v5969
      %v6086 = vpack.c.b16 %v5972, %v5970
      %v6087 = vpack.c.b16 %v5975, %v5973
      %v6088 = vpack.c.b16 %v5976, %v5974
      %v6089 = vpack.c.b16 %v5979, %v5977
      %v6090 = vpack.c.b16 %v5980, %v5978
      %v6091 = vpack.c.b16 %v5983, %v5981
      %v6092 = vpack.c.b16 %v5984, %v5982
      %v6093 = vpack.c.b16 %v5987, %v5985
      %v6094 = vpack.c.b16 %v5988, %v5986
      %v6095 = vpack.c.b16 %v5991, %v5989
      %v6096 = vpack.c.b16 %v5992, %v5990
      %v6097 = vpack.c.b16 %v5995, %v5993
      %v6098 = vpack.c.b16 %v5996, %v5994
      %v6099 = vpack.c.b16 %v5999, %v5997
      %v6100 = vpack.c.b16 %v6000, %v5998
      %v6101 = vpack.c.b16 %v6003, %v6001
      %v6102 = vpack.c.b16 %v6004, %v6002
      %v6103 = vpack.c.b16 %v6007, %v6005
      %v6104 = vpack.c.b16 %v6008, %v6006
      %6201 = vmatprep.subr.bf16.mxu0 %v6024
      %6202 = vmatpush1.bf16.msra.mxu0 %v6023
      %6203 = vmatprep.subr.bf16.mxu0 %v6022
      %6204 = vmatpush1.bf16.msra.mxu0 %v6021
      %6205 = vmatprep.subr.bf16.mxu0 %v6020
      %6206 = vmatpush1.bf16.msra.mxu0 %v6019
      %6207 = vmatprep.subr.bf16.mxu0 %v6018
      %6208 = vmatpush1.bf16.msra.mxu0 %v6017
      %6209 = vmatprep.subr.bf16.mxu0 %v6016
      %6210 = vmatpush1.bf16.msra.mxu0 %v6015
      %6211 = vmatprep.subr.bf16.mxu0 %v6014
      %6212 = vmatpush1.bf16.msra.mxu0 %v6013
      %6213 = vmatprep.subr.bf16.mxu0 %v6012
      %6214 = vmatpush1.bf16.msra.mxu0 %v6011
      %6215 = vmatprep.subr.bf16.mxu0 %v6010
      %6216 = vmatpush1.bf16.msra.mxu0 %v6009
      %6217 = vmatprep.subr.bf16.mxu0 %v6040
      %6218 = vmatpush2.bf16.msra.mxu0 %v6039
      %6219 = vmatprep.subr.bf16.mxu0 %v6038
      %6220 = vmatpush2.bf16.msra.mxu0 %v6037
      %6221 = vmatprep.subr.bf16.mxu0 %v6036
      %6222 = vmatpush2.bf16.msra.mxu0 %v6035
      %6223 = vmatprep.subr.bf16.mxu0 %v6034
      %6224 = vmatpush2.bf16.msra.mxu0 %v6033
      %6225 = vmatprep.subr.bf16.mxu0 %v6032
      %6226 = vmatpush2.bf16.msra.mxu0 %v6031
      %6227 = vmatprep.subr.bf16.mxu0 %v6030
      %6228 = vmatpush2.bf16.msra.mxu0 %v6029
      %6229 = vmatprep.subr.bf16.mxu0 %v6028
      %6230 = vmatpush2.bf16.msra.mxu0 %v6027
      %6231 = vmatprep.subr.bf16.mxu0 %v6026
      %6232 = vmatpush2.bf16.msra.mxu0 %v6025
      %6233 = vmatprep.mubr.bf16.mxu0 %v5698
      %6234 = vmatmul.mubr.bf16.gmra.mxu0 %v5697
      %v6235 = vpop.f32.mrf.mxu0
      %v6236 = vadd.f32 0.0, %v6235
      %v6237 = vpop.f32.mrf.mxu0
      %v6238 = vadd.f32 0.0, %v6237
      %v6239 = vpop.f32.mrf.mxu0
      %v6240 = vadd.f32 0.0, %v6239
      %v6241 = vpop.f32.mrf.mxu0
      %v6242 = vadd.f32 0.0, %v6241
      %6243 = vmatprep.mubr.bf16.mxu0 %v5704
      %6244 = vmatmul.mubr.bf16.gmra.mxu0 %v5703
      %v6245 = vpop.f32.mrf.mxu0
      %v6246 = vadd.f32 0.0, %v6245
      %v6247 = vpop.f32.mrf.mxu0
      %v6248 = vadd.f32 0.0, %v6247
      %v6249 = vpop.f32.mrf.mxu0
      %v6250 = vadd.f32 0.0, %v6249
      %v6251 = vpop.f32.mrf.mxu0
      %v6252 = vadd.f32 0.0, %v6251
      %6253 = vdwg.mxu0
      %6254 = vmatprep.subr.bf16.mxu0 %v6056
      %6255 = vmatpush1.bf16.msra.mxu0 %v6055
      %6256 = vmatprep.subr.bf16.mxu0 %v6054
      %6257 = vmatpush1.bf16.msra.mxu0 %v6053
      %6258 = vmatprep.subr.bf16.mxu0 %v6052
      %6259 = vmatpush1.bf16.msra.mxu0 %v6051
      %6260 = vmatprep.subr.bf16.mxu0 %v6050
      %6261 = vmatpush1.bf16.msra.mxu0 %v6049
      %6262 = vmatprep.subr.bf16.mxu0 %v6048
      %6263 = vmatpush1.bf16.msra.mxu0 %v6047
      %6264 = vmatprep.subr.bf16.mxu0 %v6046
      %6265 = vmatpush1.bf16.msra.mxu0 %v6045
      %6266 = vmatprep.subr.bf16.mxu0 %v6044
      %6267 = vmatpush1.bf16.msra.mxu0 %v6043
      %6268 = vmatprep.subr.bf16.mxu0 %v6042
      %6269 = vmatpush1.bf16.msra.mxu0 %v6041
      %6270 = vmatprep.subr.bf16.mxu0 %v6072
      %6271 = vmatpush2.bf16.msra.mxu0 %v6071
      %6272 = vmatprep.subr.bf16.mxu0 %v6070
      %6273 = vmatpush2.bf16.msra.mxu0 %v6069
      %6274 = vmatprep.subr.bf16.mxu0 %v6068
      %6275 = vmatpush2.bf16.msra.mxu0 %v6067
      %6276 = vmatprep.subr.bf16.mxu0 %v6066
      %6277 = vmatpush2.bf16.msra.mxu0 %v6065
      %6278 = vmatprep.subr.bf16.mxu0 %v6064
      %6279 = vmatpush2.bf16.msra.mxu0 %v6063
      %6280 = vmatprep.subr.bf16.mxu0 %v6062
      %6281 = vmatpush2.bf16.msra.mxu0 %v6061
      %6282 = vmatprep.subr.bf16.mxu0 %v6060
      %6283 = vmatpush2.bf16.msra.mxu0 %v6059
      %6284 = vmatprep.subr.bf16.mxu0 %v6058
      %6285 = vmatpush2.bf16.msra.mxu0 %v6057
      %6286 = vmatprep.mubr.bf16.mxu0 %v5700
      %6287 = vmatmul.mubr.bf16.gmra.mxu0 %v5699
      %v6288 = vpop.f32.mrf.mxu0
      %v6289 = vadd.f32 %v6236, %v6288
      %v6290 = vpop.f32.mrf.mxu0
      %v6291 = vadd.f32 %v6238, %v6290
      %v6292 = vpop.f32.mrf.mxu0
      %v6293 = vadd.f32 %v6240, %v6292
      %v6294 = vpop.f32.mrf.mxu0
      %v6295 = vadd.f32 %v6242, %v6294
      %6296 = vmatprep.mubr.bf16.mxu0 %v5706
      %6297 = vmatmul.mubr.bf16.gmra.mxu0 %v5705
      %v6298 = vpop.f32.mrf.mxu0
      %v6299 = vadd.f32 %v6246, %v6298
      %v6300 = vpop.f32.mrf.mxu0
      %v6301 = vadd.f32 %v6248, %v6300
      %v6302 = vpop.f32.mrf.mxu0
      %v6303 = vadd.f32 %v6250, %v6302
      %v6304 = vpop.f32.mrf.mxu0
      %v6305 = vadd.f32 %v6252, %v6304
      %6306 = vdwg.mxu0
      %6307 = vmatprep.subr.bf16.mxu0 %v6088
      %6308 = vmatpush1.bf16.msra.mxu0 %v6087
      %6309 = vmatprep.subr.bf16.mxu0 %v6086
      %6310 = vmatpush1.bf16.msra.mxu0 %v6085
      %6311 = vmatprep.subr.bf16.mxu0 %v6084
      %6312 = vmatpush1.bf16.msra.mxu0 %v6083
      %6313 = vmatprep.subr.bf16.mxu0 %v6082
      %6314 = vmatpush1.bf16.msra.mxu0 %v6081
      %6315 = vmatprep.subr.bf16.mxu0 %v6080
      %6316 = vmatpush1.bf16.msra.mxu0 %v6079
      %6317 = vmatprep.subr.bf16.mxu0 %v6078
      %6318 = vmatpush1.bf16.msra.mxu0 %v6077
      %6319 = vmatprep.subr.bf16.mxu0 %v6076
      %6320 = vmatpush1.bf16.msra.mxu0 %v6075
      %6321 = vmatprep.subr.bf16.mxu0 %v6074
      %6322 = vmatpush1.bf16.msra.mxu0 %v6073
      %6323 = vmatprep.subr.bf16.mxu0 %v6104
      %6324 = vmatpush2.bf16.msra.mxu0 %v6103
      %6325 = vmatprep.subr.bf16.mxu0 %v6102
      %6326 = vmatpush2.bf16.msra.mxu0 %v6101
      %6327 = vmatprep.subr.bf16.mxu0 %v6100
      %6328 = vmatpush2.bf16.msra.mxu0 %v6099
      %6329 = vmatprep.subr.bf16.mxu0 %v6098
      %6330 = vmatpush2.bf16.msra.mxu0 %v6097
      %6331 = vmatprep.subr.bf16.mxu0 %v6096
      %6332 = vmatpush2.bf16.msra.mxu0 %v6095
      %6333 = vmatprep.subr.bf16.mxu0 %v6094
      %6334 = vmatpush2.bf16.msra.mxu0 %v6093
      %6335 = vmatprep.subr.bf16.mxu0 %v6092
      %6336 = vmatpush2.bf16.msra.mxu0 %v6091
      %6337 = vmatprep.subr.bf16.mxu0 %v6090
      %6338 = vmatpush2.bf16.msra.mxu0 %v6089
      %6339 = vmatprep.mubr.bf16.mxu0 %v5702
      %6340 = vmatmul.mubr.bf16.gmra.mxu0 %v5701
      %v6341 = vpop.f32.mrf.mxu0
      %v6342 = vadd.f32 %v6289, %v6341
      %v6343 = vpop.f32.mrf.mxu0
      %v6344 = vadd.f32 %v6291, %v6343
      %v6345 = vpop.f32.mrf.mxu0
      %v6346 = vadd.f32 %v6293, %v6345
      %v6347 = vpop.f32.mrf.mxu0
      %v6348 = vadd.f32 %v6295, %v6347
      %6349 = vmatprep.mubr.bf16.mxu0 %v5708
      %6350 = vmatmul.mubr.bf16.gmra.mxu0 %v5707
      %v6351 = vpop.f32.mrf.mxu0
      %v6352 = vadd.f32 %v6299, %v6351
      %v6353 = vpop.f32.mrf.mxu0
      %v6354 = vadd.f32 %v6301, %v6353
      %v6355 = vpop.f32.mrf.mxu0
      %v6356 = vadd.f32 %v6303, %v6355
      %v6357 = vpop.f32.mrf.mxu0
      %v6358 = vadd.f32 %v6305, %v6357
      %6359 = vdwg.mxu0
      %v6360 = vadd.f32 %v5396, %v6342
      %v6361 = vadd.f32 %v5398, %v6344
      %v6362 = vadd.f32 %v5400, %v6346
      %v6363 = vadd.f32 %v5402, %v6348
      %v6364 = vadd.f32 %v5406, %v6352
      %v6365 = vadd.f32 %v5408, %v6354
      %v6366 = vadd.f32 %v5410, %v6356
      %v6367 = vadd.f32 %v5412, %v6358
      %v6368 = vmax.f32 %v6360, 0.0
      %v6369 = vmax.f32 %v6361, 0.0
      %v6370 = vmax.f32 %v6362, 0.0
      %v6371 = vmax.f32 %v6363, 0.0
      %v6372 = vmax.f32 %v6364, 0.0
      %v6373 = vmax.f32 %v6365, 0.0
      %v6374 = vmax.f32 %v6366, 0.0
      %v6375 = vmax.f32 %v6367, 0.0
      %v6376 = vpack.c.bf16 %v6370, %v6368
      %v6377 = vpack.c.bf16 %v6371, %v6369
      %v6378 = vpack.c.bf16 %v6374, %v6372
      %v6379 = vpack.c.bf16 %v6375, %v6373
      %s6380 = scalar_lea.vmem %s2, 512
      %v6381 = vld [vmem:[%s6380] sm:$0xff]
      %v6382 = vld [vmem:[%s6380 + $0x8] sm:$0xff]
      %v6383 = vld [vmem:[%s6380 + $0x10] sm:$0xff]
      %v6384 = vld [vmem:[%s6380 + $0x18] sm:$0xff]
      %v6385 = vld [vmem:[%s6380 + $0x20] sm:$0xff]
      %v6386 = vld [vmem:[%s6380 + $0x28] sm:$0xff]
      %v6387 = vld [vmem:[%s6380 + $0x30] sm:$0xff]
      %v6388 = vld [vmem:[%s6380 + $0x38] sm:$0xff]
      %v6389 = vld [vmem:[%s6380 + $0x40] sm:$0xff]
      %v6390 = vld [vmem:[%s6380 + $0x48] sm:$0xff]
      %v6391 = vld [vmem:[%s6380 + $0x50] sm:$0xff]
      %v6392 = vld [vmem:[%s6380 + $0x58] sm:$0xff]
      %v6393 = vld [vmem:[%s6380 + $0x60] sm:$0xff]
      %v6394 = vld [vmem:[%s6380 + $0x68] sm:$0xff]
      %v6395 = vld [vmem:[%s6380 + $0x70] sm:$0xff]
      %v6396 = vld [vmem:[%s6380 + $0x78] sm:$0xff]
      %v6397 = vld [vmem:[%s6380 + $0x80] sm:$0xff]
      %v6398 = vld [vmem:[%s6380 + $0x88] sm:$0xff]
      %v6399 = vld [vmem:[%s6380 + $0x90] sm:$0xff]
      %v6400 = vld [vmem:[%s6380 + $0x98] sm:$0xff]
      %v6401 = vld [vmem:[%s6380 + $0xa0] sm:$0xff]
      %v6402 = vld [vmem:[%s6380 + $0xa8] sm:$0xff]
      %v6403 = vld [vmem:[%s6380 + $0xb0] sm:$0xff]
      %v6404 = vld [vmem:[%s6380 + $0xb8] sm:$0xff]
      %v6405 = vld [vmem:[%s6380 + $0xc0] sm:$0xff]
      %v6406 = vld [vmem:[%s6380 + $0xc8] sm:$0xff]
      %v6407 = vld [vmem:[%s6380 + $0xd0] sm:$0xff]
      %v6408 = vld [vmem:[%s6380 + $0xd8] sm:$0xff]
      %v6409 = vld [vmem:[%s6380 + $0xe0] sm:$0xff]
      %v6410 = vld [vmem:[%s6380 + $0xe8] sm:$0xff]
      %v6411 = vld [vmem:[%s6380 + $0xf0] sm:$0xff]
      %v6412 = vld [vmem:[%s6380 + $0xf8] sm:$0xff]
      %v6413 = vld [vmem:[%s6380 + $0x100] sm:$0xff]
      %v6414 = vld [vmem:[%s6380 + $0x108] sm:$0xff]
      %v6415 = vld [vmem:[%s6380 + $0x110] sm:$0xff]
      %v6416 = vld [vmem:[%s6380 + $0x118] sm:$0xff]
      %v6417 = vld [vmem:[%s6380 + $0x120] sm:$0xff]
      %v6418 = vld [vmem:[%s6380 + $0x128] sm:$0xff]
      %v6419 = vld [vmem:[%s6380 + $0x130] sm:$0xff]
      %v6420 = vld [vmem:[%s6380 + $0x138] sm:$0xff]
      %v6421 = vld [vmem:[%s6380 + $0x140] sm:$0xff]
      %v6422 = vld [vmem:[%s6380 + $0x148] sm:$0xff]
      %v6423 = vld [vmem:[%s6380 + $0x150] sm:$0xff]
      %v6424 = vld [vmem:[%s6380 + $0x158] sm:$0xff]
      %v6425 = vld [vmem:[%s6380 + $0x160] sm:$0xff]
      %v6426 = vld [vmem:[%s6380 + $0x168] sm:$0xff]
      %v6427 = vld [vmem:[%s6380 + $0x170] sm:$0xff]
      %v6428 = vld [vmem:[%s6380 + $0x178] sm:$0xff]
      %v6429 = vld [vmem:[%s6380 + $0x180] sm:$0xff]
      %v6430 = vld [vmem:[%s6380 + $0x188] sm:$0xff]
      %v6431 = vld [vmem:[%s6380 + $0x190] sm:$0xff]
      %v6432 = vld [vmem:[%s6380 + $0x198] sm:$0xff]
      %v6433 = vld [vmem:[%s6380 + $0x1a0] sm:$0xff]
      %v6434 = vld [vmem:[%s6380 + $0x1a8] sm:$0xff]
      %v6435 = vld [vmem:[%s6380 + $0x1b0] sm:$0xff]
      %v6436 = vld [vmem:[%s6380 + $0x1b8] sm:$0xff]
      %v6437 = vld [vmem:[%s6380 + $0x1c0] sm:$0xff]
      %v6438 = vld [vmem:[%s6380 + $0x1c8] sm:$0xff]
      %v6439 = vld [vmem:[%s6380 + $0x1d0] sm:$0xff]
      %v6440 = vld [vmem:[%s6380 + $0x1d8] sm:$0xff]
      %v6441 = vld [vmem:[%s6380 + $0x1e0] sm:$0xff]
      %v6442 = vld [vmem:[%s6380 + $0x1e8] sm:$0xff]
      %v6443 = vld [vmem:[%s6380 + $0x1f0] sm:$0xff]
      %v6444 = vld [vmem:[%s6380 + $0x1f8] sm:$0xff]
      %v6509 = vunpack.c.l.b16 %v6381
      %v6510 = vunpack.c.h.b16 %v6381
      %v6511 = vunpack.c.l.b16 %v6382
      %v6512 = vunpack.c.h.b16 %v6382
      %v6513 = vunpack.c.l.b16 %v6383
      %v6514 = vunpack.c.h.b16 %v6383
      %v6515 = vunpack.c.l.b16 %v6384
      %v6516 = vunpack.c.h.b16 %v6384
      %v6517 = vunpack.c.l.b16 %v6385
      %v6518 = vunpack.c.h.b16 %v6385
      %v6519 = vunpack.c.l.b16 %v6386
      %v6520 = vunpack.c.h.b16 %v6386
      %v6521 = vunpack.c.l.b16 %v6387
      %v6522 = vunpack.c.h.b16 %v6387
      %v6523 = vunpack.c.l.b16 %v6388
      %v6524 = vunpack.c.h.b16 %v6388
      %v6525 = vunpack.c.l.b16 %v6389
      %v6526 = vunpack.c.h.b16 %v6389
      %v6527 = vunpack.c.l.b16 %v6390
      %v6528 = vunpack.c.h.b16 %v6390
      %v6529 = vunpack.c.l.b16 %v6391
      %v6530 = vunpack.c.h.b16 %v6391
      %v6531 = vunpack.c.l.b16 %v6392
      %v6532 = vunpack.c.h.b16 %v6392
      %v6533 = vunpack.c.l.b16 %v6393
      %v6534 = vunpack.c.h.b16 %v6393
      %v6535 = vunpack.c.l.b16 %v6394
      %v6536 = vunpack.c.h.b16 %v6394
      %v6537 = vunpack.c.l.b16 %v6395
      %v6538 = vunpack.c.h.b16 %v6395
      %v6539 = vunpack.c.l.b16 %v6396
      %v6540 = vunpack.c.h.b16 %v6396
      %v6541 = vunpack.c.l.b16 %v6397
      %v6542 = vunpack.c.h.b16 %v6397
      %v6543 = vunpack.c.l.b16 %v6398
      %v6544 = vunpack.c.h.b16 %v6398
      %v6545 = vunpack.c.l.b16 %v6399
      %v6546 = vunpack.c.h.b16 %v6399
      %v6547 = vunpack.c.l.b16 %v6400
      %v6548 = vunpack.c.h.b16 %v6400
      %v6549 = vunpack.c.l.b16 %v6401
      %v6550 = vunpack.c.h.b16 %v6401
      %v6551 = vunpack.c.l.b16 %v6402
      %v6552 = vunpack.c.h.b16 %v6402
      %v6553 = vunpack.c.l.b16 %v6403
      %v6554 = vunpack.c.h.b16 %v6403
      %v6555 = vunpack.c.l.b16 %v6404
      %v6556 = vunpack.c.h.b16 %v6404
      %v6557 = vunpack.c.l.b16 %v6405
      %v6558 = vunpack.c.h.b16 %v6405
      %v6559 = vunpack.c.l.b16 %v6406
      %v6560 = vunpack.c.h.b16 %v6406
      %v6561 = vunpack.c.l.b16 %v6407
      %v6562 = vunpack.c.h.b16 %v6407
      %v6563 = vunpack.c.l.b16 %v6408
      %v6564 = vunpack.c.h.b16 %v6408
      %v6565 = vunpack.c.l.b16 %v6409
      %v6566 = vunpack.c.h.b16 %v6409
      %v6567 = vunpack.c.l.b16 %v6410
      %v6568 = vunpack.c.h.b16 %v6410
      %v6569 = vunpack.c.l.b16 %v6411
      %v6570 = vunpack.c.h.b16 %v6411
      %v6571 = vunpack.c.l.b16 %v6412
      %v6572 = vunpack.c.h.b16 %v6412
      %v6573 = vunpack.c.l.b16 %v6413
      %v6574 = vunpack.c.h.b16 %v6413
      %v6575 = vunpack.c.l.b16 %v6414
      %v6576 = vunpack.c.h.b16 %v6414
      %v6577 = vunpack.c.l.b16 %v6415
      %v6578 = vunpack.c.h.b16 %v6415
      %v6579 = vunpack.c.l.b16 %v6416
      %v6580 = vunpack.c.h.b16 %v6416
      %v6581 = vunpack.c.l.b16 %v6417
      %v6582 = vunpack.c.h.b16 %v6417
      %v6583 = vunpack.c.l.b16 %v6418
      %v6584 = vunpack.c.h.b16 %v6418
      %v6585 = vunpack.c.l.b16 %v6419
      %v6586 = vunpack.c.h.b16 %v6419
      %v6587 = vunpack.c.l.b16 %v6420
      %v6588 = vunpack.c.h.b16 %v6420
      %v6589 = vunpack.c.l.b16 %v6421
      %v6590 = vunpack.c.h.b16 %v6421
      %v6591 = vunpack.c.l.b16 %v6422
      %v6592 = vunpack.c.h.b16 %v6422
      %v6593 = vunpack.c.l.b16 %v6423
      %v6594 = vunpack.c.h.b16 %v6423
      %v6595 = vunpack.c.l.b16 %v6424
      %v6596 = vunpack.c.h.b16 %v6424
      %v6597 = vunpack.c.l.b16 %v6425
      %v6598 = vunpack.c.h.b16 %v6425
      %v6599 = vunpack.c.l.b16 %v6426
      %v6600 = vunpack.c.h.b16 %v6426
      %v6601 = vunpack.c.l.b16 %v6427
      %v6602 = vunpack.c.h.b16 %v6427
      %v6603 = vunpack.c.l.b16 %v6428
      %v6604 = vunpack.c.h.b16 %v6428
      %v6605 = vunpack.c.l.b16 %v6429
      %v6606 = vunpack.c.h.b16 %v6429
      %v6607 = vunpack.c.l.b16 %v6430
      %v6608 = vunpack.c.h.b16 %v6430
      %v6609 = vunpack.c.l.b16 %v6431
      %v6610 = vunpack.c.h.b16 %v6431
      %v6611 = vunpack.c.l.b16 %v6432
      %v6612 = vunpack.c.h.b16 %v6432
      %v6613 = vunpack.c.l.b16 %v6433
      %v6614 = vunpack.c.h.b16 %v6433
      %v6615 = vunpack.c.l.b16 %v6434
      %v6616 = vunpack.c.h.b16 %v6434
      %v6617 = vunpack.c.l.b16 %v6435
      %v6618 = vunpack.c.h.b16 %v6435
      %v6619 = vunpack.c.l.b16 %v6436
      %v6620 = vunpack.c.h.b16 %v6436
      %v6621 = vunpack.c.l.b16 %v6437
      %v6622 = vunpack.c.h.b16 %v6437
      %v6623 = vunpack.c.l.b16 %v6438
      %v6624 = vunpack.c.h.b16 %v6438
      %v6625 = vunpack.c.l.b16 %v6439
      %v6626 = vunpack.c.h.b16 %v6439
      %v6627 = vunpack.c.l.b16 %v6440
      %v6628 = vunpack.c.h.b16 %v6440
      %v6629 = vunpack.c.l.b16 %v6441
      %v6630 = vunpack.c.h.b16 %v6441
      %v6631 = vunpack.c.l.b16 %v6442
      %v6632 = vunpack.c.h.b16 %v6442
      %v6633 = vunpack.c.l.b16 %v6443
      %v6634 = vunpack.c.h.b16 %v6443
      %v6635 = vunpack.c.l.b16 %v6444
      %v6636 = vunpack.c.h.b16 %v6444
      %v6637 = vpack.c.b16 %v6513, %v6509
      %v6638 = vpack.c.b16 %v6514, %v6510
      %v6639 = vpack.c.b16 %v6515, %v6511
      %v6640 = vpack.c.b16 %v6516, %v6512
      %v6641 = vpack.c.b16 %v6521, %v6517
      %v6642 = vpack.c.b16 %v6522, %v6518
      %v6643 = vpack.c.b16 %v6523, %v6519
      %v6644 = vpack.c.b16 %v6524, %v6520
      %v6645 = vpack.c.b16 %v6529, %v6525
      %v6646 = vpack.c.b16 %v6530, %v6526
      %v6647 = vpack.c.b16 %v6531, %v6527
      %v6648 = vpack.c.b16 %v6532, %v6528
      %v6649 = vpack.c.b16 %v6537, %v6533
      %v6650 = vpack.c.b16 %v6538, %v6534
      %v6651 = vpack.c.b16 %v6539, %v6535
      %v6652 = vpack.c.b16 %v6540, %v6536
      %v6653 = vpack.c.b16 %v6545, %v6541
      %v6654 = vpack.c.b16 %v6546, %v6542
      %v6655 = vpack.c.b16 %v6547, %v6543
      %v6656 = vpack.c.b16 %v6548, %v6544
      %v6657 = vpack.c.b16 %v6553, %v6549
      %v6658 = vpack.c.b16 %v6554, %v6550
      %v6659 = vpack.c.b16 %v6555, %v6551
      %v6660 = vpack.c.b16 %v6556, %v6552
      %v6661 = vpack.c.b16 %v6561, %v6557
      %v6662 = vpack.c.b16 %v6562, %v6558
      %v6663 = vpack.c.b16 %v6563, %v6559
      %v6664 = vpack.c.b16 %v6564, %v6560
      %v6665 = vpack.c.b16 %v6569, %v6565
      %v6666 = vpack.c.b16 %v6570, %v6566
      %v6667 = vpack.c.b16 %v6571, %v6567
      %v6668 = vpack.c.b16 %v6572, %v6568
      %v6669 = vpack.c.b16 %v6577, %v6573
      %v6670 = vpack.c.b16 %v6578, %v6574
      %v6671 = vpack.c.b16 %v6579, %v6575
      %v6672 = vpack.c.b16 %v6580, %v6576
      %v6673 = vpack.c.b16 %v6585, %v6581
      %v6674 = vpack.c.b16 %v6586, %v6582
      %v6675 = vpack.c.b16 %v6587, %v6583
      %v6676 = vpack.c.b16 %v6588, %v6584
      %v6677 = vpack.c.b16 %v6593, %v6589
      %v6678 = vpack.c.b16 %v6594, %v6590
      %v6679 = vpack.c.b16 %v6595, %v6591
      %v6680 = vpack.c.b16 %v6596, %v6592
      %v6681 = vpack.c.b16 %v6601, %v6597
      %v6682 = vpack.c.b16 %v6602, %v6598
      %v6683 = vpack.c.b16 %v6603, %v6599
      %v6684 = vpack.c.b16 %v6604, %v6600
      %v6685 = vpack.c.b16 %v6609, %v6605
      %v6686 = vpack.c.b16 %v6610, %v6606
      %v6687 = vpack.c.b16 %v6611, %v6607
      %v6688 = vpack.c.b16 %v6612, %v6608
      %v6689 = vpack.c.b16 %v6617, %v6613
      %v6690 = vpack.c.b16 %v6618, %v6614
      %v6691 = vpack.c.b16 %v6619, %v6615
      %v6692 = vpack.c.b16 %v6620, %v6616
      %v6693 = vpack.c.b16 %v6625, %v6621
      %v6694 = vpack.c.b16 %v6626, %v6622
      %v6695 = vpack.c.b16 %v6627, %v6623
      %v6696 = vpack.c.b16 %v6628, %v6624
      %v6697 = vpack.c.b16 %v6633, %v6629
      %v6698 = vpack.c.b16 %v6634, %v6630
      %v6699 = vpack.c.b16 %v6635, %v6631
      %v6700 = vpack.c.b16 %v6636, %v6632
      %6765 = vmatprep.subr.bf16.mxu0 %v6666
      %6766 = vmatpush1.bf16.msra.mxu0 %v6665
      %6767 = vmatprep.subr.bf16.mxu0 %v6662
      %6768 = vmatpush1.bf16.msra.mxu0 %v6661
      %6769 = vmatprep.subr.bf16.mxu0 %v6658
      %6770 = vmatpush1.bf16.msra.mxu0 %v6657
      %6771 = vmatprep.subr.bf16.mxu0 %v6654
      %6772 = vmatpush1.bf16.msra.mxu0 %v6653
      %6773 = vmatprep.subr.bf16.mxu0 %v6650
      %6774 = vmatpush1.bf16.msra.mxu0 %v6649
      %6775 = vmatprep.subr.bf16.mxu0 %v6646
      %6776 = vmatpush1.bf16.msra.mxu0 %v6645
      %6777 = vmatprep.subr.bf16.mxu0 %v6642
      %6778 = vmatpush1.bf16.msra.mxu0 %v6641
      %6779 = vmatprep.subr.bf16.mxu0 %v6638
      %6780 = vmatpush1.bf16.msra.mxu0 %v6637
      %6781 = vmatprep.subr.bf16.mxu0 %v6698
      %6782 = vmatpush2.bf16.msra.mxu0 %v6697
      %6783 = vmatprep.subr.bf16.mxu0 %v6694
      %6784 = vmatpush2.bf16.msra.mxu0 %v6693
      %6785 = vmatprep.subr.bf16.mxu0 %v6690
      %6786 = vmatpush2.bf16.msra.mxu0 %v6689
      %6787 = vmatprep.subr.bf16.mxu0 %v6686
      %6788 = vmatpush2.bf16.msra.mxu0 %v6685
      %6789 = vmatprep.subr.bf16.mxu0 %v6682
      %6790 = vmatpush2.bf16.msra.mxu0 %v6681
      %6791 = vmatprep.subr.bf16.mxu0 %v6678
      %6792 = vmatpush2.bf16.msra.mxu0 %v6677
      %6793 = vmatprep.subr.bf16.mxu0 %v6674
      %6794 = vmatpush2.bf16.msra.mxu0 %v6673
      %6795 = vmatprep.subr.bf16.mxu0 %v6670
      %6796 = vmatpush2.bf16.msra.mxu0 %v6669
      %6797 = vmatprep.mubr.bf16.mxu0 %v6377
      %6798 = vmatmul.mubr.bf16.gmra.mxu0 %v6376
      %v6799 = vpop.f32.mrf.mxu0
      %v6800 = vadd.f32 0.0, %v6799
      %v6801 = vpop.f32.mrf.mxu0
      %v6802 = vadd.f32 0.0, %v6801
      %v6803 = vpop.f32.mrf.mxu0
      %v6804 = vadd.f32 0.0, %v6803
      %v6805 = vpop.f32.mrf.mxu0
      %v6806 = vadd.f32 0.0, %v6805
      %6807 = vmatprep.mubr.bf16.mxu0 %v6379
      %6808 = vmatmul.mubr.bf16.gmra.mxu0 %v6378
      %v6809 = vpop.f32.mrf.mxu0
      %v6810 = vadd.f32 0.0, %v6809
      %v6811 = vpop.f32.mrf.mxu0
      %v6812 = vadd.f32 0.0, %v6811
      %v6813 = vpop.f32.mrf.mxu0
      %v6814 = vadd.f32 0.0, %v6813
      %v6815 = vpop.f32.mrf.mxu0
      %v6816 = vadd.f32 0.0, %v6815
      %6817 = vdwg.mxu0
      %6818 = vmatprep.subr.bf16.mxu0 %v6668
      %6819 = vmatpush1.bf16.msra.mxu0 %v6667
      %6820 = vmatprep.subr.bf16.mxu0 %v6664
      %6821 = vmatpush1.bf16.msra.mxu0 %v6663
      %6822 = vmatprep.subr.bf16.mxu0 %v6660
      %6823 = vmatpush1.bf16.msra.mxu0 %v6659
      %6824 = vmatprep.subr.bf16.mxu0 %v6656
      %6825 = vmatpush1.bf16.msra.mxu0 %v6655
      %6826 = vmatprep.subr.bf16.mxu0 %v6652
      %6827 = vmatpush1.bf16.msra.mxu0 %v6651
      %6828 = vmatprep.subr.bf16.mxu0 %v6648
      %6829 = vmatpush1.bf16.msra.mxu0 %v6647
      %6830 = vmatprep.subr.bf16.mxu0 %v6644
      %6831 = vmatpush1.bf16.msra.mxu0 %v6643
      %6832 = vmatprep.subr.bf16.mxu0 %v6640
      %6833 = vmatpush1.bf16.msra.mxu0 %v6639
      %6834 = vmatprep.subr.bf16.mxu0 %v6700
      %6835 = vmatpush2.bf16.msra.mxu0 %v6699
      %6836 = vmatprep.subr.bf16.mxu0 %v6696
      %6837 = vmatpush2.bf16.msra.mxu0 %v6695
      %6838 = vmatprep.subr.bf16.mxu0 %v6692
      %6839 = vmatpush2.bf16.msra.mxu0 %v6691
      %6840 = vmatprep.subr.bf16.mxu0 %v6688
      %6841 = vmatpush2.bf16.msra.mxu0 %v6687
      %6842 = vmatprep.subr.bf16.mxu0 %v6684
      %6843 = vmatpush2.bf16.msra.mxu0 %v6683
      %6844 = vmatprep.subr.bf16.mxu0 %v6680
      %6845 = vmatpush2.bf16.msra.mxu0 %v6679
      %6846 = vmatprep.subr.bf16.mxu0 %v6676
      %6847 = vmatpush2.bf16.msra.mxu0 %v6675
      %6848 = vmatprep.subr.bf16.mxu0 %v6672
      %6849 = vmatpush2.bf16.msra.mxu0 %v6671
      %6850 = vmatprep.mubr.bf16.mxu0 %v6377
      %6851 = vmatmul.mubr.bf16.gmra.mxu0 %v6376
      %v6852 = vpop.f32.mrf.mxu0
      %v6853 = vadd.f32 0.0, %v6852
      %v6854 = vpop.f32.mrf.mxu0
      %v6855 = vadd.f32 0.0, %v6854
      %v6856 = vpop.f32.mrf.mxu0
      %v6857 = vadd.f32 0.0, %v6856
      %v6858 = vpop.f32.mrf.mxu0
      %v6859 = vadd.f32 0.0, %v6858
      %6860 = vmatprep.mubr.bf16.mxu0 %v6379
      %6861 = vmatmul.mubr.bf16.gmra.mxu0 %v6378
      %v6862 = vpop.f32.mrf.mxu0
      %v6863 = vadd.f32 0.0, %v6862
      %v6864 = vpop.f32.mrf.mxu0
      %v6865 = vadd.f32 0.0, %v6864
      %v6866 = vpop.f32.mrf.mxu0
      %v6867 = vadd.f32 0.0, %v6866
      %v6868 = vpop.f32.mrf.mxu0
      %v6869 = vadd.f32 0.0, %v6868
      %6870 = vdwg.mxu0
      %v6871 = vld [vmem:[#allocation2] sm:$0xff]
      %v6872 = vld [vmem:[#allocation2 + $0x8] sm:$0xff]
      %v6873 = vld [vmem:[#allocation2 + $0x10] sm:$0xff]
      %v6874 = vld [vmem:[#allocation2 + $0x18] sm:$0xff]
      %v6875 = vld [vmem:[#allocation2 + $0x20] sm:$0xff]
      %v6876 = vld [vmem:[#allocation2 + $0x28] sm:$0xff]
      %v6877 = vld [vmem:[#allocation2 + $0x30] sm:$0xff]
      %v6878 = vld [vmem:[#allocation2 + $0x38] sm:$0xff]
      %v6879 = vld [vmem:[#allocation2 + $0x40] sm:$0xff]
      %v6880 = vld [vmem:[#allocation2 + $0x48] sm:$0xff]
      %v6881 = vld [vmem:[#allocation2 + $0x50] sm:$0xff]
      %v6882 = vld [vmem:[#allocation2 + $0x58] sm:$0xff]
      %v6883 = vld [vmem:[#allocation2 + $0x60] sm:$0xff]
      %v6884 = vld [vmem:[#allocation2 + $0x68] sm:$0xff]
      %v6885 = vld [vmem:[#allocation2 + $0x70] sm:$0xff]
      %v6886 = vld [vmem:[#allocation2 + $0x78] sm:$0xff]
      %v6887 = vadd.f32 %v6871, %v6800
      %v6888 = vadd.f32 %v6872, %v6802
      %v6889 = vadd.f32 %v6873, %v6853
      %v6890 = vadd.f32 %v6874, %v6855
      %v6891 = vadd.f32 %v6875, %v6804
      %v6892 = vadd.f32 %v6876, %v6806
      %v6893 = vadd.f32 %v6877, %v6857
      %v6894 = vadd.f32 %v6878, %v6859
      %v6895 = vadd.f32 %v6879, %v6810
      %v6896 = vadd.f32 %v6880, %v6812
      %v6897 = vadd.f32 %v6881, %v6863
      %v6898 = vadd.f32 %v6882, %v6865
      %v6899 = vadd.f32 %v6883, %v6814
      %v6900 = vadd.f32 %v6884, %v6816
      %v6901 = vadd.f32 %v6885, %v6867
      %v6902 = vadd.f32 %v6886, %v6869
      %6903 = vst [vmem:[#allocation2] sm:$0xff] %v6887
      %6904 = vst [vmem:[#allocation2 + $0x8] sm:$0xff] %v6888
      %6905 = vst [vmem:[#allocation2 + $0x10] sm:$0xff] %v6889
      %6906 = vst [vmem:[#allocation2 + $0x18] sm:$0xff] %v6890
      %6907 = vst [vmem:[#allocation2 + $0x20] sm:$0xff] %v6891
      %6908 = vst [vmem:[#allocation2 + $0x28] sm:$0xff] %v6892
      %6909 = vst [vmem:[#allocation2 + $0x30] sm:$0xff] %v6893
      %6910 = vst [vmem:[#allocation2 + $0x38] sm:$0xff] %v6894
      %6911 = vst [vmem:[#allocation2 + $0x40] sm:$0xff] %v6895
      %6912 = vst [vmem:[#allocation2 + $0x48] sm:$0xff] %v6896
      %6913 = vst [vmem:[#allocation2 + $0x50] sm:$0xff] %v6897
      %6914 = vst [vmem:[#allocation2 + $0x58] sm:$0xff] %v6898
      %6915 = vst [vmem:[#allocation2 + $0x60] sm:$0xff] %v6899
      %6916 = vst [vmem:[#allocation2 + $0x68] sm:$0xff] %v6900
      %6917 = vst [vmem:[#allocation2 + $0x70] sm:$0xff] %v6901
      %6918 = vst [vmem:[#allocation2 + $0x78] sm:$0xff] %v6902
      %v6919 = vld [vmem:[#allocation2] sm:$0xff]
      %v6920 = vld [vmem:[#allocation2 + $0x8] sm:$0xff]
      %v6921 = vld [vmem:[#allocation2 + $0x10] sm:$0xff]
      %v6922 = vld [vmem:[#allocation2 + $0x18] sm:$0xff]
      %v6923 = vld [vmem:[#allocation2 + $0x20] sm:$0xff]
      %v6924 = vld [vmem:[#allocation2 + $0x28] sm:$0xff]
      %v6925 = vld [vmem:[#allocation2 + $0x30] sm:$0xff]
      %v6926 = vld [vmem:[#allocation2 + $0x38] sm:$0xff]
      %v6927 = vld [vmem:[#allocation2 + $0x40] sm:$0xff]
      %v6928 = vld [vmem:[#allocation2 + $0x48] sm:$0xff]
      %v6929 = vld [vmem:[#allocation2 + $0x50] sm:$0xff]
      %v6930 = vld [vmem:[#allocation2 + $0x58] sm:$0xff]
      %v6931 = vld [vmem:[#allocation2 + $0x60] sm:$0xff]
      %v6932 = vld [vmem:[#allocation2 + $0x68] sm:$0xff]
      %v6933 = vld [vmem:[#allocation2 + $0x70] sm:$0xff]
      %v6934 = vld [vmem:[#allocation2 + $0x78] sm:$0xff]
      %v6935 = vmax.f32 %v6919, 0.0
      %v6936 = vmax.f32 %v6920, 0.0
      %v6937 = vmax.f32 %v6921, 0.0
      %v6938 = vmax.f32 %v6922, 0.0
      %v6939 = vmax.f32 %v6923, 0.0
      %v6940 = vmax.f32 %v6924, 0.0
      %v6941 = vmax.f32 %v6925, 0.0
      %v6942 = vmax.f32 %v6926, 0.0
      %v6943 = vmax.f32 %v6927, 0.0
      %v6944 = vmax.f32 %v6928, 0.0
      %v6945 = vmax.f32 %v6929, 0.0
      %v6946 = vmax.f32 %v6930, 0.0
      %v6947 = vmax.f32 %v6931, 0.0
      %v6948 = vmax.f32 %v6932, 0.0
      %v6949 = vmax.f32 %v6933, 0.0
      %v6950 = vmax.f32 %v6934, 0.0
      %6951 = vst [vmem:[%s177] sm:$0xff] %v6935
      %6952 = vst [vmem:[%s177 + $0x8] sm:$0xff] %v6936
      %6953 = vst [vmem:[%s177 + $0x10] sm:$0xff] %v6937
      %6954 = vst [vmem:[%s177 + $0x18] sm:$0xff] %v6938
      %6955 = vst [vmem:[%s177 + $0x20] sm:$0xff] %v6939
      %6956 = vst [vmem:[%s177 + $0x28] sm:$0xff] %v6940
      %6957 = vst [vmem:[%s177 + $0x30] sm:$0xff] %v6941
      %6958 = vst [vmem:[%s177 + $0x38] sm:$0xff] %v6942
      %6959 = vst [vmem:[%s177 + $0x40] sm:$0xff] %v6943
      %6960 = vst [vmem:[%s177 + $0x48] sm:$0xff] %v6944
      %6961 = vst [vmem:[%s177 + $0x50] sm:$0xff] %v6945
      %6962 = vst [vmem:[%s177 + $0x58] sm:$0xff] %v6946
      %6963 = vst [vmem:[%s177 + $0x60] sm:$0xff] %v6947
      %6964 = vst [vmem:[%s177 + $0x68] sm:$0xff] %v6948
      %6965 = vst [vmem:[%s177 + $0x70] sm:$0xff] %v6949
      %6966 = vst [vmem:[%s177 + $0x78] sm:$0xff] %v6950
      %s6967 = smul.u32 2, %s14
      %p6968 = scmp.lt.s32.totalorder %s6967, 3
      %s6969 = scalar_select %p6968, %s6967, 3
      %s6970 = smul.addr %s6969, 8
      %s6971 = smul.addr %s6970, 8
      %s6972 = scalar_lea.vmem %s3, %s6971
      // Predicated region
      $region33: #{residual_stack_forward_nchw.1} parent=31 // pred_check
        %p6973 = pneg %p100
      $region34: #{residual_stack_forward_nchw.1} parent=31 // pred_check_branch
        %6975 = sbr.rel (%p6973) target = $region36
      $region35: #{residual_stack_forward_nchw.1} parent=31 // pred_region
        %s6976 = smul.u32 2, %s14
      $region36: #{residual_stack_forward_nchw.1} parent=31 // pred_fallthru
        _
    $region32: #{residual_stack_forward_nchw.1} parent=5 // pred_fallthru
      _
    %p6977 = scmp.le.s32.totalorder 2, %s9
    // Predicated region
    $region37: #{residual_stack_forward_nchw.1} parent=5 // pred_check
      %p6978 = pneg %p6977
    $region38: #{residual_stack_forward_nchw.1} parent=5 // pred_check_branch
      %6980 = sbr.rel (%p6978) target = $region40
    $region39: #{residual_stack_forward_nchw.1} parent=5 // pred_region
      %s6981 = ssub.s32 %s9, 2
      // Predicated region
      $region41: #{residual_stack_forward_nchw.1} parent=39 // pred_check
        %p6982 = pneg %p106
      $region42: #{residual_stack_forward_nchw.1} parent=39 // pred_check_branch
        %6984 = sbr.rel (%p6982) target = $region44
      $region43: #{residual_stack_forward_nchw.1} parent=39 // pred_region
        %s6985 = smul.u32 2, %s15
        %p6986 = scmp.lt.s32.totalorder %s6985, 3
        %s6987 = scalar_select %p6986, %s6985, 3
        %s6988 = smul.addr %s6987, 8
        %s6989 = smul.addr %s6988, 8
        %s6990 = scalar_lea.vmem %s3, %s6989
      $region44: #{residual_stack_forward_nchw.1} parent=39 // pred_fallthru
        _
    $region40: #{residual_stack_forward_nchw.1} parent=5 // pred_fallthru
      _
  $region6: #{residual_stack_forward_nchw.1} parent=0 // loop_footer
    %s13 = sadd.s32 1, %s9
  $region7: #{residual_stack_forward_nchw.1} parent=0 // loop_footer_branch
    %8 = sbr.rel target = $region3
  $region8: #{residual_stack_forward_nchw.1} parent=0 // loop_exit
    _

</llo_original>
